<compile_context>
chip_gen: v6e
topology: v6e:2x2x1
jax: 0.10.0
libtpu: 0.0.40
codegen_flags: <defaults>
</compile_context>

<pallas_src>
import functools

import jax
import jax.numpy as jnp
from jax import lax
from jax.experimental import pallas as pl
from jax.experimental.pallas import tpu as pltpu

# ----------------------------- configuration --------------------------------
CFG = dict(T=3, A=16, B=16, z_size=8, read_N=4, write_N=4,
           enc_size=32, dec_size=32, channel=1)
NUM_SEGMENTS = 3
NUM_PATHS = 1
WRITE_OUT = NUM_PATHS * (2 * (NUM_SEGMENTS + 1) + 1 + 1)   # = 10
PACK = 128                                                  # lane-dense slab width

_VMEM = pl.BlockSpec(memory_space=pltpu.MemorySpace.VMEM)


# ------------------------------- fused kernel --------------------------------
def _draw_kernel(x_ref, eps_ref, attn_b_ref,
                 wg_ref, wh_enc_ref, enc_whh_ref, enc_b_ref,
                 wmusig_ref, bmusig_ref,
                 dec_wih_ref, dec_whh_ref, dec_b_ref,
                 wwa_ref, bwa_ref,
                 packed_ref,
                 *, T, A, B, N, Z, E, D, batch, n_write):
    f32 = jnp.float32

    # recurrent state kept as values (tiny; lives in vregs/VMEM for the call)
    h_enc = jnp.zeros((batch, E), f32)
    enc_c = jnp.zeros((batch, E), f32)
    h_dec_prev = jnp.zeros((batch, D), f32)
    dec_c = jnp.zeros((batch, D), f32)

    # filterbank iotas, built once (3-D so per-step math broadcasts over batch)
    n_iota = lax.broadcasted_iota(jnp.int32, (1, N, 1), 1).astype(f32)  # 0..N-1
    a_iota = lax.broadcasted_iota(jnp.int32, (1, 1, A), 2).astype(f32)  # 0..A-1
    b_iota = lax.broadcasted_iota(jnp.int32, (1, 1, B), 2).astype(f32)  # 0..B-1

    img = x_ref[...]                                        # (batch, B, A)
    pad = jnp.zeros((batch, PACK - (3 * Z + n_write)), f32)

    # fc_attention params for step 0: h_dec_prev == 0 -> bias only.
    params = jnp.broadcast_to(attn_b_ref[...], (batch, 5))

    for t in range(T):                                      # T = 3, static unroll
        # ---- read(): attention window + filterbank glimpse (whole batch) ----
        gx = (A + 1) / 2.0 * (params[:, 0:1] + 1.0)          # (batch, 1)
        gy = (B + 1) / 2.0 * (params[:, 1:2] + 1.0)
        exps = jnp.exp(params[:, 2:5])                       # sigma2 | e^logdelta | gamma
        sigma2 = exps[:, 0:1]
        delta = (max(A, B) - 1) / (N - 1) * exps[:, 1:2]
        gamma = exps[:, 2:3]

        gx3 = gx[:, :, None]                                 # (batch, 1, 1)
        gy3 = gy[:, :, None]
        delta3 = delta[:, :, None]
        sig3 = sigma2[:, :, None]

        mu_x = gx3 + (n_iota - (N / 2.0 + 0.5)) * delta3     # (batch, N, 1)
        mu_y = gy3 + (n_iota - (N / 2.0 + 0.5)) * delta3     # (batch, N, 1)

        Fx = jnp.exp(-jnp.square(a_iota - mu_x) / (2.0 * sig3))   # (batch, N, A)
        Fy = jnp.exp(-jnp.square(b_iota - mu_y) / (2.0 * sig3))   # (batch, N, B)
        Fx = Fx / (jnp.sum(Fx, axis=2, keepdims=True) + 1e-8)
        Fy = Fy / (jnp.sum(Fy, axis=2, keepdims=True) + 1e-8)

        # glimpse = Fy @ (img @ Fx^T), batched over batch
        t1 = jnp.einsum('bka,bna->bkn', img, Fx,
                        preferred_element_type=f32)          # (batch, B, N)
        g = jnp.einsum('bik,bkj->bij', Fy, t1,
                       preferred_element_type=f32)           # (batch, N, N)

        # Row-major flatten (== glimpse.view(-1, N*N)), scale by gamma, then a
        # SINGLE matmul against the pre-summed x / x_hat glimpse weights.
        # TODO(synk): canvas is always zero (pydiffvg rasterizer stub) so
        # x_hat == x; wg_ref already holds W_glimpse + W_glimpse_hat.
        g_flat = jnp.concatenate([g[:, i, :] for i in range(N)], axis=1)
        g_flat = g_flat * gamma                              # (batch, N*N)
        r_gate = jnp.dot(g_flat, wg_ref[...], preferred_element_type=f32)

        # ---- encoder LSTMCell (PyTorch gate order i, f, g, o) ----------------
        gates = (r_gate
                 + jnp.dot(h_dec_prev, wh_enc_ref[...], preferred_element_type=f32)
                 + jnp.dot(h_enc, enc_whh_ref[...], preferred_element_type=f32)
                 + enc_b_ref[...])                           # (batch, 4E)
        sg = jax.nn.sigmoid(gates)                           # one EUP slab
        enc_c = (sg[:, E:2 * E] * enc_c
                 + sg[:, 0:E] * jnp.tanh(gates[:, 2 * E:3 * E]))
        h_enc = sg[:, 3 * E:4 * E] * jnp.tanh(enc_c)

        # ---- sampleQ: fused fc_mu | fc_sigma + reparameterized sample -------
        musig = (jnp.dot(h_enc, wmusig_ref[...], preferred_element_type=f32)
                 + bmusig_ref[...])                          # (batch, 2Z)
        mu = musig[:, 0:Z]
        log_sigma = musig[:, Z:2 * Z]
        sigma = jnp.exp(log_sigma)
        z = mu + eps_ref[t] * sigma

        # ---- decoder LSTMCell ------------------------------------------------
        dgates = (jnp.dot(z, dec_wih_ref[...], preferred_element_type=f32)
                  + jnp.dot(h_dec_prev, dec_whh_ref[...], preferred_element_type=f32)
                  + dec_b_ref[...])                          # (batch, 4D)
        sd = jax.nn.sigmoid(dgates)
        dec_c = (sd[:, D:2 * D] * dec_c
                 + sd[:, 0:D] * jnp.tanh(dgates[:, 2 * D:3 * D]))
        h_dec = sd[:, 3 * D:4 * D] * jnp.tanh(dec_c)

        # ---- fused fc_write | fc_emb | fc_attention(next step) --------------
        we = (jnp.dot(h_dec, wwa_ref[...], preferred_element_type=f32)
              + bwa_ref[...])                                # (batch, n_write + D + 5)
        w_t = we[:, 0:n_write]
        h_dec_prev = we[:, n_write:n_write + D]              # fc_emb(h_dec)
        params = we[:, n_write + D:n_write + D + 5]          # fc_attention(fc_emb(h_dec))

        # ---- one lane-dense 128-wide store per step --------------------------
        packed_ref[t] = jnp.concatenate([mu, log_sigma, sigma, w_t, pad], axis=1)


# ------------------------------ model forward ---------------------------------
def draw_forward(x_flat, eps, p, cfg):
    batch = x_flat.shape[0]
    A, B, C = cfg['A'], cfg['B'], cfg['channel']
    N, E, D = cfg['read_N'], cfg['enc_size'], cfg['dec_size']
    Z, T = cfg['z_size'], cfg['T']
    assert C == 1, "kernel implements the channel == 1 layout"

    x_img = x_flat.reshape(batch, B, A)

    # One-time weight re-packing (tiny XLA ops under jit).
    nn2 = N * N * C
    # enc_wih rows: [x-glimpse | x_hat-glimpse | h_dec_prev]; canvas is zero
    # (rasterizer stub) so x_hat == x and the two glimpse blocks are summed.
    wg = p['enc_wih'][0:nn2] + p['enc_wih'][nn2:2 * nn2]         # (N*N, 4E)
    wh_enc = p['enc_wih'][2 * nn2:]                              # (D, 4E)
    enc_b = p['enc_bih'] + p['enc_bhh']
    dec_b = p['dec_bih'] + p['dec_bhh']
    wmusig = jnp.concatenate([p['mu_w'], p['sig_w']], axis=1)    # (E, 2Z)
    bmusig = jnp.concatenate([p['mu_b'], p['sig_b']], axis=1)
    # fc_write | fc_emb | folded fc_attention  (params_{t+1} = emb(h) @ Wa + ba)
    wwa = jnp.concatenate([p['write_w'], p['emb_w'],
                           p['emb_w'] @ p['attn_w']], axis=1)    # (D, 10 + D + 5)
    bwa = jnp.concatenate([p['write_b'], p['emb_b'],
                           p['emb_b'] @ p['attn_w'] + p['attn_b']], axis=1)

    kernel = functools.partial(_draw_kernel, T=T, A=A, B=B, N=N, Z=Z, E=E, D=D,
                               batch=batch, n_write=WRITE_OUT)

    packed = pl.pallas_call(
        kernel,
        out_shape=jax.ShapeDtypeStruct((T, batch, PACK), jnp.float32),
        in_specs=[_VMEM] * 14,
        out_specs=_VMEM,
    )(x_img, eps, p['attn_b'],
      wg, wh_enc, p['enc_whh'], enc_b,
      wmusig, bmusig,
      p['dec_wih'], p['dec_whh'], dec_b,
      wwa, bwa)

    # TODO(synk): cs needs the pydiffvg differentiable rasterizer (no Pallas
    # equivalent); the canvas stays identically zero, produced directly in XLA.
    cs = jnp.zeros((T, batch, B * A * C), jnp.float32)

    return {'cs': cs,
            'mus': packed[:, :, 0:Z],
            'logsigmas': packed[:, :, Z:2 * Z],
            'sigmas': packed[:, :, 2 * Z:3 * Z],
            'write_params': packed[:, :, 3 * Z:3 * Z + WRITE_OUT]}


# ------------------------------ parameter init ---------------------------------
def init_params(key, cfg):
    N, E, D, Z, C = (cfg['read_N'], cfg['enc_size'], cfg['dec_size'],
                     cfg['z_size'], cfg['channel'])
    enc_in = 2 * N * N * C + D

    def lin(k, fin, fout):
        k1, k2 = jax.random.split(k)
        s = 1.0 / (fin ** 0.5)
        w = jax.random.uniform(k1, (fin, fout), jnp.float32, -s, s)   # pre-transposed
        b = jax.random.uniform(k2, (1, fout), jnp.float32, -s, s)
        return w, b

    keys = jax.random.split(key, 9)
    p = {}
    p['enc_wih'], p['enc_bih'] = lin(keys[0], enc_in, 4 * E)
    p['enc_whh'], p['enc_bhh'] = lin(keys[1], E, 4 * E)
    p['dec_wih'], p['dec_bih'] = lin(keys[2], Z, 4 * D)
    p['dec_whh'], p['dec_bhh'] = lin(keys[3], D, 4 * D)
    p['mu_w'], p['mu_b'] = lin(keys[4], E, Z)
    p['sig_w'], p['sig_b'] = lin(keys[5], E, Z)
    p['write_w'], p['write_b'] = lin(keys[6], D, WRITE_OUT)
    p['emb_w'], p['emb_b'] = lin(keys[7], D, D)
    p['attn_w'], p['attn_b'] = lin(keys[8], D, 5)
    return p


# ----------------------------------- main ---------------------------------------
if __name__ == "__main__":
    key = jax.random.PRNGKey(0)
    kp, kx, ke = jax.random.split(key, 3)

    batch = 2
    params = init_params(kp, CFG)
    x = jax.random.uniform(kx, (batch, CFG['channel'] * CFG['B'] * CFG['A']),
                           jnp.float32)
    eps = jax.random.normal(ke, (CFG['T'], batch, CFG['z_size']), jnp.float32)

    forward = jax.jit(lambda x_, e_, p_: draw_forward(x_, e_, p_, CFG))
    out = forward(x, eps, params)
    jax.block_until_ready(out)

    assert out['mus'].shape == (CFG['T'], batch, CFG['z_size'])
    assert out['logsigmas'].shape == (CFG['T'], batch, CFG['z_size'])
    assert out['sigmas'].shape == (CFG['T'], batch, CFG['z_size'])
    assert out['cs'].shape == (CFG['T'], batch,
                               CFG['channel'] * CFG['B'] * CFG['A'])
    assert out['write_params'].shape == (CFG['T'], batch, WRITE_OUT)
    assert bool(jnp.all(jnp.isfinite(out['mus'])))
    assert bool(jnp.all(jnp.isfinite(out['sigmas'])))
    print("KERNEL_OK")
</pallas_src>

<mosaic_0001>
module attributes {stable_mosaic.version = 11 : i64} {
  func.func @_draw_kernel(%arg0: memref<2x16x16xf32, #tpu.memory_space<vmem>>, %arg1: memref<3x2x8xf32, #tpu.memory_space<vmem>>, %arg2: memref<1x5xf32, #tpu.memory_space<vmem>>, %arg3: memref<16x128xf32, #tpu.memory_space<vmem>>, %arg4: memref<32x128xf32, #tpu.memory_space<vmem>>, %arg5: memref<32x128xf32, #tpu.memory_space<vmem>>, %arg6: memref<1x128xf32, #tpu.memory_space<vmem>>, %arg7: memref<32x16xf32, #tpu.memory_space<vmem>>, %arg8: memref<1x16xf32, #tpu.memory_space<vmem>>, %arg9: memref<8x128xf32, #tpu.memory_space<vmem>>, %arg10: memref<32x128xf32, #tpu.memory_space<vmem>>, %arg11: memref<1x128xf32, #tpu.memory_space<vmem>>, %arg12: memref<32x47xf32, #tpu.memory_space<vmem>>, %arg13: memref<1x47xf32, #tpu.memory_space<vmem>>, %arg14: memref<3x2x128xf32, #tpu.memory_space<vmem>>) attributes {dimension_semantics = [], scalar_prefetch = 0 : i64, scratch_operands = 0 : i64, tpu.core_type = #tpu.core_type<tc>} {
    %cst = arith.constant 0.000000e+00 : f32
    %0 = vector.broadcast %cst : f32 to vector<2x32xf32>
    %cst_0 = arith.constant 0.000000e+00 : f32
    %1 = vector.broadcast %cst_0 : f32 to vector<2x32xf32>
    %cst_1 = arith.constant 0.000000e+00 : f32
    %2 = vector.broadcast %cst_1 : f32 to vector<2x32xf32>
    %cst_2 = arith.constant 0.000000e+00 : f32
    %3 = vector.broadcast %cst_2 : f32 to vector<2x32xf32>
    %4 = tpu.iota {dimensions = array<i32: 1>} : vector<1x4x1xi32>
    %5 = arith.sitofp %4 : vector<1x4x1xi32> to vector<1x4x1xf32>
    %6 = tpu.iota {dimensions = array<i32: 2>} : vector<1x1x16xi32>
    %7 = arith.sitofp %6 : vector<1x1x16xi32> to vector<1x1x16xf32>
    %8 = tpu.iota {dimensions = array<i32: 2>} : vector<1x1x16xi32>
    %9 = arith.sitofp %8 : vector<1x1x16xi32> to vector<1x1x16xf32>
    %c0 = arith.constant 0 : index
    %c0_3 = arith.constant 0 : index
    %c0_4 = arith.constant 0 : index
    %10 = vector.load %arg0[%c0, %c0_3, %c0_4] : memref<2x16x16xf32, #tpu.memory_space<vmem>>, vector<2x16x16xf32>
    %cst_5 = arith.constant 0.000000e+00 : f32
    %11 = vector.broadcast %cst_5 : f32 to vector<2x94xf32>
    %c0_6 = arith.constant 0 : index
    %c0_7 = arith.constant 0 : index
    %12 = vector.load %arg2[%c0_6, %c0_7] : memref<1x5xf32, #tpu.memory_space<vmem>>, vector<1x5xf32>
    %13 = vector.shape_cast %12 : vector<1x5xf32> to vector<1x5xf32>
    %14 = vector.broadcast %13 : vector<1x5xf32> to vector<2x5xf32>
    %15 = vector.extract_strided_slice %14 {offsets = [0, 0], sizes = [2, 1], strides = [1, 1]} : vector<2x5xf32> to vector<2x1xf32>
    %cst_8 = arith.constant 1.000000e+00 : f32
    %16 = vector.broadcast %cst_8 : f32 to vector<2x1xf32>
    %17 = arith.addf %15, %16 : vector<2x1xf32>
    %cst_9 = arith.constant 8.500000e+00 : f32
    %18 = vector.broadcast %cst_9 : f32 to vector<2x1xf32>
    %19 = arith.mulf %18, %17 : vector<2x1xf32>
    %20 = vector.extract_strided_slice %14 {offsets = [0, 1], sizes = [2, 1], strides = [1, 1]} : vector<2x5xf32> to vector<2x1xf32>
    %cst_10 = arith.constant 1.000000e+00 : f32
    %21 = vector.broadcast %cst_10 : f32 to vector<2x1xf32>
    %22 = arith.addf %20, %21 : vector<2x1xf32>
    %cst_11 = arith.constant 8.500000e+00 : f32
    %23 = vector.broadcast %cst_11 : f32 to vector<2x1xf32>
    %24 = arith.mulf %23, %22 : vector<2x1xf32>
    %25 = vector.extract_strided_slice %14 {offsets = [0, 2], sizes = [2, 3], strides = [1, 1]} : vector<2x5xf32> to vector<2x3xf32>
    %26 = math.exp %25 : vector<2x3xf32>
    %27 = vector.extract_strided_slice %26 {offsets = [0, 0], sizes = [2, 1], strides = [1, 1]} : vector<2x3xf32> to vector<2x1xf32>
    %28 = vector.extract_strided_slice %26 {offsets = [0, 1], sizes = [2, 1], strides = [1, 1]} : vector<2x3xf32> to vector<2x1xf32>
    %cst_12 = arith.constant 5.000000e+00 : f32
    %29 = vector.broadcast %cst_12 : f32 to vector<2x1xf32>
    %30 = arith.mulf %29, %28 : vector<2x1xf32>
    %31 = vector.extract_strided_slice %26 {offsets = [0, 2], sizes = [2, 1], strides = [1, 1]} : vector<2x3xf32> to vector<2x1xf32>
    %32 = vector.shape_cast %19 : vector<2x1xf32> to vector<2x1x1xf32>
    %33 = vector.shape_cast %24 : vector<2x1xf32> to vector<2x1x1xf32>
    %34 = vector.shape_cast %30 : vector<2x1xf32> to vector<2x1x1xf32>
    %35 = vector.shape_cast %27 : vector<2x1xf32> to vector<2x1x1xf32>
    %cst_13 = arith.constant 2.500000e+00 : f32
    %36 = vector.broadcast %cst_13 : f32 to vector<1x4x1xf32>
    %37 = arith.subf %5, %36 : vector<1x4x1xf32>
    %38 = vector.broadcast %37 : vector<1x4x1xf32> to vector<2x4x1xf32>
    %39 = vector.broadcast %34 : vector<2x1x1xf32> to vector<2x4x1xf32>
    %40 = arith.mulf %38, %39 : vector<2x4x1xf32>
    %41 = vector.broadcast %32 : vector<2x1x1xf32> to vector<2x4x1xf32>
    %42 = arith.addf %41, %40 : vector<2x4x1xf32>
    %cst_14 = arith.constant 2.500000e+00 : f32
    %43 = vector.broadcast %cst_14 : f32 to vector<1x4x1xf32>
    %44 = arith.subf %5, %43 : vector<1x4x1xf32>
    %45 = vector.broadcast %44 : vector<1x4x1xf32> to vector<2x4x1xf32>
    %46 = vector.broadcast %34 : vector<2x1x1xf32> to vector<2x4x1xf32>
    %47 = arith.mulf %45, %46 : vector<2x4x1xf32>
    %48 = vector.broadcast %33 : vector<2x1x1xf32> to vector<2x4x1xf32>
    %49 = arith.addf %48, %47 : vector<2x4x1xf32>
    %50 = vector.broadcast %7 : vector<1x1x16xf32> to vector<2x4x16xf32>
    %51 = vector.broadcast %42 : vector<2x4x1xf32> to vector<2x4x16xf32>
    %52 = arith.subf %50, %51 : vector<2x4x16xf32>
    %53 = arith.mulf %52, %52 : vector<2x4x16xf32>
    %cst_15 = arith.constant 0.000000e+00 : f32
    %54 = vector.broadcast %cst_15 : f32 to vector<2x4x16xf32>
    %55 = arith.subf %54, %53 : vector<2x4x16xf32>
    %cst_16 = arith.constant 2.000000e+00 : f32
    %56 = vector.broadcast %cst_16 : f32 to vector<2x1x1xf32>
    %57 = arith.mulf %56, %35 : vector<2x1x1xf32>
    %58 = vector.broadcast %57 : vector<2x1x1xf32> to vector<2x4x16xf32>
    %59 = arith.divf %55, %58 : vector<2x4x16xf32>
    %60 = math.exp %59 : vector<2x4x16xf32>
    %61 = vector.broadcast %9 : vector<1x1x16xf32> to vector<2x4x16xf32>
    %62 = vector.broadcast %49 : vector<2x4x1xf32> to vector<2x4x16xf32>
    %63 = arith.subf %61, %62 : vector<2x4x16xf32>
    %64 = arith.mulf %63, %63 : vector<2x4x16xf32>
    %cst_17 = arith.constant 0.000000e+00 : f32
    %65 = vector.broadcast %cst_17 : f32 to vector<2x4x16xf32>
    %66 = arith.subf %65, %64 : vector<2x4x16xf32>
    %cst_18 = arith.constant 2.000000e+00 : f32
    %67 = vector.broadcast %cst_18 : f32 to vector<2x1x1xf32>
    %68 = arith.mulf %67, %35 : vector<2x1x1xf32>
    %69 = vector.broadcast %68 : vector<2x1x1xf32> to vector<2x4x16xf32>
    %70 = arith.divf %66, %69 : vector<2x4x16xf32>
    %71 = math.exp %70 : vector<2x4x16xf32>
    %cst_19 = arith.constant dense<0.000000e+00> : vector<2x4xf32>
    %72 = vector.multi_reduction <add>, %60, %cst_19 [2] : vector<2x4x16xf32> to vector<2x4xf32>
    %73 = vector.shape_cast %72 : vector<2x4xf32> to vector<2x4x1xf32>
    %cst_20 = arith.constant 9.99999993E-9 : f32
    %74 = vector.broadcast %cst_20 : f32 to vector<2x4x1xf32>
    %75 = arith.addf %73, %74 : vector<2x4x1xf32>
    %76 = vector.broadcast %75 : vector<2x4x1xf32> to vector<2x4x16xf32>
    %77 = arith.divf %60, %76 : vector<2x4x16xf32>
    %cst_21 = arith.constant dense<0.000000e+00> : vector<2x4xf32>
    %78 = vector.multi_reduction <add>, %71, %cst_21 [2] : vector<2x4x16xf32> to vector<2x4xf32>
    %79 = vector.shape_cast %78 : vector<2x4xf32> to vector<2x4x1xf32>
    %cst_22 = arith.constant 9.99999993E-9 : f32
    %80 = vector.broadcast %cst_22 : f32 to vector<2x4x1xf32>
    %81 = arith.addf %79, %80 : vector<2x4x1xf32>
    %82 = vector.broadcast %81 : vector<2x4x1xf32> to vector<2x4x16xf32>
    %83 = arith.divf %71, %82 : vector<2x4x16xf32>
    "tpu.trace_start"() <{level = 10 : i32, message = "bka,bna->bkn"}> : () -> ()
    %cst_23 = arith.constant dense<0.000000e+00> : vector<2x16x4xf32>
    %84 = tpu.matmul %10, %77, %cst_23 {dimension_numbers = #tpu.dot_dimension_numbers<[2], [2], [1], [1], [0, 0, 0, 1, 1, 1], [0], [0]>} : vector<2x16x16xf32>, vector<2x4x16xf32>, vector<2x16x4xf32> -> vector<2x16x4xf32>
    "tpu.trace_stop"() : () -> ()
    "tpu.trace_start"() <{level = 10 : i32, message = "bik,bkj->bij"}> : () -> ()
    %cst_24 = arith.constant dense<0.000000e+00> : vector<2x4x4xf32>
    %85 = tpu.matmul %83, %84, %cst_24 {dimension_numbers = #tpu.dot_dimension_numbers<[2], [1], [1], [2], [0, 0, 0, 1, 1, 2], [0], [0]>} : vector<2x4x16xf32>, vector<2x16x4xf32>, vector<2x4x4xf32> -> vector<2x4x4xf32>
    "tpu.trace_stop"() : () -> ()
    %86 = vector.extract_strided_slice %85 {offsets = [0, 0, 0], sizes = [2, 1, 4], strides = [1, 1, 1]} : vector<2x4x4xf32> to vector<2x1x4xf32>
    %87 = vector.shape_cast %86 : vector<2x1x4xf32> to vector<2x4xf32>
    %88 = vector.extract_strided_slice %85 {offsets = [0, 1, 0], sizes = [2, 1, 4], strides = [1, 1, 1]} : vector<2x4x4xf32> to vector<2x1x4xf32>
    %89 = vector.shape_cast %88 : vector<2x1x4xf32> to vector<2x4xf32>
    %90 = vector.extract_strided_slice %85 {offsets = [0, 2, 0], sizes = [2, 1, 4], strides = [1, 1, 1]} : vector<2x4x4xf32> to vector<2x1x4xf32>
    %91 = vector.shape_cast %90 : vector<2x1x4xf32> to vector<2x4xf32>
    %92 = vector.extract_strided_slice %85 {offsets = [0, 3, 0], sizes = [2, 1, 4], strides = [1, 1, 1]} : vector<2x4x4xf32> to vector<2x1x4xf32>
    %93 = vector.shape_cast %92 : vector<2x1x4xf32> to vector<2x4xf32>
    %94 = tpu.concatenate %87, %89, %91, %93 in 1 : vector<2x4xf32>, vector<2x4xf32>, vector<2x4xf32>, vector<2x4xf32> -> vector<2x16xf32>
    %95 = vector.broadcast %31 : vector<2x1xf32> to vector<2x16xf32>
    %96 = arith.mulf %94, %95 : vector<2x16xf32>
    %c0_25 = arith.constant 0 : index
    %c0_26 = arith.constant 0 : index
    %97 = vector.load %arg3[%c0_25, %c0_26] : memref<16x128xf32, #tpu.memory_space<vmem>>, vector<16x128xf32>
    %cst_27 = arith.constant dense<0.000000e+00> : vector<2x128xf32>
    %98 = tpu.matmul %96, %97, %cst_27 {dimension_numbers = #tpu.dot_dimension_numbers<[1], [0], [0], [1], [0, 0, 1, 1], [], []>} : vector<2x16xf32>, vector<16x128xf32>, vector<2x128xf32> -> vector<2x128xf32>
    %c0_28 = arith.constant 0 : index
    %c0_29 = arith.constant 0 : index
    %99 = vector.load %arg4[%c0_28, %c0_29] : memref<32x128xf32, #tpu.memory_space<vmem>>, vector<32x128xf32>
    %cst_30 = arith.constant dense<0.000000e+00> : vector<2x128xf32>
    %100 = tpu.matmul %2, %99, %cst_30 {dimension_numbers = #tpu.dot_dimension_numbers<[1], [0], [0], [1], [0, 0, 1, 1], [], []>} : vector<2x32xf32>, vector<32x128xf32>, vector<2x128xf32> -> vector<2x128xf32>
    %101 = arith.addf %98, %100 : vector<2x128xf32>
    %c0_31 = arith.constant 0 : index
    %c0_32 = arith.constant 0 : index
    %102 = vector.load %arg5[%c0_31, %c0_32] : memref<32x128xf32, #tpu.memory_space<vmem>>, vector<32x128xf32>
    %cst_33 = arith.constant dense<0.000000e+00> : vector<2x128xf32>
    %103 = tpu.matmul %0, %102, %cst_33 {dimension_numbers = #tpu.dot_dimension_numbers<[1], [0], [0], [1], [0, 0, 1, 1], [], []>} : vector<2x32xf32>, vector<32x128xf32>, vector<2x128xf32> -> vector<2x128xf32>
    %104 = arith.addf %101, %103 : vector<2x128xf32>
    %c0_34 = arith.constant 0 : index
    %c0_35 = arith.constant 0 : index
    %105 = vector.load %arg6[%c0_34, %c0_35] : memref<1x128xf32, #tpu.memory_space<vmem>>, vector<1x128xf32>
    %106 = vector.broadcast %105 : vector<1x128xf32> to vector<2x128xf32>
    %107 = arith.addf %104, %106 : vector<2x128xf32>
    %108 = arith.negf %107 : vector<2x128xf32>
    %109 = math.exp %108 : vector<2x128xf32>
    %cst_36 = arith.constant 1.000000e+00 : f32
    %110 = vector.broadcast %cst_36 : f32 to vector<2x128xf32>
    %111 = arith.addf %110, %109 : vector<2x128xf32>
    %112 = arith.divf %110, %111 : vector<2x128xf32>
    %113 = vector.extract_strided_slice %112 {offsets = [0, 32], sizes = [2, 32], strides = [1, 1]} : vector<2x128xf32> to vector<2x32xf32>
    %114 = arith.mulf %113, %1 : vector<2x32xf32>
    %115 = vector.extract_strided_slice %112 {offsets = [0, 0], sizes = [2, 32], strides = [1, 1]} : vector<2x128xf32> to vector<2x32xf32>
    %116 = vector.extract_strided_slice %107 {offsets = [0, 64], sizes = [2, 32], strides = [1, 1]} : vector<2x128xf32> to vector<2x32xf32>
    %117 = math.tanh %116 : vector<2x32xf32>
    %118 = arith.mulf %115, %117 : vector<2x32xf32>
    %119 = arith.addf %114, %118 : vector<2x32xf32>
    %120 = vector.extract_strided_slice %112 {offsets = [0, 96], sizes = [2, 32], strides = [1, 1]} : vector<2x128xf32> to vector<2x32xf32>
    %121 = math.tanh %119 : vector<2x32xf32>
    %122 = arith.mulf %120, %121 : vector<2x32xf32>
    %c0_37 = arith.constant 0 : index
    %c0_38 = arith.constant 0 : index
    %123 = vector.load %arg7[%c0_37, %c0_38] : memref<32x16xf32, #tpu.memory_space<vmem>>, vector<32x16xf32>
    %cst_39 = arith.constant dense<0.000000e+00> : vector<2x16xf32>
    %124 = tpu.matmul %122, %123, %cst_39 {dimension_numbers = #tpu.dot_dimension_numbers<[1], [0], [0], [1], [0, 0, 1, 1], [], []>} : vector<2x32xf32>, vector<32x16xf32>, vector<2x16xf32> -> vector<2x16xf32>
    %c0_40 = arith.constant 0 : index
    %c0_41 = arith.constant 0 : index
    %125 = vector.load %arg8[%c0_40, %c0_41] : memref<1x16xf32, #tpu.memory_space<vmem>>, vector<1x16xf32>
    %126 = vector.broadcast %125 : vector<1x16xf32> to vector<2x16xf32>
    %127 = arith.addf %124, %126 : vector<2x16xf32>
    %128 = vector.extract_strided_slice %127 {offsets = [0, 0], sizes = [2, 8], strides = [1, 1]} : vector<2x16xf32> to vector<2x8xf32>
    %129 = vector.extract_strided_slice %127 {offsets = [0, 8], sizes = [2, 8], strides = [1, 1]} : vector<2x16xf32> to vector<2x8xf32>
    %130 = math.exp %129 : vector<2x8xf32>
    %c0_42 = arith.constant 0 : index
    %c0_43 = arith.constant 0 : index
    %c0_44 = arith.constant 0 : index
    %131 = vector.load %arg1[%c0_42, %c0_43, %c0_44] : memref<3x2x8xf32, #tpu.memory_space<vmem>>, vector<1x2x8xf32>
    %132 = vector.shape_cast %131 : vector<1x2x8xf32> to vector<2x8xf32>
    %133 = arith.mulf %132, %130 : vector<2x8xf32>
    %134 = arith.addf %128, %133 : vector<2x8xf32>
    %c0_45 = arith.constant 0 : index
    %c0_46 = arith.constant 0 : index
    %135 = vector.load %arg9[%c0_45, %c0_46] : memref<8x128xf32, #tpu.memory_space<vmem>>, vector<8x128xf32>
    %cst_47 = arith.constant dense<0.000000e+00> : vector<2x128xf32>
    %136 = tpu.matmul %134, %135, %cst_47 {dimension_numbers = #tpu.dot_dimension_numbers<[1], [0], [0], [1], [0, 0, 1, 1], [], []>} : vector<2x8xf32>, vector<8x128xf32>, vector<2x128xf32> -> vector<2x128xf32>
    %c0_48 = arith.constant 0 : index
    %c0_49 = arith.constant 0 : index
    %137 = vector.load %arg10[%c0_48, %c0_49] : memref<32x128xf32, #tpu.memory_space<vmem>>, vector<32x128xf32>
    %cst_50 = arith.constant dense<0.000000e+00> : vector<2x128xf32>
    %138 = tpu.matmul %2, %137, %cst_50 {dimension_numbers = #tpu.dot_dimension_numbers<[1], [0], [0], [1], [0, 0, 1, 1], [], []>} : vector<2x32xf32>, vector<32x128xf32>, vector<2x128xf32> -> vector<2x128xf32>
    %139 = arith.addf %136, %138 : vector<2x128xf32>
    %c0_51 = arith.constant 0 : index
    %c0_52 = arith.constant 0 : index
    %140 = vector.load %arg11[%c0_51, %c0_52] : memref<1x128xf32, #tpu.memory_space<vmem>>, vector<1x128xf32>
    %141 = vector.broadcast %140 : vector<1x128xf32> to vector<2x128xf32>
    %142 = arith.addf %139, %141 : vector<2x128xf32>
    %143 = arith.negf %142 : vector<2x128xf32>
    %144 = math.exp %143 : vector<2x128xf32>
    %cst_53 = arith.constant 1.000000e+00 : f32
    %145 = vector.broadcast %cst_53 : f32 to vector<2x128xf32>
    %146 = arith.addf %145, %144 : vector<2x128xf32>
    %147 = arith.divf %145, %146 : vector<2x128xf32>
    %148 = vector.extract_strided_slice %147 {offsets = [0, 32], sizes = [2, 32], strides = [1, 1]} : vector<2x128xf32> to vector<2x32xf32>
    %149 = arith.mulf %148, %3 : vector<2x32xf32>
    %150 = vector.extract_strided_slice %147 {offsets = [0, 0], sizes = [2, 32], strides = [1, 1]} : vector<2x128xf32> to vector<2x32xf32>
    %151 = vector.extract_strided_slice %142 {offsets = [0, 64], sizes = [2, 32], strides = [1, 1]} : vector<2x128xf32> to vector<2x32xf32>
    %152 = math.tanh %151 : vector<2x32xf32>
    %153 = arith.mulf %150, %152 : vector<2x32xf32>
    %154 = arith.addf %149, %153 : vector<2x32xf32>
    %155 = vector.extract_strided_slice %147 {offsets = [0, 96], sizes = [2, 32], strides = [1, 1]} : vector<2x128xf32> to vector<2x32xf32>
    %156 = math.tanh %154 : vector<2x32xf32>
    %157 = arith.mulf %155, %156 : vector<2x32xf32>
    %c0_54 = arith.constant 0 : index
    %c0_55 = arith.constant 0 : index
    %158 = vector.load %arg12[%c0_54, %c0_55] : memref<32x47xf32, #tpu.memory_space<vmem>>, vector<32x47xf32>
    %cst_56 = arith.constant dense<0.000000e+00> : vector<2x47xf32>
    %159 = tpu.matmul %157, %158, %cst_56 {dimension_numbers = #tpu.dot_dimension_numbers<[1], [0], [0], [1], [0, 0, 1, 1], [], []>} : vector<2x32xf32>, vector<32x47xf32>, vector<2x47xf32> -> vector<2x47xf32>
    %c0_57 = arith.constant 0 : index
    %c0_58 = arith.constant 0 : index
    %160 = vector.load %arg13[%c0_57, %c0_58] : memref<1x47xf32, #tpu.memory_space<vmem>>, vector<1x47xf32>
    %161 = vector.broadcast %160 : vector<1x47xf32> to vector<2x47xf32>
    %162 = arith.addf %159, %161 : vector<2x47xf32>
    %163 = vector.extract_strided_slice %162 {offsets = [0, 0], sizes = [2, 10], strides = [1, 1]} : vector<2x47xf32> to vector<2x10xf32>
    %164 = vector.extract_strided_slice %162 {offsets = [0, 10], sizes = [2, 32], strides = [1, 1]} : vector<2x47xf32> to vector<2x32xf32>
    %165 = vector.extract_strided_slice %162 {offsets = [0, 42], sizes = [2, 5], strides = [1, 1]} : vector<2x47xf32> to vector<2x5xf32>
    %166 = tpu.concatenate %128, %129, %130, %163, %11 in 1 : vector<2x8xf32>, vector<2x8xf32>, vector<2x8xf32>, vector<2x10xf32>, vector<2x94xf32> -> vector<2x128xf32>
    %c0_59 = arith.constant 0 : index
    %c0_60 = arith.constant 0 : index
    %c0_61 = arith.constant 0 : index
    %167 = vector.load %arg14[%c0_59, %c0_60, %c0_61] : memref<3x2x128xf32, #tpu.memory_space<vmem>>, vector<1x2x128xf32>
    %168 = vector.shape_cast %167 : vector<1x2x128xf32> to vector<2x128xf32>
    %169 = vector.shape_cast %166 : vector<2x128xf32> to vector<1x2x128xf32>
    tpu.vector_store %arg14[%c0_59, %c0_60, %c0_61], %169 {strides = array<i32>} : memref<3x2x128xf32, #tpu.memory_space<vmem>>, vector<1x2x128xf32>,
    %170 = vector.extract_strided_slice %165 {offsets = [0, 0], sizes = [2, 1], strides = [1, 1]} : vector<2x5xf32> to vector<2x1xf32>
    %cst_62 = arith.constant 1.000000e+00 : f32
    %171 = vector.broadcast %cst_62 : f32 to vector<2x1xf32>
    %172 = arith.addf %170, %171 : vector<2x1xf32>
    %cst_63 = arith.constant 8.500000e+00 : f32
    %173 = vector.broadcast %cst_63 : f32 to vector<2x1xf32>
    %174 = arith.mulf %173, %172 : vector<2x1xf32>
    %175 = vector.extract_strided_slice %165 {offsets = [0, 1], sizes = [2, 1], strides = [1, 1]} : vector<2x5xf32> to vector<2x1xf32>
    %cst_64 = arith.constant 1.000000e+00 : f32
    %176 = vector.broadcast %cst_64 : f32 to vector<2x1xf32>
    %177 = arith.addf %175, %176 : vector<2x1xf32>
    %cst_65 = arith.constant 8.500000e+00 : f32
    %178 = vector.broadcast %cst_65 : f32 to vector<2x1xf32>
    %179 = arith.mulf %178, %177 : vector<2x1xf32>
    %180 = vector.extract_strided_slice %165 {offsets = [0, 2], sizes = [2, 3], strides = [1, 1]} : vector<2x5xf32> to vector<2x3xf32>
    %181 = math.exp %180 : vector<2x3xf32>
    %182 = vector.extract_strided_slice %181 {offsets = [0, 0], sizes = [2, 1], strides = [1, 1]} : vector<2x3xf32> to vector<2x1xf32>
    %183 = vector.extract_strided_slice %181 {offsets = [0, 1], sizes = [2, 1], strides = [1, 1]} : vector<2x3xf32> to vector<2x1xf32>
    %cst_66 = arith.constant 5.000000e+00 : f32
    %184 = vector.broadcast %cst_66 : f32 to vector<2x1xf32>
    %185 = arith.mulf %184, %183 : vector<2x1xf32>
    %186 = vector.extract_strided_slice %181 {offsets = [0, 2], sizes = [2, 1], strides = [1, 1]} : vector<2x3xf32> to vector<2x1xf32>
    %187 = vector.shape_cast %174 : vector<2x1xf32> to vector<2x1x1xf32>
    %188 = vector.shape_cast %179 : vector<2x1xf32> to vector<2x1x1xf32>
    %189 = vector.shape_cast %185 : vector<2x1xf32> to vector<2x1x1xf32>
    %190 = vector.shape_cast %182 : vector<2x1xf32> to vector<2x1x1xf32>
    %cst_67 = arith.constant 2.500000e+00 : f32
    %191 = vector.broadcast %cst_67 : f32 to vector<1x4x1xf32>
    %192 = arith.subf %5, %191 : vector<1x4x1xf32>
    %193 = vector.broadcast %192 : vector<1x4x1xf32> to vector<2x4x1xf32>
    %194 = vector.broadcast %189 : vector<2x1x1xf32> to vector<2x4x1xf32>
    %195 = arith.mulf %193, %194 : vector<2x4x1xf32>
    %196 = vector.broadcast %187 : vector<2x1x1xf32> to vector<2x4x1xf32>
    %197 = arith.addf %196, %195 : vector<2x4x1xf32>
    %cst_68 = arith.constant 2.500000e+00 : f32
    %198 = vector.broadcast %cst_68 : f32 to vector<1x4x1xf32>
    %199 = arith.subf %5, %198 : vector<1x4x1xf32>
    %200 = vector.broadcast %199 : vector<1x4x1xf32> to vector<2x4x1xf32>
    %201 = vector.broadcast %189 : vector<2x1x1xf32> to vector<2x4x1xf32>
    %202 = arith.mulf %200, %201 : vector<2x4x1xf32>
    %203 = vector.broadcast %188 : vector<2x1x1xf32> to vector<2x4x1xf32>
    %204 = arith.addf %203, %202 : vector<2x4x1xf32>
    %205 = vector.broadcast %7 : vector<1x1x16xf32> to vector<2x4x16xf32>
    %206 = vector.broadcast %197 : vector<2x4x1xf32> to vector<2x4x16xf32>
    %207 = arith.subf %205, %206 : vector<2x4x16xf32>
    %208 = arith.mulf %207, %207 : vector<2x4x16xf32>
    %cst_69 = arith.constant 0.000000e+00 : f32
    %209 = vector.broadcast %cst_69 : f32 to vector<2x4x16xf32>
    %210 = arith.subf %209, %208 : vector<2x4x16xf32>
    %cst_70 = arith.constant 2.000000e+00 : f32
    %211 = vector.broadcast %cst_70 : f32 to vector<2x1x1xf32>
    %212 = arith.mulf %211, %190 : vector<2x1x1xf32>
    %213 = vector.broadcast %212 : vector<2x1x1xf32> to vector<2x4x16xf32>
    %214 = arith.divf %210, %213 : vector<2x4x16xf32>
    %215 = math.exp %214 : vector<2x4x16xf32>
    %216 = vector.broadcast %9 : vector<1x1x16xf32> to vector<2x4x16xf32>
    %217 = vector.broadcast %204 : vector<2x4x1xf32> to vector<2x4x16xf32>
    %218 = arith.subf %216, %217 : vector<2x4x16xf32>
    %219 = arith.mulf %218, %218 : vector<2x4x16xf32>
    %cst_71 = arith.constant 0.000000e+00 : f32
    %220 = vector.broadcast %cst_71 : f32 to vector<2x4x16xf32>
    %221 = arith.subf %220, %219 : vector<2x4x16xf32>
    %cst_72 = arith.constant 2.000000e+00 : f32
    %222 = vector.broadcast %cst_72 : f32 to vector<2x1x1xf32>
    %223 = arith.mulf %222, %190 : vector<2x1x1xf32>
    %224 = vector.broadcast %223 : vector<2x1x1xf32> to vector<2x4x16xf32>
    %225 = arith.divf %221, %224 : vector<2x4x16xf32>
    %226 = math.exp %225 : vector<2x4x16xf32>
    %cst_73 = arith.constant dense<0.000000e+00> : vector<2x4xf32>
    %227 = vector.multi_reduction <add>, %215, %cst_73 [2] : vector<2x4x16xf32> to vector<2x4xf32>
    %228 = vector.shape_cast %227 : vector<2x4xf32> to vector<2x4x1xf32>
    %cst_74 = arith.constant 9.99999993E-9 : f32
    %229 = vector.broadcast %cst_74 : f32 to vector<2x4x1xf32>
    %230 = arith.addf %228, %229 : vector<2x4x1xf32>
    %231 = vector.broadcast %230 : vector<2x4x1xf32> to vector<2x4x16xf32>
    %232 = arith.divf %215, %231 : vector<2x4x16xf32>
    %cst_75 = arith.constant dense<0.000000e+00> : vector<2x4xf32>
    %233 = vector.multi_reduction <add>, %226, %cst_75 [2] : vector<2x4x16xf32> to vector<2x4xf32>
    %234 = vector.shape_cast %233 : vector<2x4xf32> to vector<2x4x1xf32>
    %cst_76 = arith.constant 9.99999993E-9 : f32
    %235 = vector.broadcast %cst_76 : f32 to vector<2x4x1xf32>
    %236 = arith.addf %234, %235 : vector<2x4x1xf32>
    %237 = vector.broadcast %236 : vector<2x4x1xf32> to vector<2x4x16xf32>
    %238 = arith.divf %226, %237 : vector<2x4x16xf32>
    "tpu.trace_start"() <{level = 10 : i32, message = "bka,bna->bkn"}> : () -> ()
    %cst_77 = arith.constant dense<0.000000e+00> : vector<2x16x4xf32>
    %239 = tpu.matmul %10, %232, %cst_77 {dimension_numbers = #tpu.dot_dimension_numbers<[2], [2], [1], [1], [0, 0, 0, 1, 1, 1], [0], [0]>} : vector<2x16x16xf32>, vector<2x4x16xf32>, vector<2x16x4xf32> -> vector<2x16x4xf32>
    "tpu.trace_stop"() : () -> ()
    "tpu.trace_start"() <{level = 10 : i32, message = "bik,bkj->bij"}> : () -> ()
    %cst_78 = arith.constant dense<0.000000e+00> : vector<2x4x4xf32>
    %240 = tpu.matmul %238, %239, %cst_78 {dimension_numbers = #tpu.dot_dimension_numbers<[2], [1], [1], [2], [0, 0, 0, 1, 1, 2], [0], [0]>} : vector<2x4x16xf32>, vector<2x16x4xf32>, vector<2x4x4xf32> -> vector<2x4x4xf32>
    "tpu.trace_stop"() : () -> ()
    %241 = vector.extract_strided_slice %240 {offsets = [0, 0, 0], sizes = [2, 1, 4], strides = [1, 1, 1]} : vector<2x4x4xf32> to vector<2x1x4xf32>
    %242 = vector.shape_cast %241 : vector<2x1x4xf32> to vector<2x4xf32>
    %243 = vector.extract_strided_slice %240 {offsets = [0, 1, 0], sizes = [2, 1, 4], strides = [1, 1, 1]} : vector<2x4x4xf32> to vector<2x1x4xf32>
    %244 = vector.shape_cast %243 : vector<2x1x4xf32> to vector<2x4xf32>
    %245 = vector.extract_strided_slice %240 {offsets = [0, 2, 0], sizes = [2, 1, 4], strides = [1, 1, 1]} : vector<2x4x4xf32> to vector<2x1x4xf32>
    %246 = vector.shape_cast %245 : vector<2x1x4xf32> to vector<2x4xf32>
    %247 = vector.extract_strided_slice %240 {offsets = [0, 3, 0], sizes = [2, 1, 4], strides = [1, 1, 1]} : vector<2x4x4xf32> to vector<2x1x4xf32>
    %248 = vector.shape_cast %247 : vector<2x1x4xf32> to vector<2x4xf32>
    %249 = tpu.concatenate %242, %244, %246, %248 in 1 : vector<2x4xf32>, vector<2x4xf32>, vector<2x4xf32>, vector<2x4xf32> -> vector<2x16xf32>
    %250 = vector.broadcast %186 : vector<2x1xf32> to vector<2x16xf32>
    %251 = arith.mulf %249, %250 : vector<2x16xf32>
    %c0_79 = arith.constant 0 : index
    %c0_80 = arith.constant 0 : index
    %252 = vector.load %arg3[%c0_79, %c0_80] : memref<16x128xf32, #tpu.memory_space<vmem>>, vector<16x128xf32>
    %cst_81 = arith.constant dense<0.000000e+00> : vector<2x128xf32>
    %253 = tpu.matmul %251, %252, %cst_81 {dimension_numbers = #tpu.dot_dimension_numbers<[1], [0], [0], [1], [0, 0, 1, 1], [], []>} : vector<2x16xf32>, vector<16x128xf32>, vector<2x128xf32> -> vector<2x128xf32>
    %c0_82 = arith.constant 0 : index
    %c0_83 = arith.constant 0 : index
    %254 = vector.load %arg4[%c0_82, %c0_83] : memref<32x128xf32, #tpu.memory_space<vmem>>, vector<32x128xf32>
    %cst_84 = arith.constant dense<0.000000e+00> : vector<2x128xf32>
    %255 = tpu.matmul %164, %254, %cst_84 {dimension_numbers = #tpu.dot_dimension_numbers<[1], [0], [0], [1], [0, 0, 1, 1], [], []>} : vector<2x32xf32>, vector<32x128xf32>, vector<2x128xf32> -> vector<2x128xf32>
    %256 = arith.addf %253, %255 : vector<2x128xf32>
    %c0_85 = arith.constant 0 : index
    %c0_86 = arith.constant 0 : index
    %257 = vector.load %arg5[%c0_85, %c0_86] : memref<32x128xf32, #tpu.memory_space<vmem>>, vector<32x128xf32>
    %cst_87 = arith.constant dense<0.000000e+00> : vector<2x128xf32>
    %258 = tpu.matmul %122, %257, %cst_87 {dimension_numbers = #tpu.dot_dimension_numbers<[1], [0], [0], [1], [0, 0, 1, 1], [], []>} : vector<2x32xf32>, vector<32x128xf32>, vector<2x128xf32> -> vector<2x128xf32>
    %259 = arith.addf %256, %258 : vector<2x128xf32>
    %c0_88 = arith.constant 0 : index
    %c0_89 = arith.constant 0 : index
    %260 = vector.load %arg6[%c0_88, %c0_89] : memref<1x128xf32, #tpu.memory_space<vmem>>, vector<1x128xf32>
    %261 = vector.broadcast %260 : vector<1x128xf32> to vector<2x128xf32>
    %262 = arith.addf %259, %261 : vector<2x128xf32>
    %263 = arith.negf %262 : vector<2x128xf32>
    %264 = math.exp %263 : vector<2x128xf32>
    %cst_90 = arith.constant 1.000000e+00 : f32
    %265 = vector.broadcast %cst_90 : f32 to vector<2x128xf32>
    %266 = arith.addf %265, %264 : vector<2x128xf32>
    %267 = arith.divf %265, %266 : vector<2x128xf32>
    %268 = vector.extract_strided_slice %267 {offsets = [0, 32], sizes = [2, 32], strides = [1, 1]} : vector<2x128xf32> to vector<2x32xf32>
    %269 = arith.mulf %268, %119 : vector<2x32xf32>
    %270 = vector.extract_strided_slice %267 {offsets = [0, 0], sizes = [2, 32], strides = [1, 1]} : vector<2x128xf32> to vector<2x32xf32>
    %271 = vector.extract_strided_slice %262 {offsets = [0, 64], sizes = [2, 32], strides = [1, 1]} : vector<2x128xf32> to vector<2x32xf32>
    %272 = math.tanh %271 : vector<2x32xf32>
    %273 = arith.mulf %270, %272 : vector<2x32xf32>
    %274 = arith.addf %269, %273 : vector<2x32xf32>
    %275 = vector.extract_strided_slice %267 {offsets = [0, 96], sizes = [2, 32], strides = [1, 1]} : vector<2x128xf32> to vector<2x32xf32>
    %276 = math.tanh %274 : vector<2x32xf32>
    %277 = arith.mulf %275, %276 : vector<2x32xf32>
    %c0_91 = arith.constant 0 : index
    %c0_92 = arith.constant 0 : index
    %278 = vector.load %arg7[%c0_91, %c0_92] : memref<32x16xf32, #tpu.memory_space<vmem>>, vector<32x16xf32>
    %cst_93 = arith.constant dense<0.000000e+00> : vector<2x16xf32>
    %279 = tpu.matmul %277, %278, %cst_93 {dimension_numbers = #tpu.dot_dimension_numbers<[1], [0], [0], [1], [0, 0, 1, 1], [], []>} : vector<2x32xf32>, vector<32x16xf32>, vector<2x16xf32> -> vector<2x16xf32>
    %c0_94 = arith.constant 0 : index
    %c0_95 = arith.constant 0 : index
    %280 = vector.load %arg8[%c0_94, %c0_95] : memref<1x16xf32, #tpu.memory_space<vmem>>, vector<1x16xf32>
    %281 = vector.broadcast %280 : vector<1x16xf32> to vector<2x16xf32>
    %282 = arith.addf %279, %281 : vector<2x16xf32>
    %283 = vector.extract_strided_slice %282 {offsets = [0, 0], sizes = [2, 8], strides = [1, 1]} : vector<2x16xf32> to vector<2x8xf32>
    %284 = vector.extract_strided_slice %282 {offsets = [0, 8], sizes = [2, 8], strides = [1, 1]} : vector<2x16xf32> to vector<2x8xf32>
    %285 = math.exp %284 : vector<2x8xf32>
    %c1 = arith.constant 1 : index
    %c0_96 = arith.constant 0 : index
    %c0_97 = arith.constant 0 : index
    %286 = vector.load %arg1[%c1, %c0_96, %c0_97] : memref<3x2x8xf32, #tpu.memory_space<vmem>>, vector<1x2x8xf32>
    %287 = vector.shape_cast %286 : vector<1x2x8xf32> to vector<2x8xf32>
    %288 = arith.mulf %287, %285 : vector<2x8xf32>
    %289 = arith.addf %283, %288 : vector<2x8xf32>
    %c0_98 = arith.constant 0 : index
    %c0_99 = arith.constant 0 : index
    %290 = vector.load %arg9[%c0_98, %c0_99] : memref<8x128xf32, #tpu.memory_space<vmem>>, vector<8x128xf32>
    %cst_100 = arith.constant dense<0.000000e+00> : vector<2x128xf32>
    %291 = tpu.matmul %289, %290, %cst_100 {dimension_numbers = #tpu.dot_dimension_numbers<[1], [0], [0], [1], [0, 0, 1, 1], [], []>} : vector<2x8xf32>, vector<8x128xf32>, vector<2x128xf32> -> vector<2x128xf32>
    %c0_101 = arith.constant 0 : index
    %c0_102 = arith.constant 0 : index
    %292 = vector.load %arg10[%c0_101, %c0_102] : memref<32x128xf32, #tpu.memory_space<vmem>>, vector<32x128xf32>
    %cst_103 = arith.constant dense<0.000000e+00> : vector<2x128xf32>
    %293 = tpu.matmul %164, %292, %cst_103 {dimension_numbers = #tpu.dot_dimension_numbers<[1], [0], [0], [1], [0, 0, 1, 1], [], []>} : vector<2x32xf32>, vector<32x128xf32>, vector<2x128xf32> -> vector<2x128xf32>
    %294 = arith.addf %291, %293 : vector<2x128xf32>
    %c0_104 = arith.constant 0 : index
    %c0_105 = arith.constant 0 : index
    %295 = vector.load %arg11[%c0_104, %c0_105] : memref<1x128xf32, #tpu.memory_space<vmem>>, vector<1x128xf32>
    %296 = vector.broadcast %295 : vector<1x128xf32> to vector<2x128xf32>
    %297 = arith.addf %294, %296 : vector<2x128xf32>
    %298 = arith.negf %297 : vector<2x128xf32>
    %299 = math.exp %298 : vector<2x128xf32>
    %cst_106 = arith.constant 1.000000e+00 : f32
    %300 = vector.broadcast %cst_106 : f32 to vector<2x128xf32>
    %301 = arith.addf %300, %299 : vector<2x128xf32>
    %302 = arith.divf %300, %301 : vector<2x128xf32>
    %303 = vector.extract_strided_slice %302 {offsets = [0, 32], sizes = [2, 32], strides = [1, 1]} : vector<2x128xf32> to vector<2x32xf32>
    %304 = arith.mulf %303, %154 : vector<2x32xf32>
    %305 = vector.extract_strided_slice %302 {offsets = [0, 0], sizes = [2, 32], strides = [1, 1]} : vector<2x128xf32> to vector<2x32xf32>
    %306 = vector.extract_strided_slice %297 {offsets = [0, 64], sizes = [2, 32], strides = [1, 1]} : vector<2x128xf32> to vector<2x32xf32>
    %307 = math.tanh %306 : vector<2x32xf32>
    %308 = arith.mulf %305, %307 : vector<2x32xf32>
    %309 = arith.addf %304, %308 : vector<2x32xf32>
    %310 = vector.extract_strided_slice %302 {offsets = [0, 96], sizes = [2, 32], strides = [1, 1]} : vector<2x128xf32> to vector<2x32xf32>
    %311 = math.tanh %309 : vector<2x32xf32>
    %312 = arith.mulf %310, %311 : vector<2x32xf32>
    %c0_107 = arith.constant 0 : index
    %c0_108 = arith.constant 0 : index
    %313 = vector.load %arg12[%c0_107, %c0_108] : memref<32x47xf32, #tpu.memory_space<vmem>>, vector<32x47xf32>
    %cst_109 = arith.constant dense<0.000000e+00> : vector<2x47xf32>
    %314 = tpu.matmul %312, %313, %cst_109 {dimension_numbers = #tpu.dot_dimension_numbers<[1], [0], [0], [1], [0, 0, 1, 1], [], []>} : vector<2x32xf32>, vector<32x47xf32>, vector<2x47xf32> -> vector<2x47xf32>
    %c0_110 = arith.constant 0 : index
    %c0_111 = arith.constant 0 : index
    %315 = vector.load %arg13[%c0_110, %c0_111] : memref<1x47xf32, #tpu.memory_space<vmem>>, vector<1x47xf32>
    %316 = vector.broadcast %315 : vector<1x47xf32> to vector<2x47xf32>
    %317 = arith.addf %314, %316 : vector<2x47xf32>
    %318 = vector.extract_strided_slice %317 {offsets = [0, 0], sizes = [2, 10], strides = [1, 1]} : vector<2x47xf32> to vector<2x10xf32>
    %319 = vector.extract_strided_slice %317 {offsets = [0, 10], sizes = [2, 32], strides = [1, 1]} : vector<2x47xf32> to vector<2x32xf32>
    %320 = vector.extract_strided_slice %317 {offsets = [0, 42], sizes = [2, 5], strides = [1, 1]} : vector<2x47xf32> to vector<2x5xf32>
    %321 = tpu.concatenate %283, %284, %285, %318, %11 in 1 : vector<2x8xf32>, vector<2x8xf32>, vector<2x8xf32>, vector<2x10xf32>, vector<2x94xf32> -> vector<2x128xf32>
    %c1_112 = arith.constant 1 : index
    %c0_113 = arith.constant 0 : index
    %c0_114 = arith.constant 0 : index
    %322 = vector.load %arg14[%c1_112, %c0_113, %c0_114] : memref<3x2x128xf32, #tpu.memory_space<vmem>>, vector<1x2x128xf32>
    %323 = vector.shape_cast %322 : vector<1x2x128xf32> to vector<2x128xf32>
    %324 = vector.shape_cast %321 : vector<2x128xf32> to vector<1x2x128xf32>
    tpu.vector_store %arg14[%c1_112, %c0_113, %c0_114], %324 {strides = array<i32>} : memref<3x2x128xf32, #tpu.memory_space<vmem>>, vector<1x2x128xf32>,
    %325 = vector.extract_strided_slice %320 {offsets = [0, 0], sizes = [2, 1], strides = [1, 1]} : vector<2x5xf32> to vector<2x1xf32>
    %cst_115 = arith.constant 1.000000e+00 : f32
    %326 = vector.broadcast %cst_115 : f32 to vector<2x1xf32>
    %327 = arith.addf %325, %326 : vector<2x1xf32>
    %cst_116 = arith.constant 8.500000e+00 : f32
    %328 = vector.broadcast %cst_116 : f32 to vector<2x1xf32>
    %329 = arith.mulf %328, %327 : vector<2x1xf32>
    %330 = vector.extract_strided_slice %320 {offsets = [0, 1], sizes = [2, 1], strides = [1, 1]} : vector<2x5xf32> to vector<2x1xf32>
    %cst_117 = arith.constant 1.000000e+00 : f32
    %331 = vector.broadcast %cst_117 : f32 to vector<2x1xf32>
    %332 = arith.addf %330, %331 : vector<2x1xf32>
    %cst_118 = arith.constant 8.500000e+00 : f32
    %333 = vector.broadcast %cst_118 : f32 to vector<2x1xf32>
    %334 = arith.mulf %333, %332 : vector<2x1xf32>
    %335 = vector.extract_strided_slice %320 {offsets = [0, 2], sizes = [2, 3], strides = [1, 1]} : vector<2x5xf32> to vector<2x3xf32>
    %336 = math.exp %335 : vector<2x3xf32>
    %337 = vector.extract_strided_slice %336 {offsets = [0, 0], sizes = [2, 1], strides = [1, 1]} : vector<2x3xf32> to vector<2x1xf32>
    %338 = vector.extract_strided_slice %336 {offsets = [0, 1], sizes = [2, 1], strides = [1, 1]} : vector<2x3xf32> to vector<2x1xf32>
    %cst_119 = arith.constant 5.000000e+00 : f32
    %339 = vector.broadcast %cst_119 : f32 to vector<2x1xf32>
    %340 = arith.mulf %339, %338 : vector<2x1xf32>
    %341 = vector.extract_strided_slice %336 {offsets = [0, 2], sizes = [2, 1], strides = [1, 1]} : vector<2x3xf32> to vector<2x1xf32>
    %342 = vector.shape_cast %329 : vector<2x1xf32> to vector<2x1x1xf32>
    %343 = vector.shape_cast %334 : vector<2x1xf32> to vector<2x1x1xf32>
    %344 = vector.shape_cast %340 : vector<2x1xf32> to vector<2x1x1xf32>
    %345 = vector.shape_cast %337 : vector<2x1xf32> to vector<2x1x1xf32>
    %cst_120 = arith.constant 2.500000e+00 : f32
    %346 = vector.broadcast %cst_120 : f32 to vector<1x4x1xf32>
    %347 = arith.subf %5, %346 : vector<1x4x1xf32>
    %348 = vector.broadcast %347 : vector<1x4x1xf32> to vector<2x4x1xf32>
    %349 = vector.broadcast %344 : vector<2x1x1xf32> to vector<2x4x1xf32>
    %350 = arith.mulf %348, %349 : vector<2x4x1xf32>
    %351 = vector.broadcast %342 : vector<2x1x1xf32> to vector<2x4x1xf32>
    %352 = arith.addf %351, %350 : vector<2x4x1xf32>
    %cst_121 = arith.constant 2.500000e+00 : f32
    %353 = vector.broadcast %cst_121 : f32 to vector<1x4x1xf32>
    %354 = arith.subf %5, %353 : vector<1x4x1xf32>
    %355 = vector.broadcast %354 : vector<1x4x1xf32> to vector<2x4x1xf32>
    %356 = vector.broadcast %344 : vector<2x1x1xf32> to vector<2x4x1xf32>
    %357 = arith.mulf %355, %356 : vector<2x4x1xf32>
    %358 = vector.broadcast %343 : vector<2x1x1xf32> to vector<2x4x1xf32>
    %359 = arith.addf %358, %357 : vector<2x4x1xf32>
    %360 = vector.broadcast %7 : vector<1x1x16xf32> to vector<2x4x16xf32>
    %361 = vector.broadcast %352 : vector<2x4x1xf32> to vector<2x4x16xf32>
    %362 = arith.subf %360, %361 : vector<2x4x16xf32>
    %363 = arith.mulf %362, %362 : vector<2x4x16xf32>
    %cst_122 = arith.constant 0.000000e+00 : f32
    %364 = vector.broadcast %cst_122 : f32 to vector<2x4x16xf32>
    %365 = arith.subf %364, %363 : vector<2x4x16xf32>
    %cst_123 = arith.constant 2.000000e+00 : f32
    %366 = vector.broadcast %cst_123 : f32 to vector<2x1x1xf32>
    %367 = arith.mulf %366, %345 : vector<2x1x1xf32>
    %368 = vector.broadcast %367 : vector<2x1x1xf32> to vector<2x4x16xf32>
    %369 = arith.divf %365, %368 : vector<2x4x16xf32>
    %370 = math.exp %369 : vector<2x4x16xf32>
    %371 = vector.broadcast %9 : vector<1x1x16xf32> to vector<2x4x16xf32>
    %372 = vector.broadcast %359 : vector<2x4x1xf32> to vector<2x4x16xf32>
    %373 = arith.subf %371, %372 : vector<2x4x16xf32>
    %374 = arith.mulf %373, %373 : vector<2x4x16xf32>
    %cst_124 = arith.constant 0.000000e+00 : f32
    %375 = vector.broadcast %cst_124 : f32 to vector<2x4x16xf32>
    %376 = arith.subf %375, %374 : vector<2x4x16xf32>
    %cst_125 = arith.constant 2.000000e+00 : f32
    %377 = vector.broadcast %cst_125 : f32 to vector<2x1x1xf32>
    %378 = arith.mulf %377, %345 : vector<2x1x1xf32>
    %379 = vector.broadcast %378 : vector<2x1x1xf32> to vector<2x4x16xf32>
    %380 = arith.divf %376, %379 : vector<2x4x16xf32>
    %381 = math.exp %380 : vector<2x4x16xf32>
    %cst_126 = arith.constant dense<0.000000e+00> : vector<2x4xf32>
    %382 = vector.multi_reduction <add>, %370, %cst_126 [2] : vector<2x4x16xf32> to vector<2x4xf32>
    %383 = vector.shape_cast %382 : vector<2x4xf32> to vector<2x4x1xf32>
    %cst_127 = arith.constant 9.99999993E-9 : f32
    %384 = vector.broadcast %cst_127 : f32 to vector<2x4x1xf32>
    %385 = arith.addf %383, %384 : vector<2x4x1xf32>
    %386 = vector.broadcast %385 : vector<2x4x1xf32> to vector<2x4x16xf32>
    %387 = arith.divf %370, %386 : vector<2x4x16xf32>
    %cst_128 = arith.constant dense<0.000000e+00> : vector<2x4xf32>
    %388 = vector.multi_reduction <add>, %381, %cst_128 [2] : vector<2x4x16xf32> to vector<2x4xf32>
    %389 = vector.shape_cast %388 : vector<2x4xf32> to vector<2x4x1xf32>
    %cst_129 = arith.constant 9.99999993E-9 : f32
    %390 = vector.broadcast %cst_129 : f32 to vector<2x4x1xf32>
    %391 = arith.addf %389, %390 : vector<2x4x1xf32>
    %392 = vector.broadcast %391 : vector<2x4x1xf32> to vector<2x4x16xf32>
    %393 = arith.divf %381, %392 : vector<2x4x16xf32>
    "tpu.trace_start"() <{level = 10 : i32, message = "bka,bna->bkn"}> : () -> ()
    %cst_130 = arith.constant dense<0.000000e+00> : vector<2x16x4xf32>
    %394 = tpu.matmul %10, %387, %cst_130 {dimension_numbers = #tpu.dot_dimension_numbers<[2], [2], [1], [1], [0, 0, 0, 1, 1, 1], [0], [0]>} : vector<2x16x16xf32>, vector<2x4x16xf32>, vector<2x16x4xf32> -> vector<2x16x4xf32>
    "tpu.trace_stop"() : () -> ()
    "tpu.trace_start"() <{level = 10 : i32, message = "bik,bkj->bij"}> : () -> ()
    %cst_131 = arith.constant dense<0.000000e+00> : vector<2x4x4xf32>
    %395 = tpu.matmul %393, %394, %cst_131 {dimension_numbers = #tpu.dot_dimension_numbers<[2], [1], [1], [2], [0, 0, 0, 1, 1, 2], [0], [0]>} : vector<2x4x16xf32>, vector<2x16x4xf32>, vector<2x4x4xf32> -> vector<2x4x4xf32>
    "tpu.trace_stop"() : () -> ()
    %396 = vector.extract_strided_slice %395 {offsets = [0, 0, 0], sizes = [2, 1, 4], strides = [1, 1, 1]} : vector<2x4x4xf32> to vector<2x1x4xf32>
    %397 = vector.shape_cast %396 : vector<2x1x4xf32> to vector<2x4xf32>
    %398 = vector.extract_strided_slice %395 {offsets = [0, 1, 0], sizes = [2, 1, 4], strides = [1, 1, 1]} : vector<2x4x4xf32> to vector<2x1x4xf32>
    %399 = vector.shape_cast %398 : vector<2x1x4xf32> to vector<2x4xf32>
    %400 = vector.extract_strided_slice %395 {offsets = [0, 2, 0], sizes = [2, 1, 4], strides = [1, 1, 1]} : vector<2x4x4xf32> to vector<2x1x4xf32>
    %401 = vector.shape_cast %400 : vector<2x1x4xf32> to vector<2x4xf32>
    %402 = vector.extract_strided_slice %395 {offsets = [0, 3, 0], sizes = [2, 1, 4], strides = [1, 1, 1]} : vector<2x4x4xf32> to vector<2x1x4xf32>
    %403 = vector.shape_cast %402 : vector<2x1x4xf32> to vector<2x4xf32>
    %404 = tpu.concatenate %397, %399, %401, %403 in 1 : vector<2x4xf32>, vector<2x4xf32>, vector<2x4xf32>, vector<2x4xf32> -> vector<2x16xf32>
    %405 = vector.broadcast %341 : vector<2x1xf32> to vector<2x16xf32>
    %406 = arith.mulf %404, %405 : vector<2x16xf32>
    %c0_132 = arith.constant 0 : index
    %c0_133 = arith.constant 0 : index
    %407 = vector.load %arg3[%c0_132, %c0_133] : memref<16x128xf32, #tpu.memory_space<vmem>>, vector<16x128xf32>
    %cst_134 = arith.constant dense<0.000000e+00> : vector<2x128xf32>
    %408 = tpu.matmul %406, %407, %cst_134 {dimension_numbers = #tpu.dot_dimension_numbers<[1], [0], [0], [1], [0, 0, 1, 1], [], []>} : vector<2x16xf32>, vector<16x128xf32>, vector<2x128xf32> -> vector<2x128xf32>
    %c0_135 = arith.constant 0 : index
    %c0_136 = arith.constant 0 : index
    %409 = vector.load %arg4[%c0_135, %c0_136] : memref<32x128xf32, #tpu.memory_space<vmem>>, vector<32x128xf32>
    %cst_137 = arith.constant dense<0.000000e+00> : vector<2x128xf32>
    %410 = tpu.matmul %319, %409, %cst_137 {dimension_numbers = #tpu.dot_dimension_numbers<[1], [0], [0], [1], [0, 0, 1, 1], [], []>} : vector<2x32xf32>, vector<32x128xf32>, vector<2x128xf32> -> vector<2x128xf32>
    %411 = arith.addf %408, %410 : vector<2x128xf32>
    %c0_138 = arith.constant 0 : index
    %c0_139 = arith.constant 0 : index
    %412 = vector.load %arg5[%c0_138, %c0_139] : memref<32x128xf32, #tpu.memory_space<vmem>>, vector<32x128xf32>
    %cst_140 = arith.constant dense<0.000000e+00> : vector<2x128xf32>
    %413 = tpu.matmul %277, %412, %cst_140 {dimension_numbers = #tpu.dot_dimension_numbers<[1], [0], [0], [1], [0, 0, 1, 1], [], []>} : vector<2x32xf32>, vector<32x128xf32>, vector<2x128xf32> -> vector<2x128xf32>
    %414 = arith.addf %411, %413 : vector<2x128xf32>
    %c0_141 = arith.constant 0 : index
    %c0_142 = arith.constant 0 : index
    %415 = vector.load %arg6[%c0_141, %c0_142] : memref<1x128xf32, #tpu.memory_space<vmem>>, vector<1x128xf32>
    %416 = vector.broadcast %415 : vector<1x128xf32> to vector<2x128xf32>
    %417 = arith.addf %414, %416 : vector<2x128xf32>
    %418 = arith.negf %417 : vector<2x128xf32>
    %419 = math.exp %418 : vector<2x128xf32>
    %cst_143 = arith.constant 1.000000e+00 : f32
    %420 = vector.broadcast %cst_143 : f32 to vector<2x128xf32>
    %421 = arith.addf %420, %419 : vector<2x128xf32>
    %422 = arith.divf %420, %421 : vector<2x128xf32>
    %423 = vector.extract_strided_slice %422 {offsets = [0, 32], sizes = [2, 32], strides = [1, 1]} : vector<2x128xf32> to vector<2x32xf32>
    %424 = arith.mulf %423, %274 : vector<2x32xf32>
    %425 = vector.extract_strided_slice %422 {offsets = [0, 0], sizes = [2, 32], strides = [1, 1]} : vector<2x128xf32> to vector<2x32xf32>
    %426 = vector.extract_strided_slice %417 {offsets = [0, 64], sizes = [2, 32], strides = [1, 1]} : vector<2x128xf32> to vector<2x32xf32>
    %427 = math.tanh %426 : vector<2x32xf32>
    %428 = arith.mulf %425, %427 : vector<2x32xf32>
    %429 = arith.addf %424, %428 : vector<2x32xf32>
    %430 = vector.extract_strided_slice %422 {offsets = [0, 96], sizes = [2, 32], strides = [1, 1]} : vector<2x128xf32> to vector<2x32xf32>
    %431 = math.tanh %429 : vector<2x32xf32>
    %432 = arith.mulf %430, %431 : vector<2x32xf32>
    %c0_144 = arith.constant 0 : index
    %c0_145 = arith.constant 0 : index
    %433 = vector.load %arg7[%c0_144, %c0_145] : memref<32x16xf32, #tpu.memory_space<vmem>>, vector<32x16xf32>
    %cst_146 = arith.constant dense<0.000000e+00> : vector<2x16xf32>
    %434 = tpu.matmul %432, %433, %cst_146 {dimension_numbers = #tpu.dot_dimension_numbers<[1], [0], [0], [1], [0, 0, 1, 1], [], []>} : vector<2x32xf32>, vector<32x16xf32>, vector<2x16xf32> -> vector<2x16xf32>
    %c0_147 = arith.constant 0 : index
    %c0_148 = arith.constant 0 : index
    %435 = vector.load %arg8[%c0_147, %c0_148] : memref<1x16xf32, #tpu.memory_space<vmem>>, vector<1x16xf32>
    %436 = vector.broadcast %435 : vector<1x16xf32> to vector<2x16xf32>
    %437 = arith.addf %434, %436 : vector<2x16xf32>
    %438 = vector.extract_strided_slice %437 {offsets = [0, 0], sizes = [2, 8], strides = [1, 1]} : vector<2x16xf32> to vector<2x8xf32>
    %439 = vector.extract_strided_slice %437 {offsets = [0, 8], sizes = [2, 8], strides = [1, 1]} : vector<2x16xf32> to vector<2x8xf32>
    %440 = math.exp %439 : vector<2x8xf32>
    %c2 = arith.constant 2 : index
    %c0_149 = arith.constant 0 : index
    %c0_150 = arith.constant 0 : index
    %441 = vector.load %arg1[%c2, %c0_149, %c0_150] : memref<3x2x8xf32, #tpu.memory_space<vmem>>, vector<1x2x8xf32>
    %442 = vector.shape_cast %441 : vector<1x2x8xf32> to vector<2x8xf32>
    %443 = arith.mulf %442, %440 : vector<2x8xf32>
    %444 = arith.addf %438, %443 : vector<2x8xf32>
    %c0_151 = arith.constant 0 : index
    %c0_152 = arith.constant 0 : index
    %445 = vector.load %arg9[%c0_151, %c0_152] : memref<8x128xf32, #tpu.memory_space<vmem>>, vector<8x128xf32>
    %cst_153 = arith.constant dense<0.000000e+00> : vector<2x128xf32>
    %446 = tpu.matmul %444, %445, %cst_153 {dimension_numbers = #tpu.dot_dimension_numbers<[1], [0], [0], [1], [0, 0, 1, 1], [], []>} : vector<2x8xf32>, vector<8x128xf32>, vector<2x128xf32> -> vector<2x128xf32>
    %c0_154 = arith.constant 0 : index
    %c0_155 = arith.constant 0 : index
    %447 = vector.load %arg10[%c0_154, %c0_155] : memref<32x128xf32, #tpu.memory_space<vmem>>, vector<32x128xf32>
    %cst_156 = arith.constant dense<0.000000e+00> : vector<2x128xf32>
    %448 = tpu.matmul %319, %447, %cst_156 {dimension_numbers = #tpu.dot_dimension_numbers<[1], [0], [0], [1], [0, 0, 1, 1], [], []>} : vector<2x32xf32>, vector<32x128xf32>, vector<2x128xf32> -> vector<2x128xf32>
    %449 = arith.addf %446, %448 : vector<2x128xf32>
    %c0_157 = arith.constant 0 : index
    %c0_158 = arith.constant 0 : index
    %450 = vector.load %arg11[%c0_157, %c0_158] : memref<1x128xf32, #tpu.memory_space<vmem>>, vector<1x128xf32>
    %451 = vector.broadcast %450 : vector<1x128xf32> to vector<2x128xf32>
    %452 = arith.addf %449, %451 : vector<2x128xf32>
    %453 = arith.negf %452 : vector<2x128xf32>
    %454 = math.exp %453 : vector<2x128xf32>
    %cst_159 = arith.constant 1.000000e+00 : f32
    %455 = vector.broadcast %cst_159 : f32 to vector<2x128xf32>
    %456 = arith.addf %455, %454 : vector<2x128xf32>
    %457 = arith.divf %455, %456 : vector<2x128xf32>
    %458 = vector.extract_strided_slice %457 {offsets = [0, 32], sizes = [2, 32], strides = [1, 1]} : vector<2x128xf32> to vector<2x32xf32>
    %459 = arith.mulf %458, %309 : vector<2x32xf32>
    %460 = vector.extract_strided_slice %457 {offsets = [0, 0], sizes = [2, 32], strides = [1, 1]} : vector<2x128xf32> to vector<2x32xf32>
    %461 = vector.extract_strided_slice %452 {offsets = [0, 64], sizes = [2, 32], strides = [1, 1]} : vector<2x128xf32> to vector<2x32xf32>
    %462 = math.tanh %461 : vector<2x32xf32>
    %463 = arith.mulf %460, %462 : vector<2x32xf32>
    %464 = arith.addf %459, %463 : vector<2x32xf32>
    %465 = vector.extract_strided_slice %457 {offsets = [0, 96], sizes = [2, 32], strides = [1, 1]} : vector<2x128xf32> to vector<2x32xf32>
    %466 = math.tanh %464 : vector<2x32xf32>
    %467 = arith.mulf %465, %466 : vector<2x32xf32>
    %c0_160 = arith.constant 0 : index
    %c0_161 = arith.constant 0 : index
    %468 = vector.load %arg12[%c0_160, %c0_161] : memref<32x47xf32, #tpu.memory_space<vmem>>, vector<32x47xf32>
    %cst_162 = arith.constant dense<0.000000e+00> : vector<2x47xf32>
    %469 = tpu.matmul %467, %468, %cst_162 {dimension_numbers = #tpu.dot_dimension_numbers<[1], [0], [0], [1], [0, 0, 1, 1], [], []>} : vector<2x32xf32>, vector<32x47xf32>, vector<2x47xf32> -> vector<2x47xf32>
    %c0_163 = arith.constant 0 : index
    %c0_164 = arith.constant 0 : index
    %470 = vector.load %arg13[%c0_163, %c0_164] : memref<1x47xf32, #tpu.memory_space<vmem>>, vector<1x47xf32>
    %471 = vector.broadcast %470 : vector<1x47xf32> to vector<2x47xf32>
    %472 = arith.addf %469, %471 : vector<2x47xf32>
    %473 = vector.extract_strided_slice %472 {offsets = [0, 0], sizes = [2, 10], strides = [1, 1]} : vector<2x47xf32> to vector<2x10xf32>
    %474 = tpu.concatenate %438, %439, %440, %473, %11 in 1 : vector<2x8xf32>, vector<2x8xf32>, vector<2x8xf32>, vector<2x10xf32>, vector<2x94xf32> -> vector<2x128xf32>
    %c2_165 = arith.constant 2 : index
    %c0_166 = arith.constant 0 : index
    %c0_167 = arith.constant 0 : index
    %475 = vector.load %arg14[%c2_165, %c0_166, %c0_167] : memref<3x2x128xf32, #tpu.memory_space<vmem>>, vector<1x2x128xf32>
    %476 = vector.shape_cast %475 : vector<1x2x128xf32> to vector<2x128xf32>
    %477 = vector.shape_cast %474 : vector<2x128xf32> to vector<1x2x128xf32>
    tpu.vector_store %arg14[%c2_165, %c0_166, %c0_167], %477 {strides = array<i32>} : memref<3x2x128xf32, #tpu.memory_space<vmem>>, vector<1x2x128xf32>,
    return
  }
}

</mosaic_0001>

<llo_original>
// kernel: _lambda_.1
$region0: #{_lambda_.1}
  #allocation0 [shape = 'u32[]', space=smem, size = 0x4, offset = 0x4, fixed_abs, tag = 'smem constant byte address 0x4 - core index']
  #allocation1 [shape = 'u32[144,128]{1,0:T(1,128)}', space=vmem, size = 0x12000, scoped, tag = 'internal scratch']
  %s0 = inlined_call_operand.vmem [shape: f32[2,16,16], index: 0, kind: input, shape index: {}]
  %s1 = inlined_call_operand.vmem [shape: f32[3,2,8], index: 1, kind: input, shape index: {}]
  %s2 = inlined_call_operand.vmem [shape: f32[1,5], index: 2, kind: input, shape index: {}]
  %s3 = inlined_call_operand.vmem [shape: f32[16,128], index: 3, kind: input, shape index: {}]
  %s4 = inlined_call_operand.vmem [shape: f32[32,128], index: 4, kind: input, shape index: {}]
  %s5 = inlined_call_operand.vmem [shape: f32[32,128], index: 5, kind: input, shape index: {}]
  %s6 = inlined_call_operand.vmem [shape: f32[1,128], index: 6, kind: input, shape index: {}]
  %s7 = inlined_call_operand.vmem [shape: f32[32,16], index: 7, kind: input, shape index: {}]
  %s8 = inlined_call_operand.vmem [shape: f32[1,16], index: 8, kind: input, shape index: {}]
  %s9 = inlined_call_operand.vmem [shape: f32[8,128], index: 9, kind: input, shape index: {}]
  %s10 = inlined_call_operand.vmem [shape: f32[32,128], index: 10, kind: input, shape index: {}]
  %s11 = inlined_call_operand.vmem [shape: f32[1,128], index: 11, kind: input, shape index: {}]
  %s12 = inlined_call_operand.vmem [shape: f32[32,47], index: 12, kind: input, shape index: {}]
  %s13 = inlined_call_operand.vmem [shape: f32[1,47], index: 13, kind: input, shape index: {}]
  %s14 = inlined_call_operand.vmem [shape: f32[3,2,128], index: 14, kind: output, shape index: {}]
  %s15 = sld [smem:[#allocation0]]
  $region66: #{_lambda_.1} parent=0
    _
  %s17 = ssub.s32 1, %s15
  %s18 = scalar_select 0, %s17, %s15
  // Predicated region
  $region2: #{_lambda_.1} parent=0 // pred_check
    _
  $region3: #{_lambda_.1} parent=0 // pred_check_branch
    %20 = sbr.rel (0) target = $region5
  $region4: #{_lambda_.1} parent=0 // pred_region
    _
  $region5: #{_lambda_.1} parent=0 // pred_fallthru
    _
  // Predicated region
  $region6: #{_lambda_.1} parent=0 // pred_check
    _
  $region7: #{_lambda_.1} parent=0 // pred_check_branch
    %22 = sbr.rel (0) target = $region9
  $region8: #{_lambda_.1} parent=0 // pred_region
    _
  $region9: #{_lambda_.1} parent=0 // pred_fallthru
    _
  // Predicated region
  $region10: #{_lambda_.1} parent=0 // pred_check
    _
  $region11: #{_lambda_.1} parent=0 // pred_check_branch
    %24 = sbr.rel (0) target = $region13
  $region12: #{_lambda_.1} parent=0 // pred_region
    _
  $region13: #{_lambda_.1} parent=0 // pred_fallthru
    _
  // Predicated region
  $region14: #{_lambda_.1} parent=0 // pred_check
    _
  $region15: #{_lambda_.1} parent=0 // pred_check_branch
    %26 = sbr.rel (0) target = $region17
  $region16: #{_lambda_.1} parent=0 // pred_region
    _
  $region17: #{_lambda_.1} parent=0 // pred_fallthru
    _
  // Predicated region
  $region18: #{_lambda_.1} parent=0 // pred_check
    _
  $region19: #{_lambda_.1} parent=0 // pred_check_branch
    %28 = sbr.rel (0) target = $region21
  $region20: #{_lambda_.1} parent=0 // pred_region
    _
  $region21: #{_lambda_.1} parent=0 // pred_fallthru
    _
  // Predicated region
  $region22: #{_lambda_.1} parent=0 // pred_check
    _
  $region23: #{_lambda_.1} parent=0 // pred_check_branch
    %30 = sbr.rel (0) target = $region25
  $region24: #{_lambda_.1} parent=0 // pred_region
    _
  $region25: #{_lambda_.1} parent=0 // pred_fallthru
    _
  // Predicated region
  $region26: #{_lambda_.1} parent=0 // pred_check
    _
  $region27: #{_lambda_.1} parent=0 // pred_check_branch
    %32 = sbr.rel (0) target = $region29
  $region28: #{_lambda_.1} parent=0 // pred_region
    _
  $region29: #{_lambda_.1} parent=0 // pred_fallthru
    _
  // Predicated region
  $region30: #{_lambda_.1} parent=0 // pred_check
    _
  $region31: #{_lambda_.1} parent=0 // pred_check_branch
    %34 = sbr.rel (0) target = $region33
  $region32: #{_lambda_.1} parent=0 // pred_region
    _
  $region33: #{_lambda_.1} parent=0 // pred_fallthru
    _
  // Predicated region
  $region34: #{_lambda_.1} parent=0 // pred_check
    _
  $region35: #{_lambda_.1} parent=0 // pred_check_branch
    %36 = sbr.rel (0) target = $region37
  $region36: #{_lambda_.1} parent=0 // pred_region
    _
  $region37: #{_lambda_.1} parent=0 // pred_fallthru
    _
  // Predicated region
  $region38: #{_lambda_.1} parent=0 // pred_check
    _
  $region39: #{_lambda_.1} parent=0 // pred_check_branch
    %38 = sbr.rel (0) target = $region41
  $region40: #{_lambda_.1} parent=0 // pred_region
    _
  $region41: #{_lambda_.1} parent=0 // pred_fallthru
    _
  // Predicated region
  $region42: #{_lambda_.1} parent=0 // pred_check
    _
  $region43: #{_lambda_.1} parent=0 // pred_check_branch
    %40 = sbr.rel (0) target = $region45
  $region44: #{_lambda_.1} parent=0 // pred_region
    _
  $region45: #{_lambda_.1} parent=0 // pred_fallthru
    _
  // Predicated region
  $region46: #{_lambda_.1} parent=0 // pred_check
    _
  $region47: #{_lambda_.1} parent=0 // pred_check_branch
    %42 = sbr.rel (0) target = $region49
  $region48: #{_lambda_.1} parent=0 // pred_region
    _
  $region49: #{_lambda_.1} parent=0 // pred_fallthru
    _
  // Predicated region
  $region50: #{_lambda_.1} parent=0 // pred_check
    _
  $region51: #{_lambda_.1} parent=0 // pred_check_branch
    %44 = sbr.rel (0) target = $region53
  $region52: #{_lambda_.1} parent=0 // pred_region
    _
  $region53: #{_lambda_.1} parent=0 // pred_fallthru
    _
  // Predicated region
  $region54: #{_lambda_.1} parent=0 // pred_check
    _
  $region55: #{_lambda_.1} parent=0 // pred_check_branch
    %46 = sbr.rel (0) target = $region57
  $region56: #{_lambda_.1} parent=0 // pred_region
    _
  $region57: #{_lambda_.1} parent=0 // pred_fallthru
    _
  %v47 = vlaneseq
  %v48 = vshrl.u32 %v47, 7
  %v49 = vcvt.s32.f32 %v48
  %v50 = vlaneseq
  %v51 = vand.u32 %v50, 127
  %v52 = vcvt.s32.f32 %v51
  %v53 = vld [vmem:[%s0] sm:$0xff]
  %v54 = vld [vmem:[%s0 + $0x8] sm:$0xff]
  %v55 = vld [vmem:[%s0 + $0x10] sm:$0xff]
  %v56 = vld [vmem:[%s0 + $0x18] sm:$0xff]
  %v57 = vld [vmem:[%s2] sm:$0x1]
  %v59 = vlaneseq
  %v60 = vshrl.u32 %v59, 7
  %v61 = vsub.s32 0, %v60
  %v62 = vrot.slane %v57, %v61
  %v64 = vadd.f32 %v62, 1.0
  %v65 = vmul.f32 %v64, 8.5
  %v66 = vmul.f32 %v62, 1.442695
  %v67 = vpow.pop %v66
  %v68 = vmul.f32 %v67, 5.0
  %v71 = vunpack.c.l.s4 1966171168
  %v72 = vunpack.c.0.s8 %v71
  %v73 = vlaneseq
  %v74 = vshrl.u32 %v73, 7
  %v75 = vsub.s32 %v72, %v74
  %v76 = vrot.slane %v65, %v75
  %v77 = vcombine.high %v76, %v76
  %v79 = vunpack.c.l.s4 1966171168
  %v80 = vunpack.c.0.s8 %v79
  %v81 = vlaneseq
  %v82 = vshrl.u32 %v81, 7
  %v83 = vsub.s32 %v80, %v82
  %v84 = vrot.slane %v76, %v83
  %v86 = vunpack.c.l.s4 1966171168
  %v87 = vunpack.c.0.s8 %v86
  %v88 = vlaneseq
  %v89 = vshrl.u32 %v88, 7
  %v90 = vsub.s32 %v87, %v89
  %v91 = vrot.slane %v77, %v90
  %v94 = vunpack.c.l.s4 1966171168
  %v95 = vunpack.c.0.s8 %v94
  %v96 = vlaneseq
  %v97 = vshrl.u32 %v96, 7
  %v98 = vsub.s32 %v95, %v97
  %v99 = vrot.slane %v68, %v98
  %v100 = vcombine.high %v99, %v99
  %v102 = vunpack.c.l.s4 1966171168
  %v103 = vunpack.c.0.s8 %v102
  %v104 = vlaneseq
  %v105 = vshrl.u32 %v104, 7
  %v106 = vsub.s32 %v103, %v105
  %v107 = vrot.slane %v99, %v106
  %v109 = vunpack.c.l.s4 1966171168
  %v110 = vunpack.c.0.s8 %v109
  %v111 = vlaneseq
  %v112 = vshrl.u32 %v111, 7
  %v113 = vsub.s32 %v110, %v112
  %v114 = vrot.slane %v100, %v113
  %v117 = vunpack.c.l.s4 1966171168
  %v118 = vunpack.c.0.s8 %v117
  %v119 = vlaneseq
  %v120 = vshrl.u32 %v119, 7
  %v121 = vsub.s32 %v118, %v120
  %v122 = vrot.slane %v67, %v121
  %v123 = vcombine.high %v122, %v122
  %v125 = vunpack.c.l.s4 1966171168
  %v126 = vunpack.c.0.s8 %v125
  %v127 = vlaneseq
  %v128 = vshrl.u32 %v127, 7
  %v129 = vsub.s32 %v126, %v128
  %v130 = vrot.slane %v122, %v129
  %v132 = vunpack.c.l.s4 1966171168
  %v133 = vunpack.c.0.s8 %v132
  %v134 = vlaneseq
  %v135 = vshrl.u32 %v134, 7
  %v136 = vsub.s32 %v133, %v135
  %v137 = vrot.slane %v123, %v136
  %v140 = vsub.f32 %v49, 2.5
  %v141 = vlaneseq
  %v142 = vshrl.u32 %v141, 7
  %v143 = vsub.s32 0, %v142
  %v144 = vrot.slane %v107, %v143
  %v145 = vlaneseq
  %v146 = vshrl.u32 %v145, 7
  %v147 = vsub.s32 0, %v146
  %v148 = vrot.slane %v114, %v147
  %v151 = vmul.f32 %v140, %v144
  %v152 = vmul.f32 %v140, %v148
  %v153 = vlaneseq
  %v154 = vshrl.u32 %v153, 7
  %v155 = vsub.s32 0, %v154
  %v156 = vrot.slane %v84, %v155
  %v157 = vlaneseq
  %v158 = vshrl.u32 %v157, 7
  %v159 = vsub.s32 0, %v158
  %v160 = vrot.slane %v91, %v159
  %165 = vrot.lane.b32.xlu0 %v151, 125
  %v166 = vpop.permute.xlu0 %165
  %167 = vrot.lane.b32.xlu0 %v152, 125
  %v168 = vpop.permute.xlu0 %167
  %v171 = vadd.f32 %v156, %v166
  %v172 = vadd.f32 %v160, %v168
  %173 = vrot.lane.b32.xlu0 %v151, 126
  %v174 = vpop.permute.xlu0 %173
  %175 = vrot.lane.b32.xlu0 %v152, 126
  %v176 = vpop.permute.xlu0 %175
  %v179 = vadd.f32 %v156, %v174
  %v180 = vadd.f32 %v160, %v176
  %182 = vset.pattern.permute.xlu0 0
  %183 = vperm.xlu0 %182, %v171
  %v184 = vpop.permute.xlu0 %183
  %187 = vset.pattern.permute.xlu0 0
  %188 = vperm.xlu0 %187, %v172
  %v189 = vpop.permute.xlu0 %188
  %v191 = vsub.f32 %v52, %v184
  %v192 = vsub.f32 %v52, %v189
  %v193 = vmul.f32 %v191, %v191
  %v194 = vmul.f32 %v192, %v192
  %v195 = vsub.f32 0.0, %v193
  %v196 = vsub.f32 0.0, %v194
  %v197 = vmul.f32 %v130, 2.0
  %v198 = vmul.f32 %v137, 2.0
  %v201 = vlaneseq
  %v202 = vshrl.u32 %v201, 7
  %v203 = vsub.s32 0, %v202
  %v204 = vrot.slane %v197, %v203
  %v205 = vlaneseq
  %v206 = vshrl.u32 %v205, 7
  %v207 = vsub.s32 0, %v206
  %v208 = vrot.slane %v198, %v207
  %209 = vset.pattern.permute.xlu0 2
  %210 = vperm.xlu0 %209, %v204
  %v211 = vpop.permute.xlu0 %210
  %213 = vset.pattern.permute.xlu0 2
  %214 = vperm.xlu0 %213, %v208
  %v215 = vpop.permute.xlu0 %214
  %v217 = vrcp.pop %v211
  %v218 = vmul.f32 %v195, %v217
  %v219 = vrcp.pop %v215
  %v220 = vmul.f32 %v196, %v219
  %v221 = vmul.f32 %v218, 1.442695
  %v222 = vpow.pop %v221
  %v223 = vmul.f32 %v220, 1.442695
  %v224 = vpow.pop %v223
  %226 = vset.pattern.permute.xlu0 1
  %227 = vperm.xlu0 %226, %v179
  %v228 = vpop.permute.xlu0 %227
  %231 = vset.pattern.permute.xlu0 1
  %232 = vperm.xlu0 %231, %v180
  %v233 = vpop.permute.xlu0 %232
  %v235 = vsub.f32 %v52, %v228
  %v236 = vsub.f32 %v52, %v233
  %v237 = vmul.f32 %v235, %v235
  %v238 = vmul.f32 %v236, %v236
  %v239 = vsub.f32 0.0, %v237
  %v240 = vsub.f32 0.0, %v238
  %v241 = vmul.f32 %v239, %v217
  %v242 = vmul.f32 %v240, %v219
  %v243 = vmul.f32 %v241, 1.442695
  %v244 = vpow.pop %v243
  %v245 = vmul.f32 %v242, 1.442695
  %v246 = vpow.pop %v245
  %vm247 = vcmask 125952
  %v248 = vsel %vm247, %v222, 0.0
  %249 = vadd.xlane.f32.xlu0 %v248
  %v250 = vpop.xlane.xlu0 %249
  %v251 = vsel %vm247, %v224, 0.0
  %252 = vadd.xlane.f32.xlu0 %v251
  %v253 = vpop.xlane.xlu0 %252
  %v254 = vadd.f32 %v250, 1e-08
  %v255 = vadd.f32 %v253, 1e-08
  %v256 = vrcp.pop %v254
  %v257 = vmul.f32 %v222, %v256
  %v258 = vrcp.pop %v255
  %v259 = vmul.f32 %v224, %v258
  %v260 = vsel %vm247, %v244, 0.0
  %261 = vadd.xlane.f32.xlu0 %v260
  %v262 = vpop.xlane.xlu0 %261
  %v263 = vsel %vm247, %v246, 0.0
  %264 = vadd.xlane.f32.xlu0 %v263
  %v265 = vpop.xlane.xlu0 %264
  %v266 = vadd.f32 %v262, 1e-08
  %v267 = vadd.f32 %v265, 1e-08
  %v268 = vrcp.pop %v266
  %v269 = vmul.f32 %v244, %v268
  %v270 = vrcp.pop %v267
  %v271 = vmul.f32 %v246, %v270
  %vm272 = vcmask 130048
  %v274 = vsel %vm272, %v53, 0
  %v277 = vsel %vm272, %v54, 0
  %v280 = vsel %vm272, %v257, 0
  %282 = vmatprep.subr.mxu0 0.0
  %283 = vmatpush1.xpose.msra.mxu0 0.0
  %284 = vmatprep.subr.mxu0 0.0
  %285 = vmatpush1.xpose.msra.mxu0 0.0
  %286 = vmatprep.subr.mxu0 0.0
  %287 = vmatpush1.xpose.msra.mxu0 0.0
  %288 = vmatprep.subr.mxu0 0.0
  %289 = vmatpush1.xpose.msra.mxu0 0.0
  %290 = vmatprep.subr.mxu0 0.0
  %291 = vmatpush1.xpose.msra.mxu0 0.0
  %292 = vmatprep.subr.mxu0 0.0
  %293 = vmatpush1.xpose.msra.mxu0 0.0
  %294 = vmatprep.subr.mxu0 0.0
  %295 = vmatpush1.xpose.msra.mxu0 0.0
  %296 = vmatprep.subr.mxu0 0.0
  %297 = vmatpush1.xpose.msra.mxu0 0.0
  %298 = vmatprep.subr.mxu0 0.0
  %299 = vmatpush1.xpose.msra.mxu0 0.0
  %300 = vmatprep.subr.mxu0 0.0
  %301 = vmatpush1.xpose.msra.mxu0 0.0
  %302 = vmatprep.subr.mxu0 0.0
  %303 = vmatpush1.xpose.msra.mxu0 0.0
  %304 = vmatprep.subr.mxu0 0.0
  %305 = vmatpush1.xpose.msra.mxu0 0.0
  %306 = vmatprep.subr.mxu0 0.0
  %307 = vmatpush1.xpose.msra.mxu0 0.0
  %308 = vmatprep.subr.mxu0 0.0
  %309 = vmatpush1.xpose.msra.mxu0 0.0
  %310 = vmatprep.subr.mxu0 0.0
  %311 = vmatpush1.xpose.msra.mxu0 0.0
  %312 = vmatprep.subr.mxu0 0.0
  %313 = vmatpush1.xpose.msra.mxu0 %v280
  %314 = vmatprep.subr.mxu0 0.0
  %315 = vmatpush2.xpose.msra.mxu0 0.0
  %316 = vmatprep.subr.mxu0 0.0
  %317 = vmatpush2.xpose.msra.mxu0 0.0
  %318 = vmatprep.subr.mxu0 0.0
  %319 = vmatpush2.xpose.msra.mxu0 0.0
  %320 = vmatprep.subr.mxu0 0.0
  %321 = vmatpush2.xpose.msra.mxu0 0.0
  %322 = vmatprep.subr.mxu0 0.0
  %323 = vmatpush2.xpose.msra.mxu0 0.0
  %324 = vmatprep.subr.mxu0 0.0
  %325 = vmatpush2.xpose.msra.mxu0 0.0
  %326 = vmatprep.subr.mxu0 0.0
  %327 = vmatpush2.xpose.msra.mxu0 0.0
  %328 = vmatprep.subr.mxu0 0.0
  %329 = vmatpush2.xpose.msra.mxu0 0.0
  %330 = vmatprep.subr.mxu0 0.0
  %331 = vmatpush2.xpose.msra.mxu0 0.0
  %332 = vmatprep.subr.mxu0 0.0
  %333 = vmatpush2.xpose.msra.mxu0 0.0
  %334 = vmatprep.subr.mxu0 0.0
  %335 = vmatpush2.xpose.msra.mxu0 0.0
  %336 = vmatprep.subr.mxu0 0.0
  %337 = vmatpush2.xpose.msra.mxu0 0.0
  %338 = vmatprep.subr.mxu0 0.0
  %339 = vmatpush2.xpose.msra.mxu0 0.0
  %340 = vmatprep.subr.mxu0 0.0
  %341 = vmatpush2.xpose.msra.mxu0 0.0
  %342 = vmatprep.subr.mxu0 0.0
  %343 = vmatpush2.xpose.msra.mxu0 0.0
  %344 = vmatprep.subr.mxu0 0.0
  %345 = vmatpush2.xpose.msra.mxu0 0.0
  %346 = vmatprep.mubr.f32.mxu0 0.0
  %347 = vmatmul.mubr.f32.gmra.mxu0 %v274
  %v348 = vpop.f32.mrf.mxu0
  %v349 = vadd.f32 0.0, %v348
  %v350 = vpop.f32.mrf.mxu0
  %351 = vmatprep.mubr.f32.mxu0 0.0
  %352 = vmatmul.mubr.f32.gmra.mxu0 %v277
  %v353 = vpop.f32.mrf.mxu0
  %v354 = vadd.f32 0.0, %v353
  %v355 = vpop.f32.mrf.mxu0
  %356 = vdwg.mxu0
  %v358 = vsel %vm272, %v55, 0
  %v361 = vsel %vm272, %v56, 0
  %v364 = vsel %vm272, %v259, 0
  %366 = vmatprep.subr.mxu0 0.0
  %367 = vmatpush1.xpose.msra.mxu0 0.0
  %368 = vmatprep.subr.mxu0 0.0
  %369 = vmatpush1.xpose.msra.mxu0 0.0
  %370 = vmatprep.subr.mxu0 0.0
  %371 = vmatpush1.xpose.msra.mxu0 0.0
  %372 = vmatprep.subr.mxu0 0.0
  %373 = vmatpush1.xpose.msra.mxu0 0.0
  %374 = vmatprep.subr.mxu0 0.0
  %375 = vmatpush1.xpose.msra.mxu0 0.0
  %376 = vmatprep.subr.mxu0 0.0
  %377 = vmatpush1.xpose.msra.mxu0 0.0
  %378 = vmatprep.subr.mxu0 0.0
  %379 = vmatpush1.xpose.msra.mxu0 0.0
  %380 = vmatprep.subr.mxu0 0.0
  %381 = vmatpush1.xpose.msra.mxu0 0.0
  %382 = vmatprep.subr.mxu0 0.0
  %383 = vmatpush1.xpose.msra.mxu0 0.0
  %384 = vmatprep.subr.mxu0 0.0
  %385 = vmatpush1.xpose.msra.mxu0 0.0
  %386 = vmatprep.subr.mxu0 0.0
  %387 = vmatpush1.xpose.msra.mxu0 0.0
  %388 = vmatprep.subr.mxu0 0.0
  %389 = vmatpush1.xpose.msra.mxu0 0.0
  %390 = vmatprep.subr.mxu0 0.0
  %391 = vmatpush1.xpose.msra.mxu0 0.0
  %392 = vmatprep.subr.mxu0 0.0
  %393 = vmatpush1.xpose.msra.mxu0 0.0
  %394 = vmatprep.subr.mxu0 0.0
  %395 = vmatpush1.xpose.msra.mxu0 0.0
  %396 = vmatprep.subr.mxu0 0.0
  %397 = vmatpush1.xpose.msra.mxu0 %v364
  %398 = vmatprep.subr.mxu0 0.0
  %399 = vmatpush2.xpose.msra.mxu0 0.0
  %400 = vmatprep.subr.mxu0 0.0
  %401 = vmatpush2.xpose.msra.mxu0 0.0
  %402 = vmatprep.subr.mxu0 0.0
  %403 = vmatpush2.xpose.msra.mxu0 0.0
  %404 = vmatprep.subr.mxu0 0.0
  %405 = vmatpush2.xpose.msra.mxu0 0.0
  %406 = vmatprep.subr.mxu0 0.0
  %407 = vmatpush2.xpose.msra.mxu0 0.0
  %408 = vmatprep.subr.mxu0 0.0
  %409 = vmatpush2.xpose.msra.mxu0 0.0
  %410 = vmatprep.subr.mxu0 0.0
  %411 = vmatpush2.xpose.msra.mxu0 0.0
  %412 = vmatprep.subr.mxu0 0.0
  %413 = vmatpush2.xpose.msra.mxu0 0.0
  %414 = vmatprep.subr.mxu0 0.0
  %415 = vmatpush2.xpose.msra.mxu0 0.0
  %416 = vmatprep.subr.mxu0 0.0
  %417 = vmatpush2.xpose.msra.mxu0 0.0
  %418 = vmatprep.subr.mxu0 0.0
  %419 = vmatpush2.xpose.msra.mxu0 0.0
  %420 = vmatprep.subr.mxu0 0.0
  %421 = vmatpush2.xpose.msra.mxu0 0.0
  %422 = vmatprep.subr.mxu0 0.0
  %423 = vmatpush2.xpose.msra.mxu0 0.0
  %424 = vmatprep.subr.mxu0 0.0
  %425 = vmatpush2.xpose.msra.mxu0 0.0
  %426 = vmatprep.subr.mxu0 0.0
  %427 = vmatpush2.xpose.msra.mxu0 0.0
  %428 = vmatprep.subr.mxu0 0.0
  %429 = vmatpush2.xpose.msra.mxu0 0.0
  %430 = vmatprep.mubr.f32.mxu0 0.0
  %431 = vmatmul.mubr.f32.gmra.mxu0 %v358
  %v432 = vpop.f32.mrf.mxu0
  %v433 = vadd.f32 0.0, %v432
  %v434 = vpop.f32.mrf.mxu0
  %435 = vmatprep.mubr.f32.mxu0 0.0
  %436 = vmatmul.mubr.f32.gmra.mxu0 %v361
  %v437 = vpop.f32.mrf.mxu0
  %v438 = vadd.f32 0.0, %v437
  %v439 = vpop.f32.mrf.mxu0
  %440 = vdwg.mxu0
  %v442 = vsel %vm272, %v269, 0
  %444 = vmatprep.subr.mxu0 0.0
  %445 = vmatpush1.msra.mxu0 0.0
  %446 = vmatprep.subr.mxu0 0.0
  %447 = vmatpush1.msra.mxu0 0.0
  %448 = vmatprep.subr.mxu0 0.0
  %449 = vmatpush1.msra.mxu0 0.0
  %450 = vmatprep.subr.mxu0 0.0
  %451 = vmatpush1.msra.mxu0 0.0
  %452 = vmatprep.subr.mxu0 0.0
  %453 = vmatpush1.msra.mxu0 0.0
  %454 = vmatprep.subr.mxu0 0.0
  %455 = vmatpush1.msra.mxu0 0.0
  %456 = vmatprep.subr.mxu0 0.0
  %457 = vmatpush1.msra.mxu0 0.0
  %458 = vmatprep.subr.mxu0 0.0
  %459 = vmatpush1.msra.mxu0 0.0
  %460 = vmatprep.subr.mxu0 0.0
  %461 = vmatpush1.msra.mxu0 0.0
  %462 = vmatprep.subr.mxu0 0.0
  %463 = vmatpush1.msra.mxu0 0.0
  %464 = vmatprep.subr.mxu0 0.0
  %465 = vmatpush1.msra.mxu0 0.0
  %466 = vmatprep.subr.mxu0 0.0
  %467 = vmatpush1.msra.mxu0 0.0
  %468 = vmatprep.subr.mxu0 0.0
  %469 = vmatpush1.msra.mxu0 0.0
  %470 = vmatprep.subr.mxu0 0.0
  %471 = vmatpush1.msra.mxu0 0.0
  %472 = vmatprep.subr.mxu0 0.0
  %473 = vmatpush1.msra.mxu0 %v354
  %474 = vmatprep.subr.mxu0 0.0
  %475 = vmatpush1.msra.mxu0 %v349
  %476 = vmatprep.subr.mxu0 0.0
  %477 = vmatpush2.msra.mxu0 0.0
  %478 = vmatprep.subr.mxu0 0.0
  %479 = vmatpush2.msra.mxu0 0.0
  %480 = vmatprep.subr.mxu0 0.0
  %481 = vmatpush2.msra.mxu0 0.0
  %482 = vmatprep.subr.mxu0 0.0
  %483 = vmatpush2.msra.mxu0 0.0
  %484 = vmatprep.subr.mxu0 0.0
  %485 = vmatpush2.msra.mxu0 0.0
  %486 = vmatprep.subr.mxu0 0.0
  %487 = vmatpush2.msra.mxu0 0.0
  %488 = vmatprep.subr.mxu0 0.0
  %489 = vmatpush2.msra.mxu0 0.0
  %490 = vmatprep.subr.mxu0 0.0
  %491 = vmatpush2.msra.mxu0 0.0
  %492 = vmatprep.subr.mxu0 0.0
  %493 = vmatpush2.msra.mxu0 0.0
  %494 = vmatprep.subr.mxu0 0.0
  %495 = vmatpush2.msra.mxu0 0.0
  %496 = vmatprep.subr.mxu0 0.0
  %497 = vmatpush2.msra.mxu0 0.0
  %498 = vmatprep.subr.mxu0 0.0
  %499 = vmatpush2.msra.mxu0 0.0
  %500 = vmatprep.subr.mxu0 0.0
  %501 = vmatpush2.msra.mxu0 0.0
  %502 = vmatprep.subr.mxu0 0.0
  %503 = vmatpush2.msra.mxu0 0.0
  %504 = vmatprep.subr.mxu0 0.0
  %505 = vmatpush2.msra.mxu0 0.0
  %506 = vmatprep.subr.mxu0 0.0
  %507 = vmatpush2.msra.mxu0 0.0
  %508 = vmatprep.mubr.f32.mxu0 0.0
  %509 = vmatmul.mubr.f32.gmra.mxu0 %v442
  %v510 = vpop.f32.mrf.mxu0
  %v511 = vadd.f32 0.0, %v510
  %v512 = vpop.f32.mrf.mxu0
  %513 = vdwg.mxu0
  %v515 = vsel %vm272, %v271, 0
  %517 = vmatprep.subr.mxu0 0.0
  %518 = vmatpush1.msra.mxu0 0.0
  %519 = vmatprep.subr.mxu0 0.0
  %520 = vmatpush1.msra.mxu0 0.0
  %521 = vmatprep.subr.mxu0 0.0
  %522 = vmatpush1.msra.mxu0 0.0
  %523 = vmatprep.subr.mxu0 0.0
  %524 = vmatpush1.msra.mxu0 0.0
  %525 = vmatprep.subr.mxu0 0.0
  %526 = vmatpush1.msra.mxu0 0.0
  %527 = vmatprep.subr.mxu0 0.0
  %528 = vmatpush1.msra.mxu0 0.0
  %529 = vmatprep.subr.mxu0 0.0
  %530 = vmatpush1.msra.mxu0 0.0
  %531 = vmatprep.subr.mxu0 0.0
  %532 = vmatpush1.msra.mxu0 0.0
  %533 = vmatprep.subr.mxu0 0.0
  %534 = vmatpush1.msra.mxu0 0.0
  %535 = vmatprep.subr.mxu0 0.0
  %536 = vmatpush1.msra.mxu0 0.0
  %537 = vmatprep.subr.mxu0 0.0
  %538 = vmatpush1.msra.mxu0 0.0
  %539 = vmatprep.subr.mxu0 0.0
  %540 = vmatpush1.msra.mxu0 0.0
  %541 = vmatprep.subr.mxu0 0.0
  %542 = vmatpush1.msra.mxu0 0.0
  %543 = vmatprep.subr.mxu0 0.0
  %544 = vmatpush1.msra.mxu0 0.0
  %545 = vmatprep.subr.mxu0 0.0
  %546 = vmatpush1.msra.mxu0 %v438
  %547 = vmatprep.subr.mxu0 0.0
  %548 = vmatpush1.msra.mxu0 %v433
  %549 = vmatprep.subr.mxu0 0.0
  %550 = vmatpush2.msra.mxu0 0.0
  %551 = vmatprep.subr.mxu0 0.0
  %552 = vmatpush2.msra.mxu0 0.0
  %553 = vmatprep.subr.mxu0 0.0
  %554 = vmatpush2.msra.mxu0 0.0
  %555 = vmatprep.subr.mxu0 0.0
  %556 = vmatpush2.msra.mxu0 0.0
  %557 = vmatprep.subr.mxu0 0.0
  %558 = vmatpush2.msra.mxu0 0.0
  %559 = vmatprep.subr.mxu0 0.0
  %560 = vmatpush2.msra.mxu0 0.0
  %561 = vmatprep.subr.mxu0 0.0
  %562 = vmatpush2.msra.mxu0 0.0
  %563 = vmatprep.subr.mxu0 0.0
  %564 = vmatpush2.msra.mxu0 0.0
  %565 = vmatprep.subr.mxu0 0.0
  %566 = vmatpush2.msra.mxu0 0.0
  %567 = vmatprep.subr.mxu0 0.0
  %568 = vmatpush2.msra.mxu0 0.0
  %569 = vmatprep.subr.mxu0 0.0
  %570 = vmatpush2.msra.mxu0 0.0
  %571 = vmatprep.subr.mxu0 0.0
  %572 = vmatpush2.msra.mxu0 0.0
  %573 = vmatprep.subr.mxu0 0.0
  %574 = vmatpush2.msra.mxu0 0.0
  %575 = vmatprep.subr.mxu0 0.0
  %576 = vmatpush2.msra.mxu0 0.0
  %577 = vmatprep.subr.mxu0 0.0
  %578 = vmatpush2.msra.mxu0 0.0
  %579 = vmatprep.subr.mxu0 0.0
  %580 = vmatpush2.msra.mxu0 0.0
  %581 = vmatprep.mubr.f32.mxu0 0.0
  %582 = vmatmul.mubr.f32.gmra.mxu0 %v515
  %v583 = vpop.f32.mrf.mxu0
  %v584 = vadd.f32 0.0, %v583
  %v585 = vpop.f32.mrf.mxu0
  %586 = vdwg.mxu0
  %v589 = vrot.slane %v584, 7
  %vm590 = vcmask 1041409
  %v591 = vsel %vm590, %v589, %v511
  %v593 = vrot.slane %v511, 1
  %v594 = vsel %vm590, %v584, %v593
  %595 = vrot.lane.b32.xlu0 %v594, 4
  %v596 = vpop.permute.xlu0 %595
  %v598 = vrot.slane %v511, 2
  %v599 = vrot.slane %v584, 1
  %v600 = vsel %vm590, %v599, %v598
  %601 = vrot.lane.b32.xlu0 %v600, 8
  %v602 = vpop.permute.xlu0 %601
  %v604 = vrot.slane %v511, 3
  %v605 = vrot.slane %v584, 2
  %v606 = vsel %vm590, %v605, %v604
  %607 = vrot.lane.b32.xlu0 %v606, 12
  %v608 = vpop.permute.xlu0 %607
  %vm610 = vcmask 31744
  %v611 = vsel %vm610, %v591, %v596
  %vm612 = vcmask 64512
  %v613 = vsel %vm612, %v611, %v602
  %vm614 = vcmask 97280
  %v615 = vsel %vm614, %v613, %v608
  %616 = vset.pattern.permute.xlu0 4
  %617 = vperm.xlu0 %616, %v67
  %v618 = vpop.permute.xlu0 %617
  %v620 = vmul.f32 %v615, %v618
  %v621 = vld [vmem:[%s3] sm:$0xff]
  %v622 = vld [vmem:[%s3 + $0x8] sm:$0xff]
  %v623 = vld [vmem:[%s4] sm:$0xff]
  %v624 = vld [vmem:[%s4 + $0x8] sm:$0xff]
  %v625 = vld [vmem:[%s4 + $0x10] sm:$0xff]
  %v626 = vld [vmem:[%s4 + $0x18] sm:$0xff]
  %vm627 = vcmask 261120
  %v629 = vsel %vm627, 0.0, 0
  %631 = vmatprep.subr.mxu0 0.0
  %632 = vmatpush1.msra.mxu0 0.0
  %633 = vmatprep.subr.mxu0 0.0
  %634 = vmatpush1.msra.mxu0 0.0
  %635 = vmatprep.subr.mxu0 0.0
  %636 = vmatpush1.msra.mxu0 0.0
  %637 = vmatprep.subr.mxu0 0.0
  %638 = vmatpush1.msra.mxu0 0.0
  %639 = vmatprep.subr.mxu0 0.0
  %640 = vmatpush1.msra.mxu0 0.0
  %641 = vmatprep.subr.mxu0 0.0
  %642 = vmatpush1.msra.mxu0 0.0
  %643 = vmatprep.subr.mxu0 0.0
  %644 = vmatpush1.msra.mxu0 0.0
  %645 = vmatprep.subr.mxu0 0.0
  %646 = vmatpush1.msra.mxu0 0.0
  %647 = vmatprep.subr.mxu0 0.0
  %648 = vmatpush1.msra.mxu0 0.0
  %649 = vmatprep.subr.mxu0 0.0
  %650 = vmatpush1.msra.mxu0 0.0
  %651 = vmatprep.subr.mxu0 0.0
  %652 = vmatpush1.msra.mxu0 0.0
  %653 = vmatprep.subr.mxu0 0.0
  %654 = vmatpush1.msra.mxu0 0.0
  %655 = vmatprep.subr.mxu0 0.0
  %656 = vmatpush1.msra.mxu0 %v626
  %657 = vmatprep.subr.mxu0 0.0
  %658 = vmatpush1.msra.mxu0 %v625
  %659 = vmatprep.subr.mxu0 0.0
  %660 = vmatpush1.msra.mxu0 %v624
  %661 = vmatprep.subr.mxu0 0.0
  %662 = vmatpush1.msra.mxu0 %v623
  %663 = vmatprep.subr.mxu0 0.0
  %664 = vmatpush2.msra.mxu0 0.0
  %665 = vmatprep.subr.mxu0 0.0
  %666 = vmatpush2.msra.mxu0 0.0
  %667 = vmatprep.subr.mxu0 0.0
  %668 = vmatpush2.msra.mxu0 0.0
  %669 = vmatprep.subr.mxu0 0.0
  %670 = vmatpush2.msra.mxu0 0.0
  %671 = vmatprep.subr.mxu0 0.0
  %672 = vmatpush2.msra.mxu0 0.0
  %673 = vmatprep.subr.mxu0 0.0
  %674 = vmatpush2.msra.mxu0 0.0
  %675 = vmatprep.subr.mxu0 0.0
  %676 = vmatpush2.msra.mxu0 0.0
  %677 = vmatprep.subr.mxu0 0.0
  %678 = vmatpush2.msra.mxu0 0.0
  %679 = vmatprep.subr.mxu0 0.0
  %680 = vmatpush2.msra.mxu0 0.0
  %681 = vmatprep.subr.mxu0 0.0
  %682 = vmatpush2.msra.mxu0 0.0
  %683 = vmatprep.subr.mxu0 0.0
  %684 = vmatpush2.msra.mxu0 0.0
  %685 = vmatprep.subr.mxu0 0.0
  %686 = vmatpush2.msra.mxu0 0.0
  %687 = vmatprep.subr.mxu0 0.0
  %688 = vmatpush2.msra.mxu0 0.0
  %689 = vmatprep.subr.mxu0 0.0
  %690 = vmatpush2.msra.mxu0 0.0
  %691 = vmatprep.subr.mxu0 0.0
  %692 = vmatpush2.msra.mxu0 0.0
  %693 = vmatprep.subr.mxu0 0.0
  %694 = vmatpush2.msra.mxu0 0.0
  %695 = vmatprep.mubr.f32.mxu0 0.0
  %696 = vmatmul.mubr.f32.gmra.mxu0 %v629
  %v697 = vpop.f32.mrf.mxu0
  %v698 = vadd.f32 0.0, %v697
  %v699 = vpop.f32.mrf.mxu0
  %700 = vdwg.mxu0
  %v702 = vsel %vm272, %v620, 0
  %704 = vmatprep.subr.mxu0 0.0
  %705 = vmatpush1.msra.mxu0 0.0
  %706 = vmatprep.subr.mxu0 0.0
  %707 = vmatpush1.msra.mxu0 0.0
  %708 = vmatprep.subr.mxu0 0.0
  %709 = vmatpush1.msra.mxu0 0.0
  %710 = vmatprep.subr.mxu0 0.0
  %711 = vmatpush1.msra.mxu0 0.0
  %712 = vmatprep.subr.mxu0 0.0
  %713 = vmatpush1.msra.mxu0 0.0
  %714 = vmatprep.subr.mxu0 0.0
  %715 = vmatpush1.msra.mxu0 0.0
  %716 = vmatprep.subr.mxu0 0.0
  %717 = vmatpush1.msra.mxu0 0.0
  %718 = vmatprep.subr.mxu0 0.0
  %719 = vmatpush1.msra.mxu0 0.0
  %720 = vmatprep.subr.mxu0 0.0
  %721 = vmatpush1.msra.mxu0 0.0
  %722 = vmatprep.subr.mxu0 0.0
  %723 = vmatpush1.msra.mxu0 0.0
  %724 = vmatprep.subr.mxu0 0.0
  %725 = vmatpush1.msra.mxu0 0.0
  %726 = vmatprep.subr.mxu0 0.0
  %727 = vmatpush1.msra.mxu0 0.0
  %728 = vmatprep.subr.mxu0 0.0
  %729 = vmatpush1.msra.mxu0 0.0
  %730 = vmatprep.subr.mxu0 0.0
  %731 = vmatpush1.msra.mxu0 0.0
  %732 = vmatprep.subr.mxu0 0.0
  %733 = vmatpush1.msra.mxu0 %v622
  %734 = vmatprep.subr.mxu0 0.0
  %735 = vmatpush1.msra.mxu0 %v621
  %736 = vmatprep.subr.mxu0 0.0
  %737 = vmatpush2.msra.mxu0 0.0
  %738 = vmatprep.subr.mxu0 0.0
  %739 = vmatpush2.msra.mxu0 0.0
  %740 = vmatprep.subr.mxu0 0.0
  %741 = vmatpush2.msra.mxu0 0.0
  %742 = vmatprep.subr.mxu0 0.0
  %743 = vmatpush2.msra.mxu0 0.0
  %744 = vmatprep.subr.mxu0 0.0
  %745 = vmatpush2.msra.mxu0 0.0
  %746 = vmatprep.subr.mxu0 0.0
  %747 = vmatpush2.msra.mxu0 0.0
  %748 = vmatprep.subr.mxu0 0.0
  %749 = vmatpush2.msra.mxu0 0.0
  %750 = vmatprep.subr.mxu0 0.0
  %751 = vmatpush2.msra.mxu0 0.0
  %752 = vmatprep.subr.mxu0 0.0
  %753 = vmatpush2.msra.mxu0 0.0
  %754 = vmatprep.subr.mxu0 0.0
  %755 = vmatpush2.msra.mxu0 0.0
  %756 = vmatprep.subr.mxu0 0.0
  %757 = vmatpush2.msra.mxu0 0.0
  %758 = vmatprep.subr.mxu0 0.0
  %759 = vmatpush2.msra.mxu0 0.0
  %760 = vmatprep.subr.mxu0 0.0
  %761 = vmatpush2.msra.mxu0 0.0
  %762 = vmatprep.subr.mxu0 0.0
  %763 = vmatpush2.msra.mxu0 0.0
  %764 = vmatprep.subr.mxu0 0.0
  %765 = vmatpush2.msra.mxu0 0.0
  %766 = vmatprep.subr.mxu0 0.0
  %767 = vmatpush2.msra.mxu0 0.0
  %768 = vmatprep.mubr.f32.mxu0 0.0
  %769 = vmatmul.mubr.f32.gmra.mxu0 %v702
  %v770 = vpop.f32.mrf.mxu0
  %v771 = vadd.f32 %v698, %v770
  %v772 = vpop.f32.mrf.mxu0
  %773 = vdwg.mxu0
  %v774 = vld [vmem:[%s5] sm:$0xff]
  %v775 = vld [vmem:[%s5 + $0x8] sm:$0xff]
  %v776 = vld [vmem:[%s5 + $0x10] sm:$0xff]
  %v777 = vld [vmem:[%s5 + $0x18] sm:$0xff]
  %778 = vmatprep.subr.mxu0 0.0
  %779 = vmatpush1.msra.mxu0 0.0
  %780 = vmatprep.subr.mxu0 0.0
  %781 = vmatpush1.msra.mxu0 0.0
  %782 = vmatprep.subr.mxu0 0.0
  %783 = vmatpush1.msra.mxu0 0.0
  %784 = vmatprep.subr.mxu0 0.0
  %785 = vmatpush1.msra.mxu0 0.0
  %786 = vmatprep.subr.mxu0 0.0
  %787 = vmatpush1.msra.mxu0 0.0
  %788 = vmatprep.subr.mxu0 0.0
  %789 = vmatpush1.msra.mxu0 0.0
  %790 = vmatprep.subr.mxu0 0.0
  %791 = vmatpush1.msra.mxu0 0.0
  %792 = vmatprep.subr.mxu0 0.0
  %793 = vmatpush1.msra.mxu0 0.0
  %794 = vmatprep.subr.mxu0 0.0
  %795 = vmatpush1.msra.mxu0 0.0
  %796 = vmatprep.subr.mxu0 0.0
  %797 = vmatpush1.msra.mxu0 0.0
  %798 = vmatprep.subr.mxu0 0.0
  %799 = vmatpush1.msra.mxu0 0.0
  %800 = vmatprep.subr.mxu0 0.0
  %801 = vmatpush1.msra.mxu0 0.0
  %802 = vmatprep.subr.mxu0 0.0
  %803 = vmatpush1.msra.mxu0 %v777
  %804 = vmatprep.subr.mxu0 0.0
  %805 = vmatpush1.msra.mxu0 %v776
  %806 = vmatprep.subr.mxu0 0.0
  %807 = vmatpush1.msra.mxu0 %v775
  %808 = vmatprep.subr.mxu0 0.0
  %809 = vmatpush1.msra.mxu0 %v774
  %810 = vmatprep.subr.mxu0 0.0
  %811 = vmatpush2.msra.mxu0 0.0
  %812 = vmatprep.subr.mxu0 0.0
  %813 = vmatpush2.msra.mxu0 0.0
  %814 = vmatprep.subr.mxu0 0.0
  %815 = vmatpush2.msra.mxu0 0.0
  %816 = vmatprep.subr.mxu0 0.0
  %817 = vmatpush2.msra.mxu0 0.0
  %818 = vmatprep.subr.mxu0 0.0
  %819 = vmatpush2.msra.mxu0 0.0
  %820 = vmatprep.subr.mxu0 0.0
  %821 = vmatpush2.msra.mxu0 0.0
  %822 = vmatprep.subr.mxu0 0.0
  %823 = vmatpush2.msra.mxu0 0.0
  %824 = vmatprep.subr.mxu0 0.0
  %825 = vmatpush2.msra.mxu0 0.0
  %826 = vmatprep.subr.mxu0 0.0
  %827 = vmatpush2.msra.mxu0 0.0
  %828 = vmatprep.subr.mxu0 0.0
  %829 = vmatpush2.msra.mxu0 0.0
  %830 = vmatprep.subr.mxu0 0.0
  %831 = vmatpush2.msra.mxu0 0.0
  %832 = vmatprep.subr.mxu0 0.0
  %833 = vmatpush2.msra.mxu0 0.0
  %834 = vmatprep.subr.mxu0 0.0
  %835 = vmatpush2.msra.mxu0 0.0
  %836 = vmatprep.subr.mxu0 0.0
  %837 = vmatpush2.msra.mxu0 0.0
  %838 = vmatprep.subr.mxu0 0.0
  %839 = vmatpush2.msra.mxu0 0.0
  %840 = vmatprep.subr.mxu0 0.0
  %841 = vmatpush2.msra.mxu0 0.0
  %842 = vmatprep.mubr.f32.mxu0 0.0
  %843 = vmatmul.mubr.f32.gmra.mxu0 %v629
  %v844 = vpop.f32.mrf.mxu0
  %v845 = vadd.f32 0.0, %v844
  %v846 = vpop.f32.mrf.mxu0
  %847 = vdwg.mxu0
  %v848 = vadd.f32 %v771, %v845
  %v849 = vld [vmem:[%s6] sm:$0x1]
  %v851 = vlaneseq
  %v852 = vshrl.u32 %v851, 7
  %v853 = vsub.s32 0, %v852
  %v854 = vrot.slane %v849, %v853
  %v856 = vadd.f32 %v848, %v854
  %v857 = vxor.u32 %v856, 2147483648
  %v858 = vmul.f32 %v857, 1.442695
  %v859 = vpow.pop %v858
  %v860 = vadd.f32 %v859, 1.0
  %v861 = vrcp.pop %v860
  %v862 = vmul.f32 1.0, %v861
  %v863 = vmul.f32 %v862, 0.0
  %v864 = vtanh.pop %v856
  %866 = vrot.lane.b32.xlu0 %v864, 64
  %v867 = vpop.permute.xlu0 %866
  %v869 = vmul.f32 %v862, %v867
  %871 = vrot.lane.b32.xlu0 %v869, 32
  %v872 = vpop.permute.xlu0 %871
  %v874 = vadd.f32 %v863, %v872
  %v875 = vtanh.pop %v874
  %877 = vrot.lane.b32.xlu0 %v875, 64
  %v878 = vpop.permute.xlu0 %877
  %v880 = vmul.f32 %v862, %v878
  %v881 = vld [vmem:[%s7] sm:$0xff]
  %v882 = vld [vmem:[%s7 + $0x8] sm:$0xff]
  %v883 = vld [vmem:[%s7 + $0x10] sm:$0xff]
  %v884 = vld [vmem:[%s7 + $0x18] sm:$0xff]
  %v885 = vld [vmem:[%s8] sm:$0x1]
  %v887 = vlaneseq
  %v888 = vshrl.u32 %v887, 7
  %v889 = vsub.s32 0, %v888
  %v890 = vrot.slane %v885, %v889
  %893 = vrot.lane.b32.xlu0 %v880, 32
  %v894 = vpop.permute.xlu0 %893
  %v895 = vsel %vm627, %v894, 0
  %897 = vmatprep.subr.mxu0 0.0
  %898 = vmatpush1.msra.mxu0 0.0
  %899 = vmatprep.subr.mxu0 0.0
  %900 = vmatpush1.msra.mxu0 0.0
  %901 = vmatprep.subr.mxu0 0.0
  %902 = vmatpush1.msra.mxu0 0.0
  %903 = vmatprep.subr.mxu0 0.0
  %904 = vmatpush1.msra.mxu0 0.0
  %905 = vmatprep.subr.mxu0 0.0
  %906 = vmatpush1.msra.mxu0 0.0
  %907 = vmatprep.subr.mxu0 0.0
  %908 = vmatpush1.msra.mxu0 0.0
  %909 = vmatprep.subr.mxu0 0.0
  %910 = vmatpush1.msra.mxu0 0.0
  %911 = vmatprep.subr.mxu0 0.0
  %912 = vmatpush1.msra.mxu0 0.0
  %913 = vmatprep.subr.mxu0 0.0
  %914 = vmatpush1.msra.mxu0 0.0
  %915 = vmatprep.subr.mxu0 0.0
  %916 = vmatpush1.msra.mxu0 0.0
  %917 = vmatprep.subr.mxu0 0.0
  %918 = vmatpush1.msra.mxu0 0.0
  %919 = vmatprep.subr.mxu0 0.0
  %920 = vmatpush1.msra.mxu0 0.0
  %921 = vmatprep.subr.mxu0 0.0
  %922 = vmatpush1.msra.mxu0 %v884
  %923 = vmatprep.subr.mxu0 0.0
  %924 = vmatpush1.msra.mxu0 %v883
  %925 = vmatprep.subr.mxu0 0.0
  %926 = vmatpush1.msra.mxu0 %v882
  %927 = vmatprep.subr.mxu0 0.0
  %928 = vmatpush1.msra.mxu0 %v881
  %929 = vmatprep.subr.mxu0 0.0
  %930 = vmatpush2.msra.mxu0 0.0
  %931 = vmatprep.subr.mxu0 0.0
  %932 = vmatpush2.msra.mxu0 0.0
  %933 = vmatprep.subr.mxu0 0.0
  %934 = vmatpush2.msra.mxu0 0.0
  %935 = vmatprep.subr.mxu0 0.0
  %936 = vmatpush2.msra.mxu0 0.0
  %937 = vmatprep.subr.mxu0 0.0
  %938 = vmatpush2.msra.mxu0 0.0
  %939 = vmatprep.subr.mxu0 0.0
  %940 = vmatpush2.msra.mxu0 0.0
  %941 = vmatprep.subr.mxu0 0.0
  %942 = vmatpush2.msra.mxu0 0.0
  %943 = vmatprep.subr.mxu0 0.0
  %944 = vmatpush2.msra.mxu0 0.0
  %945 = vmatprep.subr.mxu0 0.0
  %946 = vmatpush2.msra.mxu0 0.0
  %947 = vmatprep.subr.mxu0 0.0
  %948 = vmatpush2.msra.mxu0 0.0
  %949 = vmatprep.subr.mxu0 0.0
  %950 = vmatpush2.msra.mxu0 0.0
  %951 = vmatprep.subr.mxu0 0.0
  %952 = vmatpush2.msra.mxu0 0.0
  %953 = vmatprep.subr.mxu0 0.0
  %954 = vmatpush2.msra.mxu0 0.0
  %955 = vmatprep.subr.mxu0 0.0
  %956 = vmatpush2.msra.mxu0 0.0
  %957 = vmatprep.subr.mxu0 0.0
  %958 = vmatpush2.msra.mxu0 0.0
  %959 = vmatprep.subr.mxu0 0.0
  %960 = vmatpush2.msra.mxu0 0.0
  %961 = vmatprep.mubr.f32.mxu0 0.0
  %962 = vmatmul.mubr.f32.gmra.mxu0 %v895
  %v963 = vpop.f32.mrf.mxu0
  %v964 = vadd.f32 %v890, %v963
  %v965 = vpop.f32.mrf.mxu0
  %966 = vdwg.mxu0
  %v967 = vmul.f32 %v964, 1.442695
  %v968 = vpow.pop %v967
  %v969 = vld [vmem:[%s1] sm:$0x3]
  %971 = vrot.lane.b32.xlu0 %v968, 120
  %v972 = vpop.permute.xlu0 %971
  %v974 = vmul.f32 %v969, %v972
  %v975 = vadd.f32 %v964, %v974
  %v976 = vld [vmem:[%s9] sm:$0xff]
  %v977 = vld [vmem:[%s10] sm:$0xff]
  %v978 = vld [vmem:[%s10 + $0x8] sm:$0xff]
  %v979 = vld [vmem:[%s10 + $0x10] sm:$0xff]
  %v980 = vld [vmem:[%s10 + $0x18] sm:$0xff]
  %981 = vmatprep.subr.mxu0 0.0
  %982 = vmatpush1.msra.mxu0 0.0
  %983 = vmatprep.subr.mxu0 0.0
  %984 = vmatpush1.msra.mxu0 0.0
  %985 = vmatprep.subr.mxu0 0.0
  %986 = vmatpush1.msra.mxu0 0.0
  %987 = vmatprep.subr.mxu0 0.0
  %988 = vmatpush1.msra.mxu0 0.0
  %989 = vmatprep.subr.mxu0 0.0
  %990 = vmatpush1.msra.mxu0 0.0
  %991 = vmatprep.subr.mxu0 0.0
  %992 = vmatpush1.msra.mxu0 0.0
  %993 = vmatprep.subr.mxu0 0.0
  %994 = vmatpush1.msra.mxu0 0.0
  %995 = vmatprep.subr.mxu0 0.0
  %996 = vmatpush1.msra.mxu0 0.0
  %997 = vmatprep.subr.mxu0 0.0
  %998 = vmatpush1.msra.mxu0 0.0
  %999 = vmatprep.subr.mxu0 0.0
  %1000 = vmatpush1.msra.mxu0 0.0
  %1001 = vmatprep.subr.mxu0 0.0
  %1002 = vmatpush1.msra.mxu0 0.0
  %1003 = vmatprep.subr.mxu0 0.0
  %1004 = vmatpush1.msra.mxu0 0.0
  %1005 = vmatprep.subr.mxu0 0.0
  %1006 = vmatpush1.msra.mxu0 %v980
  %1007 = vmatprep.subr.mxu0 0.0
  %1008 = vmatpush1.msra.mxu0 %v979
  %1009 = vmatprep.subr.mxu0 0.0
  %1010 = vmatpush1.msra.mxu0 %v978
  %1011 = vmatprep.subr.mxu0 0.0
  %1012 = vmatpush1.msra.mxu0 %v977
  %1013 = vmatprep.subr.mxu0 0.0
  %1014 = vmatpush2.msra.mxu0 0.0
  %1015 = vmatprep.subr.mxu0 0.0
  %1016 = vmatpush2.msra.mxu0 0.0
  %1017 = vmatprep.subr.mxu0 0.0
  %1018 = vmatpush2.msra.mxu0 0.0
  %1019 = vmatprep.subr.mxu0 0.0
  %1020 = vmatpush2.msra.mxu0 0.0
  %1021 = vmatprep.subr.mxu0 0.0
  %1022 = vmatpush2.msra.mxu0 0.0
  %1023 = vmatprep.subr.mxu0 0.0
  %1024 = vmatpush2.msra.mxu0 0.0
  %1025 = vmatprep.subr.mxu0 0.0
  %1026 = vmatpush2.msra.mxu0 0.0
  %1027 = vmatprep.subr.mxu0 0.0
  %1028 = vmatpush2.msra.mxu0 0.0
  %1029 = vmatprep.subr.mxu0 0.0
  %1030 = vmatpush2.msra.mxu0 0.0
  %1031 = vmatprep.subr.mxu0 0.0
  %1032 = vmatpush2.msra.mxu0 0.0
  %1033 = vmatprep.subr.mxu0 0.0
  %1034 = vmatpush2.msra.mxu0 0.0
  %1035 = vmatprep.subr.mxu0 0.0
  %1036 = vmatpush2.msra.mxu0 0.0
  %1037 = vmatprep.subr.mxu0 0.0
  %1038 = vmatpush2.msra.mxu0 0.0
  %1039 = vmatprep.subr.mxu0 0.0
  %1040 = vmatpush2.msra.mxu0 0.0
  %1041 = vmatprep.subr.mxu0 0.0
  %1042 = vmatpush2.msra.mxu0 0.0
  %1043 = vmatprep.subr.mxu0 0.0
  %1044 = vmatpush2.msra.mxu0 0.0
  %1045 = vmatprep.mubr.f32.mxu0 0.0
  %1046 = vmatmul.mubr.f32.gmra.mxu0 %v629
  %v1047 = vpop.f32.mrf.mxu0
  %v1048 = vadd.f32 0.0, %v1047
  %v1049 = vpop.f32.mrf.mxu0
  %1050 = vdwg.mxu0
  %v1052 = vsel %vm612, %v975, 0
  %1054 = vmatprep.subr.mxu0 0.0
  %1055 = vmatpush1.msra.mxu0 0.0
  %1056 = vmatprep.subr.mxu0 0.0
  %1057 = vmatpush1.msra.mxu0 0.0
  %1058 = vmatprep.subr.mxu0 0.0
  %1059 = vmatpush1.msra.mxu0 0.0
  %1060 = vmatprep.subr.mxu0 0.0
  %1061 = vmatpush1.msra.mxu0 0.0
  %1062 = vmatprep.subr.mxu0 0.0
  %1063 = vmatpush1.msra.mxu0 0.0
  %1064 = vmatprep.subr.mxu0 0.0
  %1065 = vmatpush1.msra.mxu0 0.0
  %1066 = vmatprep.subr.mxu0 0.0
  %1067 = vmatpush1.msra.mxu0 0.0
  %1068 = vmatprep.subr.mxu0 0.0
  %1069 = vmatpush1.msra.mxu0 0.0
  %1070 = vmatprep.subr.mxu0 0.0
  %1071 = vmatpush1.msra.mxu0 0.0
  %1072 = vmatprep.subr.mxu0 0.0
  %1073 = vmatpush1.msra.mxu0 0.0
  %1074 = vmatprep.subr.mxu0 0.0
  %1075 = vmatpush1.msra.mxu0 0.0
  %1076 = vmatprep.subr.mxu0 0.0
  %1077 = vmatpush1.msra.mxu0 0.0
  %1078 = vmatprep.subr.mxu0 0.0
  %1079 = vmatpush1.msra.mxu0 0.0
  %1080 = vmatprep.subr.mxu0 0.0
  %1081 = vmatpush1.msra.mxu0 0.0
  %1082 = vmatprep.subr.mxu0 0.0
  %1083 = vmatpush1.msra.mxu0 0.0
  %1084 = vmatprep.subr.mxu0 0.0
  %1085 = vmatpush1.msra.mxu0 %v976
  %1086 = vmatprep.subr.mxu0 0.0
  %1087 = vmatpush2.msra.mxu0 0.0
  %1088 = vmatprep.subr.mxu0 0.0
  %1089 = vmatpush2.msra.mxu0 0.0
  %1090 = vmatprep.subr.mxu0 0.0
  %1091 = vmatpush2.msra.mxu0 0.0
  %1092 = vmatprep.subr.mxu0 0.0
  %1093 = vmatpush2.msra.mxu0 0.0
  %1094 = vmatprep.subr.mxu0 0.0
  %1095 = vmatpush2.msra.mxu0 0.0
  %1096 = vmatprep.subr.mxu0 0.0
  %1097 = vmatpush2.msra.mxu0 0.0
  %1098 = vmatprep.subr.mxu0 0.0
  %1099 = vmatpush2.msra.mxu0 0.0
  %1100 = vmatprep.subr.mxu0 0.0
  %1101 = vmatpush2.msra.mxu0 0.0
  %1102 = vmatprep.subr.mxu0 0.0
  %1103 = vmatpush2.msra.mxu0 0.0
  %1104 = vmatprep.subr.mxu0 0.0
  %1105 = vmatpush2.msra.mxu0 0.0
  %1106 = vmatprep.subr.mxu0 0.0
  %1107 = vmatpush2.msra.mxu0 0.0
  %1108 = vmatprep.subr.mxu0 0.0
  %1109 = vmatpush2.msra.mxu0 0.0
  %1110 = vmatprep.subr.mxu0 0.0
  %1111 = vmatpush2.msra.mxu0 0.0
  %1112 = vmatprep.subr.mxu0 0.0
  %1113 = vmatpush2.msra.mxu0 0.0
  %1114 = vmatprep.subr.mxu0 0.0
  %1115 = vmatpush2.msra.mxu0 0.0
  %1116 = vmatprep.subr.mxu0 0.0
  %1117 = vmatpush2.msra.mxu0 0.0
  %1118 = vmatprep.mubr.f32.mxu0 0.0
  %1119 = vmatmul.mubr.f32.gmra.mxu0 %v1052
  %v1120 = vpop.f32.mrf.mxu0
  %v1121 = vadd.f32 %v1048, %v1120
  %v1122 = vpop.f32.mrf.mxu0
  %1123 = vdwg.mxu0
  %v1124 = vld [vmem:[%s11] sm:$0x1]
  %v1126 = vlaneseq
  %v1127 = vshrl.u32 %v1126, 7
  %v1128 = vsub.s32 0, %v1127
  %v1129 = vrot.slane %v1124, %v1128
  %v1131 = vadd.f32 %v1121, %v1129
  %v1132 = vxor.u32 %v1131, 2147483648
  %v1133 = vmul.f32 %v1132, 1.442695
  %v1134 = vpow.pop %v1133
  %v1135 = vadd.f32 %v1134, 1.0
  %v1136 = vrcp.pop %v1135
  %v1137 = vmul.f32 1.0, %v1136
  %v1138 = vmul.f32 %v1137, 0.0
  %v1139 = vtanh.pop %v1131
  %1141 = vrot.lane.b32.xlu0 %v1139, 64
  %v1142 = vpop.permute.xlu0 %1141
  %v1144 = vmul.f32 %v1137, %v1142
  %1146 = vrot.lane.b32.xlu0 %v1144, 32
  %v1147 = vpop.permute.xlu0 %1146
  %v1149 = vadd.f32 %v1138, %v1147
  %v1150 = vtanh.pop %v1149
  %1152 = vrot.lane.b32.xlu0 %v1150, 64
  %v1153 = vpop.permute.xlu0 %1152
  %v1155 = vmul.f32 %v1137, %v1153
  %v1156 = vld [vmem:[%s12] sm:$0xff]
  %v1157 = vld [vmem:[%s12 + $0x8] sm:$0xff]
  %v1158 = vld [vmem:[%s12 + $0x10] sm:$0xff]
  %v1159 = vld [vmem:[%s12 + $0x18] sm:$0xff]
  %v1160 = vld [vmem:[%s13] sm:$0x1]
  %v1162 = vlaneseq
  %v1163 = vshrl.u32 %v1162, 7
  %v1164 = vsub.s32 0, %v1163
  %v1165 = vrot.slane %v1160, %v1164
  %1168 = vrot.lane.b32.xlu0 %v1155, 32
  %v1169 = vpop.permute.xlu0 %1168
  %v1170 = vsel %vm627, %v1169, 0
  %1172 = vmatprep.subr.mxu0 0.0
  %1173 = vmatpush1.msra.mxu0 0.0
  %1174 = vmatprep.subr.mxu0 0.0
  %1175 = vmatpush1.msra.mxu0 0.0
  %1176 = vmatprep.subr.mxu0 0.0
  %1177 = vmatpush1.msra.mxu0 0.0
  %1178 = vmatprep.subr.mxu0 0.0
  %1179 = vmatpush1.msra.mxu0 0.0
  %1180 = vmatprep.subr.mxu0 0.0
  %1181 = vmatpush1.msra.mxu0 0.0
  %1182 = vmatprep.subr.mxu0 0.0
  %1183 = vmatpush1.msra.mxu0 0.0
  %1184 = vmatprep.subr.mxu0 0.0
  %1185 = vmatpush1.msra.mxu0 0.0
  %1186 = vmatprep.subr.mxu0 0.0
  %1187 = vmatpush1.msra.mxu0 0.0
  %1188 = vmatprep.subr.mxu0 0.0
  %1189 = vmatpush1.msra.mxu0 0.0
  %1190 = vmatprep.subr.mxu0 0.0
  %1191 = vmatpush1.msra.mxu0 0.0
  %1192 = vmatprep.subr.mxu0 0.0
  %1193 = vmatpush1.msra.mxu0 0.0
  %1194 = vmatprep.subr.mxu0 0.0
  %1195 = vmatpush1.msra.mxu0 0.0
  %1196 = vmatprep.subr.mxu0 0.0
  %1197 = vmatpush1.msra.mxu0 %v1159
  %1198 = vmatprep.subr.mxu0 0.0
  %1199 = vmatpush1.msra.mxu0 %v1158
  %1200 = vmatprep.subr.mxu0 0.0
  %1201 = vmatpush1.msra.mxu0 %v1157
  %1202 = vmatprep.subr.mxu0 0.0
  %1203 = vmatpush1.msra.mxu0 %v1156
  %1204 = vmatprep.subr.mxu0 0.0
  %1205 = vmatpush2.msra.mxu0 0.0
  %1206 = vmatprep.subr.mxu0 0.0
  %1207 = vmatpush2.msra.mxu0 0.0
  %1208 = vmatprep.subr.mxu0 0.0
  %1209 = vmatpush2.msra.mxu0 0.0
  %1210 = vmatprep.subr.mxu0 0.0
  %1211 = vmatpush2.msra.mxu0 0.0
  %1212 = vmatprep.subr.mxu0 0.0
  %1213 = vmatpush2.msra.mxu0 0.0
  %1214 = vmatprep.subr.mxu0 0.0
  %1215 = vmatpush2.msra.mxu0 0.0
  %1216 = vmatprep.subr.mxu0 0.0
  %1217 = vmatpush2.msra.mxu0 0.0
  %1218 = vmatprep.subr.mxu0 0.0
  %1219 = vmatpush2.msra.mxu0 0.0
  %1220 = vmatprep.subr.mxu0 0.0
  %1221 = vmatpush2.msra.mxu0 0.0
  %1222 = vmatprep.subr.mxu0 0.0
  %1223 = vmatpush2.msra.mxu0 0.0
  %1224 = vmatprep.subr.mxu0 0.0
  %1225 = vmatpush2.msra.mxu0 0.0
  %1226 = vmatprep.subr.mxu0 0.0
  %1227 = vmatpush2.msra.mxu0 0.0
  %1228 = vmatprep.subr.mxu0 0.0
  %1229 = vmatpush2.msra.mxu0 0.0
  %1230 = vmatprep.subr.mxu0 0.0
  %1231 = vmatpush2.msra.mxu0 0.0
  %1232 = vmatprep.subr.mxu0 0.0
  %1233 = vmatpush2.msra.mxu0 0.0
  %1234 = vmatprep.subr.mxu0 0.0
  %1235 = vmatpush2.msra.mxu0 0.0
  %1236 = vmatprep.mubr.f32.mxu0 0.0
  %1237 = vmatmul.mubr.f32.gmra.mxu0 %v1170
  %v1238 = vpop.f32.mrf.mxu0
  %v1239 = vadd.f32 %v1165, %v1238
  %v1240 = vpop.f32.mrf.mxu0
  %1241 = vdwg.mxu0
  %1242 = vrot.lane.b32.xlu0 %v968, 8
  %v1243 = vpop.permute.xlu0 %1242
  %1246 = vrot.lane.b32.xlu0 %v1239, 24
  %v1247 = vpop.permute.xlu0 %1246
  %v1249 = vsel %vm272, %v964, %v1243
  %vm1250 = vcmask 195584
  %v1251 = vsel %vm1250, %v1249, %v1247
  %vm1252 = vcmask 277504
  %v1253 = vsel %vm1252, %v1251, 0.0
  %1254 = vst [vmem:[%s14] sm:$0x3] %v1253
  %v1255 = vadd.f32 %v1239, 1.0
  %v1256 = vmul.f32 %v1255, 8.5
  %v1257 = vmul.f32 %v1239, 1.442695
  %v1258 = vpow.pop %v1257
  %v1259 = vmul.f32 %v1258, 5.0
  %v1262 = vunpack.c.l.s4 1966171168
  %v1263 = vunpack.c.0.s8 %v1262
  %v1264 = vlaneseq
  %v1265 = vshrl.u32 %v1264, 7
  %v1266 = vsub.s32 %v1263, %v1265
  %v1267 = vrot.slane %v1256, %v1266
  %v1268 = vcombine.high %v1267, %v1267
  %v1270 = vunpack.c.l.s4 1966171168
  %v1271 = vunpack.c.0.s8 %v1270
  %v1272 = vlaneseq
  %v1273 = vshrl.u32 %v1272, 7
  %v1274 = vsub.s32 %v1271, %v1273
  %v1275 = vrot.slane %v1267, %v1274
  %v1277 = vunpack.c.l.s4 1966171168
  %v1278 = vunpack.c.0.s8 %v1277
  %v1279 = vlaneseq
  %v1280 = vshrl.u32 %v1279, 7
  %v1281 = vsub.s32 %v1278, %v1280
  %v1282 = vrot.slane %v1268, %v1281
  %v1285 = vunpack.c.l.s4 1966171168
  %v1286 = vunpack.c.0.s8 %v1285
  %v1287 = vlaneseq
  %v1288 = vshrl.u32 %v1287, 7
  %v1289 = vsub.s32 %v1286, %v1288
  %v1290 = vrot.slane %v1259, %v1289
  %v1291 = vcombine.high %v1290, %v1290
  %v1293 = vunpack.c.l.s4 1966171168
  %v1294 = vunpack.c.0.s8 %v1293
  %v1295 = vlaneseq
  %v1296 = vshrl.u32 %v1295, 7
  %v1297 = vsub.s32 %v1294, %v1296
  %v1298 = vrot.slane %v1290, %v1297
  %v1300 = vunpack.c.l.s4 1966171168
  %v1301 = vunpack.c.0.s8 %v1300
  %v1302 = vlaneseq
  %v1303 = vshrl.u32 %v1302, 7
  %v1304 = vsub.s32 %v1301, %v1303
  %v1305 = vrot.slane %v1291, %v1304
  %v1308 = vunpack.c.l.s4 1966171168
  %v1309 = vunpack.c.0.s8 %v1308
  %v1310 = vlaneseq
  %v1311 = vshrl.u32 %v1310, 7
  %v1312 = vsub.s32 %v1309, %v1311
  %v1313 = vrot.slane %v1258, %v1312
  %v1314 = vcombine.high %v1313, %v1313
  %v1316 = vunpack.c.l.s4 1966171168
  %v1317 = vunpack.c.0.s8 %v1316
  %v1318 = vlaneseq
  %v1319 = vshrl.u32 %v1318, 7
  %v1320 = vsub.s32 %v1317, %v1319
  %v1321 = vrot.slane %v1313, %v1320
  %v1323 = vunpack.c.l.s4 1966171168
  %v1324 = vunpack.c.0.s8 %v1323
  %v1325 = vlaneseq
  %v1326 = vshrl.u32 %v1325, 7
  %v1327 = vsub.s32 %v1324, %v1326
  %v1328 = vrot.slane %v1314, %v1327
  %v1331 = vlaneseq
  %v1332 = vshrl.u32 %v1331, 7
  %v1333 = vsub.s32 0, %v1332
  %v1334 = vrot.slane %v1298, %v1333
  %v1335 = vlaneseq
  %v1336 = vshrl.u32 %v1335, 7
  %v1337 = vsub.s32 0, %v1336
  %v1338 = vrot.slane %v1305, %v1337
  %v1341 = vmul.f32 %v140, %v1334
  %v1342 = vmul.f32 %v140, %v1338
  %v1343 = vlaneseq
  %v1344 = vshrl.u32 %v1343, 7
  %v1345 = vsub.s32 0, %v1344
  %v1346 = vrot.slane %v1275, %v1345
  %v1347 = vlaneseq
  %v1348 = vshrl.u32 %v1347, 7
  %v1349 = vsub.s32 0, %v1348
  %v1350 = vrot.slane %v1282, %v1349
  %1355 = vrot.lane.b32.xlu0 %v1341, 125
  %v1356 = vpop.permute.xlu0 %1355
  %1357 = vrot.lane.b32.xlu0 %v1342, 125
  %v1358 = vpop.permute.xlu0 %1357
  %v1361 = vadd.f32 %v1346, %v1356
  %v1362 = vadd.f32 %v1350, %v1358
  %1363 = vrot.lane.b32.xlu0 %v1341, 126
  %v1364 = vpop.permute.xlu0 %1363
  %1365 = vrot.lane.b32.xlu0 %v1342, 126
  %v1366 = vpop.permute.xlu0 %1365
  %v1369 = vadd.f32 %v1346, %v1364
  %v1370 = vadd.f32 %v1350, %v1366
  %1372 = vset.pattern.permute.xlu0 42
  %1373 = vperm.xlu0 %1372, %v1361
  %v1374 = vpop.permute.xlu0 %1373
  %1377 = vset.pattern.permute.xlu0 42
  %1378 = vperm.xlu0 %1377, %v1362
  %v1379 = vpop.permute.xlu0 %1378
  %v1381 = vsub.f32 %v52, %v1374
  %v1382 = vsub.f32 %v52, %v1379
  %v1383 = vmul.f32 %v1381, %v1381
  %v1384 = vmul.f32 %v1382, %v1382
  %v1385 = vsub.f32 0.0, %v1383
  %v1386 = vsub.f32 0.0, %v1384
  %v1387 = vmul.f32 %v1321, 2.0
  %v1388 = vmul.f32 %v1328, 2.0
  %v1391 = vlaneseq
  %v1392 = vshrl.u32 %v1391, 7
  %v1393 = vsub.s32 0, %v1392
  %v1394 = vrot.slane %v1387, %v1393
  %v1395 = vlaneseq
  %v1396 = vshrl.u32 %v1395, 7
  %v1397 = vsub.s32 0, %v1396
  %v1398 = vrot.slane %v1388, %v1397
  %1399 = vset.pattern.permute.xlu0 44
  %1400 = vperm.xlu0 %1399, %v1394
  %v1401 = vpop.permute.xlu0 %1400
  %1403 = vset.pattern.permute.xlu0 44
  %1404 = vperm.xlu0 %1403, %v1398
  %v1405 = vpop.permute.xlu0 %1404
  %v1407 = vrcp.pop %v1401
  %v1408 = vmul.f32 %v1385, %v1407
  %v1409 = vrcp.pop %v1405
  %v1410 = vmul.f32 %v1386, %v1409
  %v1411 = vmul.f32 %v1408, 1.442695
  %v1412 = vpow.pop %v1411
  %v1413 = vmul.f32 %v1410, 1.442695
  %v1414 = vpow.pop %v1413
  %1416 = vset.pattern.permute.xlu0 43
  %1417 = vperm.xlu0 %1416, %v1369
  %v1418 = vpop.permute.xlu0 %1417
  %1421 = vset.pattern.permute.xlu0 43
  %1422 = vperm.xlu0 %1421, %v1370
  %v1423 = vpop.permute.xlu0 %1422
  %v1425 = vsub.f32 %v52, %v1418
  %v1426 = vsub.f32 %v52, %v1423
  %v1427 = vmul.f32 %v1425, %v1425
  %v1428 = vmul.f32 %v1426, %v1426
  %v1429 = vsub.f32 0.0, %v1427
  %v1430 = vsub.f32 0.0, %v1428
  %v1431 = vmul.f32 %v1429, %v1407
  %v1432 = vmul.f32 %v1430, %v1409
  %v1433 = vmul.f32 %v1431, 1.442695
  %v1434 = vpow.pop %v1433
  %v1435 = vmul.f32 %v1432, 1.442695
  %v1436 = vpow.pop %v1435
  %v1437 = vsel %vm247, %v1412, 0.0
  %1438 = vadd.xlane.f32.xlu0 %v1437
  %v1439 = vpop.xlane.xlu0 %1438
  %v1440 = vsel %vm247, %v1414, 0.0
  %1441 = vadd.xlane.f32.xlu0 %v1440
  %v1442 = vpop.xlane.xlu0 %1441
  %v1443 = vadd.f32 %v1439, 1e-08
  %v1444 = vadd.f32 %v1442, 1e-08
  %v1445 = vrcp.pop %v1443
  %v1446 = vmul.f32 %v1412, %v1445
  %v1447 = vrcp.pop %v1444
  %v1448 = vmul.f32 %v1414, %v1447
  %v1449 = vsel %vm247, %v1434, 0.0
  %1450 = vadd.xlane.f32.xlu0 %v1449
  %v1451 = vpop.xlane.xlu0 %1450
  %v1452 = vsel %vm247, %v1436, 0.0
  %1453 = vadd.xlane.f32.xlu0 %v1452
  %v1454 = vpop.xlane.xlu0 %1453
  %v1455 = vadd.f32 %v1451, 1e-08
  %v1456 = vadd.f32 %v1454, 1e-08
  %v1457 = vrcp.pop %v1455
  %v1458 = vmul.f32 %v1434, %v1457
  %v1459 = vrcp.pop %v1456
  %v1460 = vmul.f32 %v1436, %v1459
  %v1462 = vsel %vm272, %v1446, 0
  %1464 = vmatprep.subr.mxu0 0.0
  %1465 = vmatpush1.xpose.msra.mxu0 0.0
  %1466 = vmatprep.subr.mxu0 0.0
  %1467 = vmatpush1.xpose.msra.mxu0 0.0
  %1468 = vmatprep.subr.mxu0 0.0
  %1469 = vmatpush1.xpose.msra.mxu0 0.0
  %1470 = vmatprep.subr.mxu0 0.0
  %1471 = vmatpush1.xpose.msra.mxu0 0.0
  %1472 = vmatprep.subr.mxu0 0.0
  %1473 = vmatpush1.xpose.msra.mxu0 0.0
  %1474 = vmatprep.subr.mxu0 0.0
  %1475 = vmatpush1.xpose.msra.mxu0 0.0
  %1476 = vmatprep.subr.mxu0 0.0
  %1477 = vmatpush1.xpose.msra.mxu0 0.0
  %1478 = vmatprep.subr.mxu0 0.0
  %1479 = vmatpush1.xpose.msra.mxu0 0.0
  %1480 = vmatprep.subr.mxu0 0.0
  %1481 = vmatpush1.xpose.msra.mxu0 0.0
  %1482 = vmatprep.subr.mxu0 0.0
  %1483 = vmatpush1.xpose.msra.mxu0 0.0
  %1484 = vmatprep.subr.mxu0 0.0
  %1485 = vmatpush1.xpose.msra.mxu0 0.0
  %1486 = vmatprep.subr.mxu0 0.0
  %1487 = vmatpush1.xpose.msra.mxu0 0.0
  %1488 = vmatprep.subr.mxu0 0.0
  %1489 = vmatpush1.xpose.msra.mxu0 0.0
  %1490 = vmatprep.subr.mxu0 0.0
  %1491 = vmatpush1.xpose.msra.mxu0 0.0
  %1492 = vmatprep.subr.mxu0 0.0
  %1493 = vmatpush1.xpose.msra.mxu0 0.0
  %1494 = vmatprep.subr.mxu0 0.0
  %1495 = vmatpush1.xpose.msra.mxu0 %v1462
  %1496 = vmatprep.subr.mxu0 0.0
  %1497 = vmatpush2.xpose.msra.mxu0 0.0
  %1498 = vmatprep.subr.mxu0 0.0
  %1499 = vmatpush2.xpose.msra.mxu0 0.0
  %1500 = vmatprep.subr.mxu0 0.0
  %1501 = vmatpush2.xpose.msra.mxu0 0.0
  %1502 = vmatprep.subr.mxu0 0.0
  %1503 = vmatpush2.xpose.msra.mxu0 0.0
  %1504 = vmatprep.subr.mxu0 0.0
  %1505 = vmatpush2.xpose.msra.mxu0 0.0
  %1506 = vmatprep.subr.mxu0 0.0
  %1507 = vmatpush2.xpose.msra.mxu0 0.0
  %1508 = vmatprep.subr.mxu0 0.0
  %1509 = vmatpush2.xpose.msra.mxu0 0.0
  %1510 = vmatprep.subr.mxu0 0.0
  %1511 = vmatpush2.xpose.msra.mxu0 0.0
  %1512 = vmatprep.subr.mxu0 0.0
  %1513 = vmatpush2.xpose.msra.mxu0 0.0
  %1514 = vmatprep.subr.mxu0 0.0
  %1515 = vmatpush2.xpose.msra.mxu0 0.0
  %1516 = vmatprep.subr.mxu0 0.0
  %1517 = vmatpush2.xpose.msra.mxu0 0.0
  %1518 = vmatprep.subr.mxu0 0.0
  %1519 = vmatpush2.xpose.msra.mxu0 0.0
  %1520 = vmatprep.subr.mxu0 0.0
  %1521 = vmatpush2.xpose.msra.mxu0 0.0
  %1522 = vmatprep.subr.mxu0 0.0
  %1523 = vmatpush2.xpose.msra.mxu0 0.0
  %1524 = vmatprep.subr.mxu0 0.0
  %1525 = vmatpush2.xpose.msra.mxu0 0.0
  %1526 = vmatprep.subr.mxu0 0.0
  %1527 = vmatpush2.xpose.msra.mxu0 0.0
  %1528 = vmatprep.mubr.f32.mxu0 0.0
  %1529 = vmatmul.mubr.f32.gmra.mxu0 %v274
  %v1530 = vpop.f32.mrf.mxu0
  %v1531 = vadd.f32 0.0, %v1530
  %v1532 = vpop.f32.mrf.mxu0
  %1533 = vmatprep.mubr.f32.mxu0 0.0
  %1534 = vmatmul.mubr.f32.gmra.mxu0 %v277
  %v1535 = vpop.f32.mrf.mxu0
  %v1536 = vadd.f32 0.0, %v1535
  %v1537 = vpop.f32.mrf.mxu0
  %1538 = vdwg.mxu0
  %v1540 = vsel %vm272, %v1448, 0
  %1542 = vmatprep.subr.mxu0 0.0
  %1543 = vmatpush1.xpose.msra.mxu0 0.0
  %1544 = vmatprep.subr.mxu0 0.0
  %1545 = vmatpush1.xpose.msra.mxu0 0.0
  %1546 = vmatprep.subr.mxu0 0.0
  %1547 = vmatpush1.xpose.msra.mxu0 0.0
  %1548 = vmatprep.subr.mxu0 0.0
  %1549 = vmatpush1.xpose.msra.mxu0 0.0
  %1550 = vmatprep.subr.mxu0 0.0
  %1551 = vmatpush1.xpose.msra.mxu0 0.0
  %1552 = vmatprep.subr.mxu0 0.0
  %1553 = vmatpush1.xpose.msra.mxu0 0.0
  %1554 = vmatprep.subr.mxu0 0.0
  %1555 = vmatpush1.xpose.msra.mxu0 0.0
  %1556 = vmatprep.subr.mxu0 0.0
  %1557 = vmatpush1.xpose.msra.mxu0 0.0
  %1558 = vmatprep.subr.mxu0 0.0
  %1559 = vmatpush1.xpose.msra.mxu0 0.0
  %1560 = vmatprep.subr.mxu0 0.0
  %1561 = vmatpush1.xpose.msra.mxu0 0.0
  %1562 = vmatprep.subr.mxu0 0.0
  %1563 = vmatpush1.xpose.msra.mxu0 0.0
  %1564 = vmatprep.subr.mxu0 0.0
  %1565 = vmatpush1.xpose.msra.mxu0 0.0
  %1566 = vmatprep.subr.mxu0 0.0
  %1567 = vmatpush1.xpose.msra.mxu0 0.0
  %1568 = vmatprep.subr.mxu0 0.0
  %1569 = vmatpush1.xpose.msra.mxu0 0.0
  %1570 = vmatprep.subr.mxu0 0.0
  %1571 = vmatpush1.xpose.msra.mxu0 0.0
  %1572 = vmatprep.subr.mxu0 0.0
  %1573 = vmatpush1.xpose.msra.mxu0 %v1540
  %1574 = vmatprep.subr.mxu0 0.0
  %1575 = vmatpush2.xpose.msra.mxu0 0.0
  %1576 = vmatprep.subr.mxu0 0.0
  %1577 = vmatpush2.xpose.msra.mxu0 0.0
  %1578 = vmatprep.subr.mxu0 0.0
  %1579 = vmatpush2.xpose.msra.mxu0 0.0
  %1580 = vmatprep.subr.mxu0 0.0
  %1581 = vmatpush2.xpose.msra.mxu0 0.0
  %1582 = vmatprep.subr.mxu0 0.0
  %1583 = vmatpush2.xpose.msra.mxu0 0.0
  %1584 = vmatprep.subr.mxu0 0.0
  %1585 = vmatpush2.xpose.msra.mxu0 0.0
  %1586 = vmatprep.subr.mxu0 0.0
  %1587 = vmatpush2.xpose.msra.mxu0 0.0
  %1588 = vmatprep.subr.mxu0 0.0
  %1589 = vmatpush2.xpose.msra.mxu0 0.0
  %1590 = vmatprep.subr.mxu0 0.0
  %1591 = vmatpush2.xpose.msra.mxu0 0.0
  %1592 = vmatprep.subr.mxu0 0.0
  %1593 = vmatpush2.xpose.msra.mxu0 0.0
  %1594 = vmatprep.subr.mxu0 0.0
  %1595 = vmatpush2.xpose.msra.mxu0 0.0
  %1596 = vmatprep.subr.mxu0 0.0
  %1597 = vmatpush2.xpose.msra.mxu0 0.0
  %1598 = vmatprep.subr.mxu0 0.0
  %1599 = vmatpush2.xpose.msra.mxu0 0.0
  %1600 = vmatprep.subr.mxu0 0.0
  %1601 = vmatpush2.xpose.msra.mxu0 0.0
  %1602 = vmatprep.subr.mxu0 0.0
  %1603 = vmatpush2.xpose.msra.mxu0 0.0
  %1604 = vmatprep.subr.mxu0 0.0
  %1605 = vmatpush2.xpose.msra.mxu0 0.0
  %1606 = vmatprep.mubr.f32.mxu0 0.0
  %1607 = vmatmul.mubr.f32.gmra.mxu0 %v358
  %v1608 = vpop.f32.mrf.mxu0
  %v1609 = vadd.f32 0.0, %v1608
  %v1610 = vpop.f32.mrf.mxu0
  %1611 = vmatprep.mubr.f32.mxu0 0.0
  %1612 = vmatmul.mubr.f32.gmra.mxu0 %v361
  %v1613 = vpop.f32.mrf.mxu0
  %v1614 = vadd.f32 0.0, %v1613
  %v1615 = vpop.f32.mrf.mxu0
  %1616 = vdwg.mxu0
  %v1618 = vsel %vm272, %v1458, 0
  %1620 = vmatprep.subr.mxu0 0.0
  %1621 = vmatpush1.msra.mxu0 0.0
  %1622 = vmatprep.subr.mxu0 0.0
  %1623 = vmatpush1.msra.mxu0 0.0
  %1624 = vmatprep.subr.mxu0 0.0
  %1625 = vmatpush1.msra.mxu0 0.0
  %1626 = vmatprep.subr.mxu0 0.0
  %1627 = vmatpush1.msra.mxu0 0.0
  %1628 = vmatprep.subr.mxu0 0.0
  %1629 = vmatpush1.msra.mxu0 0.0
  %1630 = vmatprep.subr.mxu0 0.0
  %1631 = vmatpush1.msra.mxu0 0.0
  %1632 = vmatprep.subr.mxu0 0.0
  %1633 = vmatpush1.msra.mxu0 0.0
  %1634 = vmatprep.subr.mxu0 0.0
  %1635 = vmatpush1.msra.mxu0 0.0
  %1636 = vmatprep.subr.mxu0 0.0
  %1637 = vmatpush1.msra.mxu0 0.0
  %1638 = vmatprep.subr.mxu0 0.0
  %1639 = vmatpush1.msra.mxu0 0.0
  %1640 = vmatprep.subr.mxu0 0.0
  %1641 = vmatpush1.msra.mxu0 0.0
  %1642 = vmatprep.subr.mxu0 0.0
  %1643 = vmatpush1.msra.mxu0 0.0
  %1644 = vmatprep.subr.mxu0 0.0
  %1645 = vmatpush1.msra.mxu0 0.0
  %1646 = vmatprep.subr.mxu0 0.0
  %1647 = vmatpush1.msra.mxu0 0.0
  %1648 = vmatprep.subr.mxu0 0.0
  %1649 = vmatpush1.msra.mxu0 %v1536
  %1650 = vmatprep.subr.mxu0 0.0
  %1651 = vmatpush1.msra.mxu0 %v1531
  %1652 = vmatprep.subr.mxu0 0.0
  %1653 = vmatpush2.msra.mxu0 0.0
  %1654 = vmatprep.subr.mxu0 0.0
  %1655 = vmatpush2.msra.mxu0 0.0
  %1656 = vmatprep.subr.mxu0 0.0
  %1657 = vmatpush2.msra.mxu0 0.0
  %1658 = vmatprep.subr.mxu0 0.0
  %1659 = vmatpush2.msra.mxu0 0.0
  %1660 = vmatprep.subr.mxu0 0.0
  %1661 = vmatpush2.msra.mxu0 0.0
  %1662 = vmatprep.subr.mxu0 0.0
  %1663 = vmatpush2.msra.mxu0 0.0
  %1664 = vmatprep.subr.mxu0 0.0
  %1665 = vmatpush2.msra.mxu0 0.0
  %1666 = vmatprep.subr.mxu0 0.0
  %1667 = vmatpush2.msra.mxu0 0.0
  %1668 = vmatprep.subr.mxu0 0.0
  %1669 = vmatpush2.msra.mxu0 0.0
  %1670 = vmatprep.subr.mxu0 0.0
  %1671 = vmatpush2.msra.mxu0 0.0
  %1672 = vmatprep.subr.mxu0 0.0
  %1673 = vmatpush2.msra.mxu0 0.0
  %1674 = vmatprep.subr.mxu0 0.0
  %1675 = vmatpush2.msra.mxu0 0.0
  %1676 = vmatprep.subr.mxu0 0.0
  %1677 = vmatpush2.msra.mxu0 0.0
  %1678 = vmatprep.subr.mxu0 0.0
  %1679 = vmatpush2.msra.mxu0 0.0
  %1680 = vmatprep.subr.mxu0 0.0
  %1681 = vmatpush2.msra.mxu0 0.0
  %1682 = vmatprep.subr.mxu0 0.0
  %1683 = vmatpush2.msra.mxu0 0.0
  %1684 = vmatprep.mubr.f32.mxu0 0.0
  %1685 = vmatmul.mubr.f32.gmra.mxu0 %v1618
  %v1686 = vpop.f32.mrf.mxu0
  %v1687 = vadd.f32 0.0, %v1686
  %v1688 = vpop.f32.mrf.mxu0
  %1689 = vdwg.mxu0
  %v1691 = vsel %vm272, %v1460, 0
  %1693 = vmatprep.subr.mxu0 0.0
  %1694 = vmatpush1.msra.mxu0 0.0
  %1695 = vmatprep.subr.mxu0 0.0
  %1696 = vmatpush1.msra.mxu0 0.0
  %1697 = vmatprep.subr.mxu0 0.0
  %1698 = vmatpush1.msra.mxu0 0.0
  %1699 = vmatprep.subr.mxu0 0.0
  %1700 = vmatpush1.msra.mxu0 0.0
  %1701 = vmatprep.subr.mxu0 0.0
  %1702 = vmatpush1.msra.mxu0 0.0
  %1703 = vmatprep.subr.mxu0 0.0
  %1704 = vmatpush1.msra.mxu0 0.0
  %1705 = vmatprep.subr.mxu0 0.0
  %1706 = vmatpush1.msra.mxu0 0.0
  %1707 = vmatprep.subr.mxu0 0.0
  %1708 = vmatpush1.msra.mxu0 0.0
  %1709 = vmatprep.subr.mxu0 0.0
  %1710 = vmatpush1.msra.mxu0 0.0
  %1711 = vmatprep.subr.mxu0 0.0
  %1712 = vmatpush1.msra.mxu0 0.0
  %1713 = vmatprep.subr.mxu0 0.0
  %1714 = vmatpush1.msra.mxu0 0.0
  %1715 = vmatprep.subr.mxu0 0.0
  %1716 = vmatpush1.msra.mxu0 0.0
  %1717 = vmatprep.subr.mxu0 0.0
  %1718 = vmatpush1.msra.mxu0 0.0
  %1719 = vmatprep.subr.mxu0 0.0
  %1720 = vmatpush1.msra.mxu0 0.0
  %1721 = vmatprep.subr.mxu0 0.0
  %1722 = vmatpush1.msra.mxu0 %v1614
  %1723 = vmatprep.subr.mxu0 0.0
  %1724 = vmatpush1.msra.mxu0 %v1609
  %1725 = vmatprep.subr.mxu0 0.0
  %1726 = vmatpush2.msra.mxu0 0.0
  %1727 = vmatprep.subr.mxu0 0.0
  %1728 = vmatpush2.msra.mxu0 0.0
  %1729 = vmatprep.subr.mxu0 0.0
  %1730 = vmatpush2.msra.mxu0 0.0
  %1731 = vmatprep.subr.mxu0 0.0
  %1732 = vmatpush2.msra.mxu0 0.0
  %1733 = vmatprep.subr.mxu0 0.0
  %1734 = vmatpush2.msra.mxu0 0.0
  %1735 = vmatprep.subr.mxu0 0.0
  %1736 = vmatpush2.msra.mxu0 0.0
  %1737 = vmatprep.subr.mxu0 0.0
  %1738 = vmatpush2.msra.mxu0 0.0
  %1739 = vmatprep.subr.mxu0 0.0
  %1740 = vmatpush2.msra.mxu0 0.0
  %1741 = vmatprep.subr.mxu0 0.0
  %1742 = vmatpush2.msra.mxu0 0.0
  %1743 = vmatprep.subr.mxu0 0.0
  %1744 = vmatpush2.msra.mxu0 0.0
  %1745 = vmatprep.subr.mxu0 0.0
  %1746 = vmatpush2.msra.mxu0 0.0
  %1747 = vmatprep.subr.mxu0 0.0
  %1748 = vmatpush2.msra.mxu0 0.0
  %1749 = vmatprep.subr.mxu0 0.0
  %1750 = vmatpush2.msra.mxu0 0.0
  %1751 = vmatprep.subr.mxu0 0.0
  %1752 = vmatpush2.msra.mxu0 0.0
  %1753 = vmatprep.subr.mxu0 0.0
  %1754 = vmatpush2.msra.mxu0 0.0
  %1755 = vmatprep.subr.mxu0 0.0
  %1756 = vmatpush2.msra.mxu0 0.0
  %1757 = vmatprep.mubr.f32.mxu0 0.0
  %1758 = vmatmul.mubr.f32.gmra.mxu0 %v1691
  %v1759 = vpop.f32.mrf.mxu0
  %v1760 = vadd.f32 0.0, %v1759
  %v1761 = vpop.f32.mrf.mxu0
  %1762 = vdwg.mxu0
  %v1765 = vrot.slane %v1760, 7
  %v1766 = vsel %vm590, %v1765, %v1687
  %v1768 = vrot.slane %v1687, 1
  %v1769 = vsel %vm590, %v1760, %v1768
  %1770 = vrot.lane.b32.xlu0 %v1769, 4
  %v1771 = vpop.permute.xlu0 %1770
  %v1773 = vrot.slane %v1687, 2
  %v1774 = vrot.slane %v1760, 1
  %v1775 = vsel %vm590, %v1774, %v1773
  %1776 = vrot.lane.b32.xlu0 %v1775, 8
  %v1777 = vpop.permute.xlu0 %1776
  %v1779 = vrot.slane %v1687, 3
  %v1780 = vrot.slane %v1760, 2
  %v1781 = vsel %vm590, %v1780, %v1779
  %1782 = vrot.lane.b32.xlu0 %v1781, 12
  %v1783 = vpop.permute.xlu0 %1782
  %v1785 = vsel %vm610, %v1766, %v1771
  %v1786 = vsel %vm612, %v1785, %v1777
  %v1787 = vsel %vm614, %v1786, %v1783
  %1788 = vset.pattern.permute.xlu0 46
  %1789 = vperm.xlu0 %1788, %v1258
  %v1790 = vpop.permute.xlu0 %1789
  %v1792 = vmul.f32 %v1787, %v1790
  %v1793 = vld [vmem:[%s3] sm:$0xff]
  %v1794 = vld [vmem:[%s3 + $0x8] sm:$0xff]
  %v1795 = vld [vmem:[%s4] sm:$0xff]
  %v1796 = vld [vmem:[%s4 + $0x8] sm:$0xff]
  %v1797 = vld [vmem:[%s4 + $0x10] sm:$0xff]
  %v1798 = vld [vmem:[%s4 + $0x18] sm:$0xff]
  %1799 = vrot.lane.b32.xlu0 %v1239, 118
  %v1800 = vpop.permute.xlu0 %1799
  %v1801 = vsel %vm627, %v1800, 0
  %1803 = vmatprep.subr.mxu0 0.0
  %1804 = vmatpush1.msra.mxu0 0.0
  %1805 = vmatprep.subr.mxu0 0.0
  %1806 = vmatpush1.msra.mxu0 0.0
  %1807 = vmatprep.subr.mxu0 0.0
  %1808 = vmatpush1.msra.mxu0 0.0
  %1809 = vmatprep.subr.mxu0 0.0
  %1810 = vmatpush1.msra.mxu0 0.0
  %1811 = vmatprep.subr.mxu0 0.0
  %1812 = vmatpush1.msra.mxu0 0.0
  %1813 = vmatprep.subr.mxu0 0.0
  %1814 = vmatpush1.msra.mxu0 0.0
  %1815 = vmatprep.subr.mxu0 0.0
  %1816 = vmatpush1.msra.mxu0 0.0
  %1817 = vmatprep.subr.mxu0 0.0
  %1818 = vmatpush1.msra.mxu0 0.0
  %1819 = vmatprep.subr.mxu0 0.0
  %1820 = vmatpush1.msra.mxu0 0.0
  %1821 = vmatprep.subr.mxu0 0.0
  %1822 = vmatpush1.msra.mxu0 0.0
  %1823 = vmatprep.subr.mxu0 0.0
  %1824 = vmatpush1.msra.mxu0 0.0
  %1825 = vmatprep.subr.mxu0 0.0
  %1826 = vmatpush1.msra.mxu0 0.0
  %1827 = vmatprep.subr.mxu0 0.0
  %1828 = vmatpush1.msra.mxu0 %v1798
  %1829 = vmatprep.subr.mxu0 0.0
  %1830 = vmatpush1.msra.mxu0 %v1797
  %1831 = vmatprep.subr.mxu0 0.0
  %1832 = vmatpush1.msra.mxu0 %v1796
  %1833 = vmatprep.subr.mxu0 0.0
  %1834 = vmatpush1.msra.mxu0 %v1795
  %1835 = vmatprep.subr.mxu0 0.0
  %1836 = vmatpush2.msra.mxu0 0.0
  %1837 = vmatprep.subr.mxu0 0.0
  %1838 = vmatpush2.msra.mxu0 0.0
  %1839 = vmatprep.subr.mxu0 0.0
  %1840 = vmatpush2.msra.mxu0 0.0
  %1841 = vmatprep.subr.mxu0 0.0
  %1842 = vmatpush2.msra.mxu0 0.0
  %1843 = vmatprep.subr.mxu0 0.0
  %1844 = vmatpush2.msra.mxu0 0.0
  %1845 = vmatprep.subr.mxu0 0.0
  %1846 = vmatpush2.msra.mxu0 0.0
  %1847 = vmatprep.subr.mxu0 0.0
  %1848 = vmatpush2.msra.mxu0 0.0
  %1849 = vmatprep.subr.mxu0 0.0
  %1850 = vmatpush2.msra.mxu0 0.0
  %1851 = vmatprep.subr.mxu0 0.0
  %1852 = vmatpush2.msra.mxu0 0.0
  %1853 = vmatprep.subr.mxu0 0.0
  %1854 = vmatpush2.msra.mxu0 0.0
  %1855 = vmatprep.subr.mxu0 0.0
  %1856 = vmatpush2.msra.mxu0 0.0
  %1857 = vmatprep.subr.mxu0 0.0
  %1858 = vmatpush2.msra.mxu0 0.0
  %1859 = vmatprep.subr.mxu0 0.0
  %1860 = vmatpush2.msra.mxu0 0.0
  %1861 = vmatprep.subr.mxu0 0.0
  %1862 = vmatpush2.msra.mxu0 0.0
  %1863 = vmatprep.subr.mxu0 0.0
  %1864 = vmatpush2.msra.mxu0 0.0
  %1865 = vmatprep.subr.mxu0 0.0
  %1866 = vmatpush2.msra.mxu0 0.0
  %1867 = vmatprep.mubr.f32.mxu0 0.0
  %1868 = vmatmul.mubr.f32.gmra.mxu0 %v1801
  %v1869 = vpop.f32.mrf.mxu0
  %v1870 = vadd.f32 0.0, %v1869
  %v1871 = vpop.f32.mrf.mxu0
  %1872 = vdwg.mxu0
  %v1874 = vsel %vm272, %v1792, 0
  %1876 = vmatprep.subr.mxu0 0.0
  %1877 = vmatpush1.msra.mxu0 0.0
  %1878 = vmatprep.subr.mxu0 0.0
  %1879 = vmatpush1.msra.mxu0 0.0
  %1880 = vmatprep.subr.mxu0 0.0
  %1881 = vmatpush1.msra.mxu0 0.0
  %1882 = vmatprep.subr.mxu0 0.0
  %1883 = vmatpush1.msra.mxu0 0.0
  %1884 = vmatprep.subr.mxu0 0.0
  %1885 = vmatpush1.msra.mxu0 0.0
  %1886 = vmatprep.subr.mxu0 0.0
  %1887 = vmatpush1.msra.mxu0 0.0
  %1888 = vmatprep.subr.mxu0 0.0
  %1889 = vmatpush1.msra.mxu0 0.0
  %1890 = vmatprep.subr.mxu0 0.0
  %1891 = vmatpush1.msra.mxu0 0.0
  %1892 = vmatprep.subr.mxu0 0.0
  %1893 = vmatpush1.msra.mxu0 0.0
  %1894 = vmatprep.subr.mxu0 0.0
  %1895 = vmatpush1.msra.mxu0 0.0
  %1896 = vmatprep.subr.mxu0 0.0
  %1897 = vmatpush1.msra.mxu0 0.0
  %1898 = vmatprep.subr.mxu0 0.0
  %1899 = vmatpush1.msra.mxu0 0.0
  %1900 = vmatprep.subr.mxu0 0.0
  %1901 = vmatpush1.msra.mxu0 0.0
  %1902 = vmatprep.subr.mxu0 0.0
  %1903 = vmatpush1.msra.mxu0 0.0
  %1904 = vmatprep.subr.mxu0 0.0
  %1905 = vmatpush1.msra.mxu0 %v1794
  %1906 = vmatprep.subr.mxu0 0.0
  %1907 = vmatpush1.msra.mxu0 %v1793
  %1908 = vmatprep.subr.mxu0 0.0
  %1909 = vmatpush2.msra.mxu0 0.0
  %1910 = vmatprep.subr.mxu0 0.0
  %1911 = vmatpush2.msra.mxu0 0.0
  %1912 = vmatprep.subr.mxu0 0.0
  %1913 = vmatpush2.msra.mxu0 0.0
  %1914 = vmatprep.subr.mxu0 0.0
  %1915 = vmatpush2.msra.mxu0 0.0
  %1916 = vmatprep.subr.mxu0 0.0
  %1917 = vmatpush2.msra.mxu0 0.0
  %1918 = vmatprep.subr.mxu0 0.0
  %1919 = vmatpush2.msra.mxu0 0.0
  %1920 = vmatprep.subr.mxu0 0.0
  %1921 = vmatpush2.msra.mxu0 0.0
  %1922 = vmatprep.subr.mxu0 0.0
  %1923 = vmatpush2.msra.mxu0 0.0
  %1924 = vmatprep.subr.mxu0 0.0
  %1925 = vmatpush2.msra.mxu0 0.0
  %1926 = vmatprep.subr.mxu0 0.0
  %1927 = vmatpush2.msra.mxu0 0.0
  %1928 = vmatprep.subr.mxu0 0.0
  %1929 = vmatpush2.msra.mxu0 0.0
  %1930 = vmatprep.subr.mxu0 0.0
  %1931 = vmatpush2.msra.mxu0 0.0
  %1932 = vmatprep.subr.mxu0 0.0
  %1933 = vmatpush2.msra.mxu0 0.0
  %1934 = vmatprep.subr.mxu0 0.0
  %1935 = vmatpush2.msra.mxu0 0.0
  %1936 = vmatprep.subr.mxu0 0.0
  %1937 = vmatpush2.msra.mxu0 0.0
  %1938 = vmatprep.subr.mxu0 0.0
  %1939 = vmatpush2.msra.mxu0 0.0
  %1940 = vmatprep.mubr.f32.mxu0 0.0
  %1941 = vmatmul.mubr.f32.gmra.mxu0 %v1874
  %v1942 = vpop.f32.mrf.mxu0
  %v1943 = vadd.f32 %v1870, %v1942
  %v1944 = vpop.f32.mrf.mxu0
  %1945 = vdwg.mxu0
  %v1946 = vld [vmem:[%s5] sm:$0xff]
  %v1947 = vld [vmem:[%s5 + $0x8] sm:$0xff]
  %v1948 = vld [vmem:[%s5 + $0x10] sm:$0xff]
  %v1949 = vld [vmem:[%s5 + $0x18] sm:$0xff]
  %1950 = vmatprep.subr.mxu0 0.0
  %1951 = vmatpush1.msra.mxu0 0.0
  %1952 = vmatprep.subr.mxu0 0.0
  %1953 = vmatpush1.msra.mxu0 0.0
  %1954 = vmatprep.subr.mxu0 0.0
  %1955 = vmatpush1.msra.mxu0 0.0
  %1956 = vmatprep.subr.mxu0 0.0
  %1957 = vmatpush1.msra.mxu0 0.0
  %1958 = vmatprep.subr.mxu0 0.0
  %1959 = vmatpush1.msra.mxu0 0.0
  %1960 = vmatprep.subr.mxu0 0.0
  %1961 = vmatpush1.msra.mxu0 0.0
  %1962 = vmatprep.subr.mxu0 0.0
  %1963 = vmatpush1.msra.mxu0 0.0
  %1964 = vmatprep.subr.mxu0 0.0
  %1965 = vmatpush1.msra.mxu0 0.0
  %1966 = vmatprep.subr.mxu0 0.0
  %1967 = vmatpush1.msra.mxu0 0.0
  %1968 = vmatprep.subr.mxu0 0.0
  %1969 = vmatpush1.msra.mxu0 0.0
  %1970 = vmatprep.subr.mxu0 0.0
  %1971 = vmatpush1.msra.mxu0 0.0
  %1972 = vmatprep.subr.mxu0 0.0
  %1973 = vmatpush1.msra.mxu0 0.0
  %1974 = vmatprep.subr.mxu0 0.0
  %1975 = vmatpush1.msra.mxu0 %v1949
  %1976 = vmatprep.subr.mxu0 0.0
  %1977 = vmatpush1.msra.mxu0 %v1948
  %1978 = vmatprep.subr.mxu0 0.0
  %1979 = vmatpush1.msra.mxu0 %v1947
  %1980 = vmatprep.subr.mxu0 0.0
  %1981 = vmatpush1.msra.mxu0 %v1946
  %1982 = vmatprep.subr.mxu0 0.0
  %1983 = vmatpush2.msra.mxu0 0.0
  %1984 = vmatprep.subr.mxu0 0.0
  %1985 = vmatpush2.msra.mxu0 0.0
  %1986 = vmatprep.subr.mxu0 0.0
  %1987 = vmatpush2.msra.mxu0 0.0
  %1988 = vmatprep.subr.mxu0 0.0
  %1989 = vmatpush2.msra.mxu0 0.0
  %1990 = vmatprep.subr.mxu0 0.0
  %1991 = vmatpush2.msra.mxu0 0.0
  %1992 = vmatprep.subr.mxu0 0.0
  %1993 = vmatpush2.msra.mxu0 0.0
  %1994 = vmatprep.subr.mxu0 0.0
  %1995 = vmatpush2.msra.mxu0 0.0
  %1996 = vmatprep.subr.mxu0 0.0
  %1997 = vmatpush2.msra.mxu0 0.0
  %1998 = vmatprep.subr.mxu0 0.0
  %1999 = vmatpush2.msra.mxu0 0.0
  %2000 = vmatprep.subr.mxu0 0.0
  %2001 = vmatpush2.msra.mxu0 0.0
  %2002 = vmatprep.subr.mxu0 0.0
  %2003 = vmatpush2.msra.mxu0 0.0
  %2004 = vmatprep.subr.mxu0 0.0
  %2005 = vmatpush2.msra.mxu0 0.0
  %2006 = vmatprep.subr.mxu0 0.0
  %2007 = vmatpush2.msra.mxu0 0.0
  %2008 = vmatprep.subr.mxu0 0.0
  %2009 = vmatpush2.msra.mxu0 0.0
  %2010 = vmatprep.subr.mxu0 0.0
  %2011 = vmatpush2.msra.mxu0 0.0
  %2012 = vmatprep.subr.mxu0 0.0
  %2013 = vmatpush2.msra.mxu0 0.0
  %2014 = vmatprep.mubr.f32.mxu0 0.0
  %2015 = vmatmul.mubr.f32.gmra.mxu0 %v895
  %v2016 = vpop.f32.mrf.mxu0
  %v2017 = vadd.f32 0.0, %v2016
  %v2018 = vpop.f32.mrf.mxu0
  %2019 = vdwg.mxu0
  %v2020 = vadd.f32 %v1943, %v2017
  %v2021 = vld [vmem:[%s6] sm:$0x1]
  %v2023 = vlaneseq
  %v2024 = vshrl.u32 %v2023, 7
  %v2025 = vsub.s32 0, %v2024
  %v2026 = vrot.slane %v2021, %v2025
  %v2028 = vadd.f32 %v2020, %v2026
  %v2029 = vxor.u32 %v2028, 2147483648
  %v2030 = vmul.f32 %v2029, 1.442695
  %v2031 = vpow.pop %v2030
  %v2032 = vadd.f32 %v2031, 1.0
  %v2033 = vrcp.pop %v2032
  %v2034 = vmul.f32 1.0, %v2033
  %v2035 = vmul.f32 %v2034, %v874
  %v2036 = vtanh.pop %v2028
  %2038 = vrot.lane.b32.xlu0 %v2036, 64
  %v2039 = vpop.permute.xlu0 %2038
  %v2041 = vmul.f32 %v2034, %v2039
  %2043 = vrot.lane.b32.xlu0 %v2041, 32
  %v2044 = vpop.permute.xlu0 %2043
  %v2046 = vadd.f32 %v2035, %v2044
  %v2047 = vtanh.pop %v2046
  %2049 = vrot.lane.b32.xlu0 %v2047, 64
  %v2050 = vpop.permute.xlu0 %2049
  %v2052 = vmul.f32 %v2034, %v2050
  %v2053 = vld [vmem:[%s7] sm:$0xff]
  %v2054 = vld [vmem:[%s7 + $0x8] sm:$0xff]
  %v2055 = vld [vmem:[%s7 + $0x10] sm:$0xff]
  %v2056 = vld [vmem:[%s7 + $0x18] sm:$0xff]
  %v2057 = vld [vmem:[%s8] sm:$0x1]
  %v2059 = vlaneseq
  %v2060 = vshrl.u32 %v2059, 7
  %v2061 = vsub.s32 0, %v2060
  %v2062 = vrot.slane %v2057, %v2061
  %2065 = vrot.lane.b32.xlu0 %v2052, 32
  %v2066 = vpop.permute.xlu0 %2065
  %v2067 = vsel %vm627, %v2066, 0
  %2069 = vmatprep.subr.mxu0 0.0
  %2070 = vmatpush1.msra.mxu0 0.0
  %2071 = vmatprep.subr.mxu0 0.0
  %2072 = vmatpush1.msra.mxu0 0.0
  %2073 = vmatprep.subr.mxu0 0.0
  %2074 = vmatpush1.msra.mxu0 0.0
  %2075 = vmatprep.subr.mxu0 0.0
  %2076 = vmatpush1.msra.mxu0 0.0
  %2077 = vmatprep.subr.mxu0 0.0
  %2078 = vmatpush1.msra.mxu0 0.0
  %2079 = vmatprep.subr.mxu0 0.0
  %2080 = vmatpush1.msra.mxu0 0.0
  %2081 = vmatprep.subr.mxu0 0.0
  %2082 = vmatpush1.msra.mxu0 0.0
  %2083 = vmatprep.subr.mxu0 0.0
  %2084 = vmatpush1.msra.mxu0 0.0
  %2085 = vmatprep.subr.mxu0 0.0
  %2086 = vmatpush1.msra.mxu0 0.0
  %2087 = vmatprep.subr.mxu0 0.0
  %2088 = vmatpush1.msra.mxu0 0.0
  %2089 = vmatprep.subr.mxu0 0.0
  %2090 = vmatpush1.msra.mxu0 0.0
  %2091 = vmatprep.subr.mxu0 0.0
  %2092 = vmatpush1.msra.mxu0 0.0
  %2093 = vmatprep.subr.mxu0 0.0
  %2094 = vmatpush1.msra.mxu0 %v2056
  %2095 = vmatprep.subr.mxu0 0.0
  %2096 = vmatpush1.msra.mxu0 %v2055
  %2097 = vmatprep.subr.mxu0 0.0
  %2098 = vmatpush1.msra.mxu0 %v2054
  %2099 = vmatprep.subr.mxu0 0.0
  %2100 = vmatpush1.msra.mxu0 %v2053
  %2101 = vmatprep.subr.mxu0 0.0
  %2102 = vmatpush2.msra.mxu0 0.0
  %2103 = vmatprep.subr.mxu0 0.0
  %2104 = vmatpush2.msra.mxu0 0.0
  %2105 = vmatprep.subr.mxu0 0.0
  %2106 = vmatpush2.msra.mxu0 0.0
  %2107 = vmatprep.subr.mxu0 0.0
  %2108 = vmatpush2.msra.mxu0 0.0
  %2109 = vmatprep.subr.mxu0 0.0
  %2110 = vmatpush2.msra.mxu0 0.0
  %2111 = vmatprep.subr.mxu0 0.0
  %2112 = vmatpush2.msra.mxu0 0.0
  %2113 = vmatprep.subr.mxu0 0.0
  %2114 = vmatpush2.msra.mxu0 0.0
  %2115 = vmatprep.subr.mxu0 0.0
  %2116 = vmatpush2.msra.mxu0 0.0
  %2117 = vmatprep.subr.mxu0 0.0
  %2118 = vmatpush2.msra.mxu0 0.0
  %2119 = vmatprep.subr.mxu0 0.0
  %2120 = vmatpush2.msra.mxu0 0.0
  %2121 = vmatprep.subr.mxu0 0.0
  %2122 = vmatpush2.msra.mxu0 0.0
  %2123 = vmatprep.subr.mxu0 0.0
  %2124 = vmatpush2.msra.mxu0 0.0
  %2125 = vmatprep.subr.mxu0 0.0
  %2126 = vmatpush2.msra.mxu0 0.0
  %2127 = vmatprep.subr.mxu0 0.0
  %2128 = vmatpush2.msra.mxu0 0.0
  %2129 = vmatprep.subr.mxu0 0.0
  %2130 = vmatpush2.msra.mxu0 0.0
  %2131 = vmatprep.subr.mxu0 0.0
  %2132 = vmatpush2.msra.mxu0 0.0
  %2133 = vmatprep.mubr.f32.mxu0 0.0
  %2134 = vmatmul.mubr.f32.gmra.mxu0 %v2067
  %v2135 = vpop.f32.mrf.mxu0
  %v2136 = vadd.f32 %v2062, %v2135
  %v2137 = vpop.f32.mrf.mxu0
  %2138 = vdwg.mxu0
  %v2139 = vmul.f32 %v2136, 1.442695
  %v2140 = vpow.pop %v2139
  %s2141 = scalar_lea.vmem %s1, 2
  %v2142 = vld [vmem:[%s2141] sm:$0x3]
  %2144 = vrot.lane.b32.xlu0 %v2140, 120
  %v2145 = vpop.permute.xlu0 %2144
  %v2147 = vmul.f32 %v2142, %v2145
  %v2148 = vadd.f32 %v2136, %v2147
  %v2149 = vld [vmem:[%s9] sm:$0xff]
  %v2150 = vld [vmem:[%s10] sm:$0xff]
  %v2151 = vld [vmem:[%s10 + $0x8] sm:$0xff]
  %v2152 = vld [vmem:[%s10 + $0x10] sm:$0xff]
  %v2153 = vld [vmem:[%s10 + $0x18] sm:$0xff]
  %2154 = vmatprep.subr.mxu0 0.0
  %2155 = vmatpush1.msra.mxu0 0.0
  %2156 = vmatprep.subr.mxu0 0.0
  %2157 = vmatpush1.msra.mxu0 0.0
  %2158 = vmatprep.subr.mxu0 0.0
  %2159 = vmatpush1.msra.mxu0 0.0
  %2160 = vmatprep.subr.mxu0 0.0
  %2161 = vmatpush1.msra.mxu0 0.0
  %2162 = vmatprep.subr.mxu0 0.0
  %2163 = vmatpush1.msra.mxu0 0.0
  %2164 = vmatprep.subr.mxu0 0.0
  %2165 = vmatpush1.msra.mxu0 0.0
  %2166 = vmatprep.subr.mxu0 0.0
  %2167 = vmatpush1.msra.mxu0 0.0
  %2168 = vmatprep.subr.mxu0 0.0
  %2169 = vmatpush1.msra.mxu0 0.0
  %2170 = vmatprep.subr.mxu0 0.0
  %2171 = vmatpush1.msra.mxu0 0.0
  %2172 = vmatprep.subr.mxu0 0.0
  %2173 = vmatpush1.msra.mxu0 0.0
  %2174 = vmatprep.subr.mxu0 0.0
  %2175 = vmatpush1.msra.mxu0 0.0
  %2176 = vmatprep.subr.mxu0 0.0
  %2177 = vmatpush1.msra.mxu0 0.0
  %2178 = vmatprep.subr.mxu0 0.0
  %2179 = vmatpush1.msra.mxu0 %v2153
  %2180 = vmatprep.subr.mxu0 0.0
  %2181 = vmatpush1.msra.mxu0 %v2152
  %2182 = vmatprep.subr.mxu0 0.0
  %2183 = vmatpush1.msra.mxu0 %v2151
  %2184 = vmatprep.subr.mxu0 0.0
  %2185 = vmatpush1.msra.mxu0 %v2150
  %2186 = vmatprep.subr.mxu0 0.0
  %2187 = vmatpush2.msra.mxu0 0.0
  %2188 = vmatprep.subr.mxu0 0.0
  %2189 = vmatpush2.msra.mxu0 0.0
  %2190 = vmatprep.subr.mxu0 0.0
  %2191 = vmatpush2.msra.mxu0 0.0
  %2192 = vmatprep.subr.mxu0 0.0
  %2193 = vmatpush2.msra.mxu0 0.0
  %2194 = vmatprep.subr.mxu0 0.0
  %2195 = vmatpush2.msra.mxu0 0.0
  %2196 = vmatprep.subr.mxu0 0.0
  %2197 = vmatpush2.msra.mxu0 0.0
  %2198 = vmatprep.subr.mxu0 0.0
  %2199 = vmatpush2.msra.mxu0 0.0
  %2200 = vmatprep.subr.mxu0 0.0
  %2201 = vmatpush2.msra.mxu0 0.0
  %2202 = vmatprep.subr.mxu0 0.0
  %2203 = vmatpush2.msra.mxu0 0.0
  %2204 = vmatprep.subr.mxu0 0.0
  %2205 = vmatpush2.msra.mxu0 0.0
  %2206 = vmatprep.subr.mxu0 0.0
  %2207 = vmatpush2.msra.mxu0 0.0
  %2208 = vmatprep.subr.mxu0 0.0
  %2209 = vmatpush2.msra.mxu0 0.0
  %2210 = vmatprep.subr.mxu0 0.0
  %2211 = vmatpush2.msra.mxu0 0.0
  %2212 = vmatprep.subr.mxu0 0.0
  %2213 = vmatpush2.msra.mxu0 0.0
  %2214 = vmatprep.subr.mxu0 0.0
  %2215 = vmatpush2.msra.mxu0 0.0
  %2216 = vmatprep.subr.mxu0 0.0
  %2217 = vmatpush2.msra.mxu0 0.0
  %2218 = vmatprep.mubr.f32.mxu0 0.0
  %2219 = vmatmul.mubr.f32.gmra.mxu0 %v1801
  %v2220 = vpop.f32.mrf.mxu0
  %v2221 = vadd.f32 0.0, %v2220
  %v2222 = vpop.f32.mrf.mxu0
  %2223 = vdwg.mxu0
  %v2225 = vsel %vm612, %v2148, 0
  %2227 = vmatprep.subr.mxu0 0.0
  %2228 = vmatpush1.msra.mxu0 0.0
  %2229 = vmatprep.subr.mxu0 0.0
  %2230 = vmatpush1.msra.mxu0 0.0
  %2231 = vmatprep.subr.mxu0 0.0
  %2232 = vmatpush1.msra.mxu0 0.0
  %2233 = vmatprep.subr.mxu0 0.0
  %2234 = vmatpush1.msra.mxu0 0.0
  %2235 = vmatprep.subr.mxu0 0.0
  %2236 = vmatpush1.msra.mxu0 0.0
  %2237 = vmatprep.subr.mxu0 0.0
  %2238 = vmatpush1.msra.mxu0 0.0
  %2239 = vmatprep.subr.mxu0 0.0
  %2240 = vmatpush1.msra.mxu0 0.0
  %2241 = vmatprep.subr.mxu0 0.0
  %2242 = vmatpush1.msra.mxu0 0.0
  %2243 = vmatprep.subr.mxu0 0.0
  %2244 = vmatpush1.msra.mxu0 0.0
  %2245 = vmatprep.subr.mxu0 0.0
  %2246 = vmatpush1.msra.mxu0 0.0
  %2247 = vmatprep.subr.mxu0 0.0
  %2248 = vmatpush1.msra.mxu0 0.0
  %2249 = vmatprep.subr.mxu0 0.0
  %2250 = vmatpush1.msra.mxu0 0.0
  %2251 = vmatprep.subr.mxu0 0.0
  %2252 = vmatpush1.msra.mxu0 0.0
  %2253 = vmatprep.subr.mxu0 0.0
  %2254 = vmatpush1.msra.mxu0 0.0
  %2255 = vmatprep.subr.mxu0 0.0
  %2256 = vmatpush1.msra.mxu0 0.0
  %2257 = vmatprep.subr.mxu0 0.0
  %2258 = vmatpush1.msra.mxu0 %v2149
  %2259 = vmatprep.subr.mxu0 0.0
  %2260 = vmatpush2.msra.mxu0 0.0
  %2261 = vmatprep.subr.mxu0 0.0
  %2262 = vmatpush2.msra.mxu0 0.0
  %2263 = vmatprep.subr.mxu0 0.0
  %2264 = vmatpush2.msra.mxu0 0.0
  %2265 = vmatprep.subr.mxu0 0.0
  %2266 = vmatpush2.msra.mxu0 0.0
  %2267 = vmatprep.subr.mxu0 0.0
  %2268 = vmatpush2.msra.mxu0 0.0
  %2269 = vmatprep.subr.mxu0 0.0
  %2270 = vmatpush2.msra.mxu0 0.0
  %2271 = vmatprep.subr.mxu0 0.0
  %2272 = vmatpush2.msra.mxu0 0.0
  %2273 = vmatprep.subr.mxu0 0.0
  %2274 = vmatpush2.msra.mxu0 0.0
  %2275 = vmatprep.subr.mxu0 0.0
  %2276 = vmatpush2.msra.mxu0 0.0
  %2277 = vmatprep.subr.mxu0 0.0
  %2278 = vmatpush2.msra.mxu0 0.0
  %2279 = vmatprep.subr.mxu0 0.0
  %2280 = vmatpush2.msra.mxu0 0.0
  %2281 = vmatprep.subr.mxu0 0.0
  %2282 = vmatpush2.msra.mxu0 0.0
  %2283 = vmatprep.subr.mxu0 0.0
  %2284 = vmatpush2.msra.mxu0 0.0
  %2285 = vmatprep.subr.mxu0 0.0
  %2286 = vmatpush2.msra.mxu0 0.0
  %2287 = vmatprep.subr.mxu0 0.0
  %2288 = vmatpush2.msra.mxu0 0.0
  %2289 = vmatprep.subr.mxu0 0.0
  %2290 = vmatpush2.msra.mxu0 0.0
  %2291 = vmatprep.mubr.f32.mxu0 0.0
  %2292 = vmatmul.mubr.f32.gmra.mxu0 %v2225
  %v2293 = vpop.f32.mrf.mxu0
  %v2294 = vadd.f32 %v2221, %v2293
  %v2295 = vpop.f32.mrf.mxu0
  %2296 = vdwg.mxu0
  %v2297 = vld [vmem:[%s11] sm:$0x1]
  %v2299 = vlaneseq
  %v2300 = vshrl.u32 %v2299, 7
  %v2301 = vsub.s32 0, %v2300
  %v2302 = vrot.slane %v2297, %v2301
  %v2304 = vadd.f32 %v2294, %v2302
  %v2305 = vxor.u32 %v2304, 2147483648
  %v2306 = vmul.f32 %v2305, 1.442695
  %v2307 = vpow.pop %v2306
  %v2308 = vadd.f32 %v2307, 1.0
  %v2309 = vrcp.pop %v2308
  %v2310 = vmul.f32 1.0, %v2309
  %v2311 = vmul.f32 %v2310, %v1149
  %v2312 = vtanh.pop %v2304
  %2314 = vrot.lane.b32.xlu0 %v2312, 64
  %v2315 = vpop.permute.xlu0 %2314
  %v2317 = vmul.f32 %v2310, %v2315
  %2319 = vrot.lane.b32.xlu0 %v2317, 32
  %v2320 = vpop.permute.xlu0 %2319
  %v2322 = vadd.f32 %v2311, %v2320
  %v2323 = vtanh.pop %v2322
  %2325 = vrot.lane.b32.xlu0 %v2323, 64
  %v2326 = vpop.permute.xlu0 %2325
  %v2328 = vmul.f32 %v2310, %v2326
  %v2329 = vld [vmem:[%s12] sm:$0xff]
  %v2330 = vld [vmem:[%s12 + $0x8] sm:$0xff]
  %v2331 = vld [vmem:[%s12 + $0x10] sm:$0xff]
  %v2332 = vld [vmem:[%s12 + $0x18] sm:$0xff]
  %v2333 = vld [vmem:[%s13] sm:$0x1]
  %v2335 = vlaneseq
  %v2336 = vshrl.u32 %v2335, 7
  %v2337 = vsub.s32 0, %v2336
  %v2338 = vrot.slane %v2333, %v2337
  %2341 = vrot.lane.b32.xlu0 %v2328, 32
  %v2342 = vpop.permute.xlu0 %2341
  %v2343 = vsel %vm627, %v2342, 0
  %2345 = vmatprep.subr.mxu0 0.0
  %2346 = vmatpush1.msra.mxu0 0.0
  %2347 = vmatprep.subr.mxu0 0.0
  %2348 = vmatpush1.msra.mxu0 0.0
  %2349 = vmatprep.subr.mxu0 0.0
  %2350 = vmatpush1.msra.mxu0 0.0
  %2351 = vmatprep.subr.mxu0 0.0
  %2352 = vmatpush1.msra.mxu0 0.0
  %2353 = vmatprep.subr.mxu0 0.0
  %2354 = vmatpush1.msra.mxu0 0.0
  %2355 = vmatprep.subr.mxu0 0.0
  %2356 = vmatpush1.msra.mxu0 0.0
  %2357 = vmatprep.subr.mxu0 0.0
  %2358 = vmatpush1.msra.mxu0 0.0
  %2359 = vmatprep.subr.mxu0 0.0
  %2360 = vmatpush1.msra.mxu0 0.0
  %2361 = vmatprep.subr.mxu0 0.0
  %2362 = vmatpush1.msra.mxu0 0.0
  %2363 = vmatprep.subr.mxu0 0.0
  %2364 = vmatpush1.msra.mxu0 0.0
  %2365 = vmatprep.subr.mxu0 0.0
  %2366 = vmatpush1.msra.mxu0 0.0
  %2367 = vmatprep.subr.mxu0 0.0
  %2368 = vmatpush1.msra.mxu0 0.0
  %2369 = vmatprep.subr.mxu0 0.0
  %2370 = vmatpush1.msra.mxu0 %v2332
  %2371 = vmatprep.subr.mxu0 0.0
  %2372 = vmatpush1.msra.mxu0 %v2331
  %2373 = vmatprep.subr.mxu0 0.0
  %2374 = vmatpush1.msra.mxu0 %v2330
  %2375 = vmatprep.subr.mxu0 0.0
  %2376 = vmatpush1.msra.mxu0 %v2329
  %2377 = vmatprep.subr.mxu0 0.0
  %2378 = vmatpush2.msra.mxu0 0.0
  %2379 = vmatprep.subr.mxu0 0.0
  %2380 = vmatpush2.msra.mxu0 0.0
  %2381 = vmatprep.subr.mxu0 0.0
  %2382 = vmatpush2.msra.mxu0 0.0
  %2383 = vmatprep.subr.mxu0 0.0
  %2384 = vmatpush2.msra.mxu0 0.0
  %2385 = vmatprep.subr.mxu0 0.0
  %2386 = vmatpush2.msra.mxu0 0.0
  %2387 = vmatprep.subr.mxu0 0.0
  %2388 = vmatpush2.msra.mxu0 0.0
  %2389 = vmatprep.subr.mxu0 0.0
  %2390 = vmatpush2.msra.mxu0 0.0
  %2391 = vmatprep.subr.mxu0 0.0
  %2392 = vmatpush2.msra.mxu0 0.0
  %2393 = vmatprep.subr.mxu0 0.0
  %2394 = vmatpush2.msra.mxu0 0.0
  %2395 = vmatprep.subr.mxu0 0.0
  %2396 = vmatpush2.msra.mxu0 0.0
  %2397 = vmatprep.subr.mxu0 0.0
  %2398 = vmatpush2.msra.mxu0 0.0
  %2399 = vmatprep.subr.mxu0 0.0
  %2400 = vmatpush2.msra.mxu0 0.0
  %2401 = vmatprep.subr.mxu0 0.0
  %2402 = vmatpush2.msra.mxu0 0.0
  %2403 = vmatprep.subr.mxu0 0.0
  %2404 = vmatpush2.msra.mxu0 0.0
  %2405 = vmatprep.subr.mxu0 0.0
  %2406 = vmatpush2.msra.mxu0 0.0
  %2407 = vmatprep.subr.mxu0 0.0
  %2408 = vmatpush2.msra.mxu0 0.0
  %2409 = vmatprep.mubr.f32.mxu0 0.0
  %2410 = vmatmul.mubr.f32.gmra.mxu0 %v2343
  %v2411 = vpop.f32.mrf.mxu0
  %v2412 = vadd.f32 %v2338, %v2411
  %v2413 = vpop.f32.mrf.mxu0
  %2414 = vdwg.mxu0
  %2415 = vrot.lane.b32.xlu0 %v2140, 8
  %v2416 = vpop.permute.xlu0 %2415
  %2419 = vrot.lane.b32.xlu0 %v2412, 24
  %v2420 = vpop.permute.xlu0 %2419
  %v2422 = vsel %vm272, %v2136, %v2416
  %v2423 = vsel %vm1250, %v2422, %v2420
  %v2424 = vsel %vm1252, %v2423, 0.0
  %s2425 = scalar_lea.vmem %s14, 2
  %2426 = vst [vmem:[%s2425] sm:$0x3] %v2424
  %v2427 = vadd.f32 %v2412, 1.0
  %v2428 = vmul.f32 %v2427, 8.5
  %v2429 = vmul.f32 %v2412, 1.442695
  %v2430 = vpow.pop %v2429
  %v2431 = vmul.f32 %v2430, 5.0
  %v2434 = vunpack.c.l.s4 1966171168
  %v2435 = vunpack.c.0.s8 %v2434
  %v2436 = vlaneseq
  %v2437 = vshrl.u32 %v2436, 7
  %v2438 = vsub.s32 %v2435, %v2437
  %v2439 = vrot.slane %v2428, %v2438
  %v2440 = vcombine.high %v2439, %v2439
  %v2442 = vunpack.c.l.s4 1966171168
  %v2443 = vunpack.c.0.s8 %v2442
  %v2444 = vlaneseq
  %v2445 = vshrl.u32 %v2444, 7
  %v2446 = vsub.s32 %v2443, %v2445
  %v2447 = vrot.slane %v2439, %v2446
  %v2449 = vunpack.c.l.s4 1966171168
  %v2450 = vunpack.c.0.s8 %v2449
  %v2451 = vlaneseq
  %v2452 = vshrl.u32 %v2451, 7
  %v2453 = vsub.s32 %v2450, %v2452
  %v2454 = vrot.slane %v2440, %v2453
  %v2457 = vunpack.c.l.s4 1966171168
  %v2458 = vunpack.c.0.s8 %v2457
  %v2459 = vlaneseq
  %v2460 = vshrl.u32 %v2459, 7
  %v2461 = vsub.s32 %v2458, %v2460
  %v2462 = vrot.slane %v2431, %v2461
  %v2463 = vcombine.high %v2462, %v2462
  %v2465 = vunpack.c.l.s4 1966171168
  %v2466 = vunpack.c.0.s8 %v2465
  %v2467 = vlaneseq
  %v2468 = vshrl.u32 %v2467, 7
  %v2469 = vsub.s32 %v2466, %v2468
  %v2470 = vrot.slane %v2462, %v2469
  %v2472 = vunpack.c.l.s4 1966171168
  %v2473 = vunpack.c.0.s8 %v2472
  %v2474 = vlaneseq
  %v2475 = vshrl.u32 %v2474, 7
  %v2476 = vsub.s32 %v2473, %v2475
  %v2477 = vrot.slane %v2463, %v2476
  %v2480 = vunpack.c.l.s4 1966171168
  %v2481 = vunpack.c.0.s8 %v2480
  %v2482 = vlaneseq
  %v2483 = vshrl.u32 %v2482, 7
  %v2484 = vsub.s32 %v2481, %v2483
  %v2485 = vrot.slane %v2430, %v2484
  %v2486 = vcombine.high %v2485, %v2485
  %v2488 = vunpack.c.l.s4 1966171168
  %v2489 = vunpack.c.0.s8 %v2488
  %v2490 = vlaneseq
  %v2491 = vshrl.u32 %v2490, 7
  %v2492 = vsub.s32 %v2489, %v2491
  %v2493 = vrot.slane %v2485, %v2492
  %v2495 = vunpack.c.l.s4 1966171168
  %v2496 = vunpack.c.0.s8 %v2495
  %v2497 = vlaneseq
  %v2498 = vshrl.u32 %v2497, 7
  %v2499 = vsub.s32 %v2496, %v2498
  %v2500 = vrot.slane %v2486, %v2499
  %v2503 = vlaneseq
  %v2504 = vshrl.u32 %v2503, 7
  %v2505 = vsub.s32 0, %v2504
  %v2506 = vrot.slane %v2470, %v2505
  %v2507 = vlaneseq
  %v2508 = vshrl.u32 %v2507, 7
  %v2509 = vsub.s32 0, %v2508
  %v2510 = vrot.slane %v2477, %v2509
  %v2513 = vmul.f32 %v140, %v2506
  %v2514 = vmul.f32 %v140, %v2510
  %v2515 = vlaneseq
  %v2516 = vshrl.u32 %v2515, 7
  %v2517 = vsub.s32 0, %v2516
  %v2518 = vrot.slane %v2447, %v2517
  %v2519 = vlaneseq
  %v2520 = vshrl.u32 %v2519, 7
  %v2521 = vsub.s32 0, %v2520
  %v2522 = vrot.slane %v2454, %v2521
  %2527 = vrot.lane.b32.xlu0 %v2513, 125
  %v2528 = vpop.permute.xlu0 %2527
  %2529 = vrot.lane.b32.xlu0 %v2514, 125
  %v2530 = vpop.permute.xlu0 %2529
  %v2533 = vadd.f32 %v2518, %v2528
  %v2534 = vadd.f32 %v2522, %v2530
  %2535 = vrot.lane.b32.xlu0 %v2513, 126
  %v2536 = vpop.permute.xlu0 %2535
  %2537 = vrot.lane.b32.xlu0 %v2514, 126
  %v2538 = vpop.permute.xlu0 %2537
  %v2541 = vadd.f32 %v2518, %v2536
  %v2542 = vadd.f32 %v2522, %v2538
  %2544 = vset.pattern.permute.xlu0 42
  %2545 = vperm.xlu0 %2544, %v2533
  %v2546 = vpop.permute.xlu0 %2545
  %2549 = vset.pattern.permute.xlu0 42
  %2550 = vperm.xlu0 %2549, %v2534
  %v2551 = vpop.permute.xlu0 %2550
  %v2553 = vsub.f32 %v52, %v2546
  %v2554 = vsub.f32 %v52, %v2551
  %v2555 = vmul.f32 %v2553, %v2553
  %v2556 = vmul.f32 %v2554, %v2554
  %v2557 = vsub.f32 0.0, %v2555
  %v2558 = vsub.f32 0.0, %v2556
  %v2559 = vmul.f32 %v2493, 2.0
  %v2560 = vmul.f32 %v2500, 2.0
  %v2563 = vlaneseq
  %v2564 = vshrl.u32 %v2563, 7
  %v2565 = vsub.s32 0, %v2564
  %v2566 = vrot.slane %v2559, %v2565
  %v2567 = vlaneseq
  %v2568 = vshrl.u32 %v2567, 7
  %v2569 = vsub.s32 0, %v2568
  %v2570 = vrot.slane %v2560, %v2569
  %2571 = vset.pattern.permute.xlu0 44
  %2572 = vperm.xlu0 %2571, %v2566
  %v2573 = vpop.permute.xlu0 %2572
  %2575 = vset.pattern.permute.xlu0 44
  %2576 = vperm.xlu0 %2575, %v2570
  %v2577 = vpop.permute.xlu0 %2576
  %v2579 = vrcp.pop %v2573
  %v2580 = vmul.f32 %v2557, %v2579
  %v2581 = vrcp.pop %v2577
  %v2582 = vmul.f32 %v2558, %v2581
  %v2583 = vmul.f32 %v2580, 1.442695
  %v2584 = vpow.pop %v2583
  %v2585 = vmul.f32 %v2582, 1.442695
  %v2586 = vpow.pop %v2585
  %2588 = vset.pattern.permute.xlu0 43
  %2589 = vperm.xlu0 %2588, %v2541
  %v2590 = vpop.permute.xlu0 %2589
  %2593 = vset.pattern.permute.xlu0 43
  %2594 = vperm.xlu0 %2593, %v2542
  %v2595 = vpop.permute.xlu0 %2594
  %v2597 = vsub.f32 %v52, %v2590
  %v2598 = vsub.f32 %v52, %v2595
  %v2599 = vmul.f32 %v2597, %v2597
  %v2600 = vmul.f32 %v2598, %v2598
  %v2601 = vsub.f32 0.0, %v2599
  %v2602 = vsub.f32 0.0, %v2600
  %v2603 = vmul.f32 %v2601, %v2579
  %v2604 = vmul.f32 %v2602, %v2581
  %v2605 = vmul.f32 %v2603, 1.442695
  %v2606 = vpow.pop %v2605
  %v2607 = vmul.f32 %v2604, 1.442695
  %v2608 = vpow.pop %v2607
  %v2609 = vsel %vm247, %v2584, 0.0
  %2610 = vadd.xlane.f32.xlu0 %v2609
  %v2611 = vpop.xlane.xlu0 %2610
  %v2612 = vsel %vm247, %v2586, 0.0
  %2613 = vadd.xlane.f32.xlu0 %v2612
  %v2614 = vpop.xlane.xlu0 %2613
  %v2615 = vadd.f32 %v2611, 1e-08
  %v2616 = vadd.f32 %v2614, 1e-08
  %v2617 = vrcp.pop %v2615
  %v2618 = vmul.f32 %v2584, %v2617
  %v2619 = vrcp.pop %v2616
  %v2620 = vmul.f32 %v2586, %v2619
  %v2621 = vsel %vm247, %v2606, 0.0
  %2622 = vadd.xlane.f32.xlu0 %v2621
  %v2623 = vpop.xlane.xlu0 %2622
  %v2624 = vsel %vm247, %v2608, 0.0
  %2625 = vadd.xlane.f32.xlu0 %v2624
  %v2626 = vpop.xlane.xlu0 %2625
  %v2627 = vadd.f32 %v2623, 1e-08
  %v2628 = vadd.f32 %v2626, 1e-08
  %v2629 = vrcp.pop %v2627
  %v2630 = vmul.f32 %v2606, %v2629
  %v2631 = vrcp.pop %v2628
  %v2632 = vmul.f32 %v2608, %v2631
  %v2634 = vsel %vm272, %v2618, 0
  %2636 = vmatprep.subr.mxu0 0.0
  %2637 = vmatpush1.xpose.msra.mxu0 0.0
  %2638 = vmatprep.subr.mxu0 0.0
  %2639 = vmatpush1.xpose.msra.mxu0 0.0
  %2640 = vmatprep.subr.mxu0 0.0
  %2641 = vmatpush1.xpose.msra.mxu0 0.0
  %2642 = vmatprep.subr.mxu0 0.0
  %2643 = vmatpush1.xpose.msra.mxu0 0.0
  %2644 = vmatprep.subr.mxu0 0.0
  %2645 = vmatpush1.xpose.msra.mxu0 0.0
  %2646 = vmatprep.subr.mxu0 0.0
  %2647 = vmatpush1.xpose.msra.mxu0 0.0
  %2648 = vmatprep.subr.mxu0 0.0
  %2649 = vmatpush1.xpose.msra.mxu0 0.0
  %2650 = vmatprep.subr.mxu0 0.0
  %2651 = vmatpush1.xpose.msra.mxu0 0.0
  %2652 = vmatprep.subr.mxu0 0.0
  %2653 = vmatpush1.xpose.msra.mxu0 0.0
  %2654 = vmatprep.subr.mxu0 0.0
  %2655 = vmatpush1.xpose.msra.mxu0 0.0
  %2656 = vmatprep.subr.mxu0 0.0
  %2657 = vmatpush1.xpose.msra.mxu0 0.0
  %2658 = vmatprep.subr.mxu0 0.0
  %2659 = vmatpush1.xpose.msra.mxu0 0.0
  %2660 = vmatprep.subr.mxu0 0.0
  %2661 = vmatpush1.xpose.msra.mxu0 0.0
  %2662 = vmatprep.subr.mxu0 0.0
  %2663 = vmatpush1.xpose.msra.mxu0 0.0
  %2664 = vmatprep.subr.mxu0 0.0
  %2665 = vmatpush1.xpose.msra.mxu0 0.0
  %2666 = vmatprep.subr.mxu0 0.0
  %2667 = vmatpush1.xpose.msra.mxu0 %v2634
  %2668 = vmatprep.subr.mxu0 0.0
  %2669 = vmatpush2.xpose.msra.mxu0 0.0
  %2670 = vmatprep.subr.mxu0 0.0
  %2671 = vmatpush2.xpose.msra.mxu0 0.0
  %2672 = vmatprep.subr.mxu0 0.0
  %2673 = vmatpush2.xpose.msra.mxu0 0.0
  %2674 = vmatprep.subr.mxu0 0.0
  %2675 = vmatpush2.xpose.msra.mxu0 0.0
  %2676 = vmatprep.subr.mxu0 0.0
  %2677 = vmatpush2.xpose.msra.mxu0 0.0
  %2678 = vmatprep.subr.mxu0 0.0
  %2679 = vmatpush2.xpose.msra.mxu0 0.0
  %2680 = vmatprep.subr.mxu0 0.0
  %2681 = vmatpush2.xpose.msra.mxu0 0.0
  %2682 = vmatprep.subr.mxu0 0.0
  %2683 = vmatpush2.xpose.msra.mxu0 0.0
  %2684 = vmatprep.subr.mxu0 0.0
  %2685 = vmatpush2.xpose.msra.mxu0 0.0
  %2686 = vmatprep.subr.mxu0 0.0
  %2687 = vmatpush2.xpose.msra.mxu0 0.0
  %2688 = vmatprep.subr.mxu0 0.0
  %2689 = vmatpush2.xpose.msra.mxu0 0.0
  %2690 = vmatprep.subr.mxu0 0.0
  %2691 = vmatpush2.xpose.msra.mxu0 0.0
  %2692 = vmatprep.subr.mxu0 0.0
  %2693 = vmatpush2.xpose.msra.mxu0 0.0
  %2694 = vmatprep.subr.mxu0 0.0
  %2695 = vmatpush2.xpose.msra.mxu0 0.0
  %2696 = vmatprep.subr.mxu0 0.0
  %2697 = vmatpush2.xpose.msra.mxu0 0.0
  %2698 = vmatprep.subr.mxu0 0.0
  %2699 = vmatpush2.xpose.msra.mxu0 0.0
  %2700 = vmatprep.mubr.f32.mxu0 0.0
  %2701 = vmatmul.mubr.f32.gmra.mxu0 %v274
  %v2702 = vpop.f32.mrf.mxu0
  %v2703 = vadd.f32 0.0, %v2702
  %v2704 = vpop.f32.mrf.mxu0
  %2705 = vmatprep.mubr.f32.mxu0 0.0
  %2706 = vmatmul.mubr.f32.gmra.mxu0 %v277
  %v2707 = vpop.f32.mrf.mxu0
  %v2708 = vadd.f32 0.0, %v2707
  %v2709 = vpop.f32.mrf.mxu0
  %2710 = vdwg.mxu0
  %v2712 = vsel %vm272, %v2620, 0
  %2714 = vmatprep.subr.mxu0 0.0
  %2715 = vmatpush1.xpose.msra.mxu0 0.0
  %2716 = vmatprep.subr.mxu0 0.0
  %2717 = vmatpush1.xpose.msra.mxu0 0.0
  %2718 = vmatprep.subr.mxu0 0.0
  %2719 = vmatpush1.xpose.msra.mxu0 0.0
  %2720 = vmatprep.subr.mxu0 0.0
  %2721 = vmatpush1.xpose.msra.mxu0 0.0
  %2722 = vmatprep.subr.mxu0 0.0
  %2723 = vmatpush1.xpose.msra.mxu0 0.0
  %2724 = vmatprep.subr.mxu0 0.0
  %2725 = vmatpush1.xpose.msra.mxu0 0.0
  %2726 = vmatprep.subr.mxu0 0.0
  %2727 = vmatpush1.xpose.msra.mxu0 0.0
  %2728 = vmatprep.subr.mxu0 0.0
  %2729 = vmatpush1.xpose.msra.mxu0 0.0
  %2730 = vmatprep.subr.mxu0 0.0
  %2731 = vmatpush1.xpose.msra.mxu0 0.0
  %2732 = vmatprep.subr.mxu0 0.0
  %2733 = vmatpush1.xpose.msra.mxu0 0.0
  %2734 = vmatprep.subr.mxu0 0.0
  %2735 = vmatpush1.xpose.msra.mxu0 0.0
  %2736 = vmatprep.subr.mxu0 0.0
  %2737 = vmatpush1.xpose.msra.mxu0 0.0
  %2738 = vmatprep.subr.mxu0 0.0
  %2739 = vmatpush1.xpose.msra.mxu0 0.0
  %2740 = vmatprep.subr.mxu0 0.0
  %2741 = vmatpush1.xpose.msra.mxu0 0.0
  %2742 = vmatprep.subr.mxu0 0.0
  %2743 = vmatpush1.xpose.msra.mxu0 0.0
  %2744 = vmatprep.subr.mxu0 0.0
  %2745 = vmatpush1.xpose.msra.mxu0 %v2712
  %2746 = vmatprep.subr.mxu0 0.0
  %2747 = vmatpush2.xpose.msra.mxu0 0.0
  %2748 = vmatprep.subr.mxu0 0.0
  %2749 = vmatpush2.xpose.msra.mxu0 0.0
  %2750 = vmatprep.subr.mxu0 0.0
  %2751 = vmatpush2.xpose.msra.mxu0 0.0
  %2752 = vmatprep.subr.mxu0 0.0
  %2753 = vmatpush2.xpose.msra.mxu0 0.0
  %2754 = vmatprep.subr.mxu0 0.0
  %2755 = vmatpush2.xpose.msra.mxu0 0.0
  %2756 = vmatprep.subr.mxu0 0.0
  %2757 = vmatpush2.xpose.msra.mxu0 0.0
  %2758 = vmatprep.subr.mxu0 0.0
  %2759 = vmatpush2.xpose.msra.mxu0 0.0
  %2760 = vmatprep.subr.mxu0 0.0
  %2761 = vmatpush2.xpose.msra.mxu0 0.0
  %2762 = vmatprep.subr.mxu0 0.0
  %2763 = vmatpush2.xpose.msra.mxu0 0.0
  %2764 = vmatprep.subr.mxu0 0.0
  %2765 = vmatpush2.xpose.msra.mxu0 0.0
  %2766 = vmatprep.subr.mxu0 0.0
  %2767 = vmatpush2.xpose.msra.mxu0 0.0
  %2768 = vmatprep.subr.mxu0 0.0
  %2769 = vmatpush2.xpose.msra.mxu0 0.0
  %2770 = vmatprep.subr.mxu0 0.0
  %2771 = vmatpush2.xpose.msra.mxu0 0.0
  %2772 = vmatprep.subr.mxu0 0.0
  %2773 = vmatpush2.xpose.msra.mxu0 0.0
  %2774 = vmatprep.subr.mxu0 0.0
  %2775 = vmatpush2.xpose.msra.mxu0 0.0
  %2776 = vmatprep.subr.mxu0 0.0
  %2777 = vmatpush2.xpose.msra.mxu0 0.0
  %2778 = vmatprep.mubr.f32.mxu0 0.0
  %2779 = vmatmul.mubr.f32.gmra.mxu0 %v358
  %v2780 = vpop.f32.mrf.mxu0
  %v2781 = vadd.f32 0.0, %v2780
  %v2782 = vpop.f32.mrf.mxu0
  %2783 = vmatprep.mubr.f32.mxu0 0.0
  %2784 = vmatmul.mubr.f32.gmra.mxu0 %v361
  %v2785 = vpop.f32.mrf.mxu0
  %v2786 = vadd.f32 0.0, %v2785
  %v2787 = vpop.f32.mrf.mxu0
  %2788 = vdwg.mxu0
  %v2790 = vsel %vm272, %v2630, 0
  %2792 = vmatprep.subr.mxu0 0.0
  %2793 = vmatpush1.msra.mxu0 0.0
  %2794 = vmatprep.subr.mxu0 0.0
  %2795 = vmatpush1.msra.mxu0 0.0
  %2796 = vmatprep.subr.mxu0 0.0
  %2797 = vmatpush1.msra.mxu0 0.0
  %2798 = vmatprep.subr.mxu0 0.0
  %2799 = vmatpush1.msra.mxu0 0.0
  %2800 = vmatprep.subr.mxu0 0.0
  %2801 = vmatpush1.msra.mxu0 0.0
  %2802 = vmatprep.subr.mxu0 0.0
  %2803 = vmatpush1.msra.mxu0 0.0
  %2804 = vmatprep.subr.mxu0 0.0
  %2805 = vmatpush1.msra.mxu0 0.0
  %2806 = vmatprep.subr.mxu0 0.0
  %2807 = vmatpush1.msra.mxu0 0.0
  %2808 = vmatprep.subr.mxu0 0.0
  %2809 = vmatpush1.msra.mxu0 0.0
  %2810 = vmatprep.subr.mxu0 0.0
  %2811 = vmatpush1.msra.mxu0 0.0
  %2812 = vmatprep.subr.mxu0 0.0
  %2813 = vmatpush1.msra.mxu0 0.0
  %2814 = vmatprep.subr.mxu0 0.0
  %2815 = vmatpush1.msra.mxu0 0.0
  %2816 = vmatprep.subr.mxu0 0.0
  %2817 = vmatpush1.msra.mxu0 0.0
  %2818 = vmatprep.subr.mxu0 0.0
  %2819 = vmatpush1.msra.mxu0 0.0
  %2820 = vmatprep.subr.mxu0 0.0
  %2821 = vmatpush1.msra.mxu0 %v2708
  %2822 = vmatprep.subr.mxu0 0.0
  %2823 = vmatpush1.msra.mxu0 %v2703
  %2824 = vmatprep.subr.mxu0 0.0
  %2825 = vmatpush2.msra.mxu0 0.0
  %2826 = vmatprep.subr.mxu0 0.0
  %2827 = vmatpush2.msra.mxu0 0.0
  %2828 = vmatprep.subr.mxu0 0.0
  %2829 = vmatpush2.msra.mxu0 0.0
  %2830 = vmatprep.subr.mxu0 0.0
  %2831 = vmatpush2.msra.mxu0 0.0
  %2832 = vmatprep.subr.mxu0 0.0
  %2833 = vmatpush2.msra.mxu0 0.0
  %2834 = vmatprep.subr.mxu0 0.0
  %2835 = vmatpush2.msra.mxu0 0.0
  %2836 = vmatprep.subr.mxu0 0.0
  %2837 = vmatpush2.msra.mxu0 0.0
  %2838 = vmatprep.subr.mxu0 0.0
  %2839 = vmatpush2.msra.mxu0 0.0
  %2840 = vmatprep.subr.mxu0 0.0
  %2841 = vmatpush2.msra.mxu0 0.0
  %2842 = vmatprep.subr.mxu0 0.0
  %2843 = vmatpush2.msra.mxu0 0.0
  %2844 = vmatprep.subr.mxu0 0.0
  %2845 = vmatpush2.msra.mxu0 0.0
  %2846 = vmatprep.subr.mxu0 0.0
  %2847 = vmatpush2.msra.mxu0 0.0
  %2848 = vmatprep.subr.mxu0 0.0
  %2849 = vmatpush2.msra.mxu0 0.0
  %2850 = vmatprep.subr.mxu0 0.0
  %2851 = vmatpush2.msra.mxu0 0.0
  %2852 = vmatprep.subr.mxu0 0.0
  %2853 = vmatpush2.msra.mxu0 0.0
  %2854 = vmatprep.subr.mxu0 0.0
  %2855 = vmatpush2.msra.mxu0 0.0
  %2856 = vmatprep.mubr.f32.mxu0 0.0
  %2857 = vmatmul.mubr.f32.gmra.mxu0 %v2790
  %v2858 = vpop.f32.mrf.mxu0
  %v2859 = vadd.f32 0.0, %v2858
  %v2860 = vpop.f32.mrf.mxu0
  %2861 = vdwg.mxu0
  %v2863 = vsel %vm272, %v2632, 0
  %2865 = vmatprep.subr.mxu0 0.0
  %2866 = vmatpush1.msra.mxu0 0.0
  %2867 = vmatprep.subr.mxu0 0.0
  %2868 = vmatpush1.msra.mxu0 0.0
  %2869 = vmatprep.subr.mxu0 0.0
  %2870 = vmatpush1.msra.mxu0 0.0
  %2871 = vmatprep.subr.mxu0 0.0
  %2872 = vmatpush1.msra.mxu0 0.0
  %2873 = vmatprep.subr.mxu0 0.0
  %2874 = vmatpush1.msra.mxu0 0.0
  %2875 = vmatprep.subr.mxu0 0.0
  %2876 = vmatpush1.msra.mxu0 0.0
  %2877 = vmatprep.subr.mxu0 0.0
  %2878 = vmatpush1.msra.mxu0 0.0
  %2879 = vmatprep.subr.mxu0 0.0
  %2880 = vmatpush1.msra.mxu0 0.0
  %2881 = vmatprep.subr.mxu0 0.0
  %2882 = vmatpush1.msra.mxu0 0.0
  %2883 = vmatprep.subr.mxu0 0.0
  %2884 = vmatpush1.msra.mxu0 0.0
  %2885 = vmatprep.subr.mxu0 0.0
  %2886 = vmatpush1.msra.mxu0 0.0
  %2887 = vmatprep.subr.mxu0 0.0
  %2888 = vmatpush1.msra.mxu0 0.0
  %2889 = vmatprep.subr.mxu0 0.0
  %2890 = vmatpush1.msra.mxu0 0.0
  %2891 = vmatprep.subr.mxu0 0.0
  %2892 = vmatpush1.msra.mxu0 0.0
  %2893 = vmatprep.subr.mxu0 0.0
  %2894 = vmatpush1.msra.mxu0 %v2786
  %2895 = vmatprep.subr.mxu0 0.0
  %2896 = vmatpush1.msra.mxu0 %v2781
  %2897 = vmatprep.subr.mxu0 0.0
  %2898 = vmatpush2.msra.mxu0 0.0
  %2899 = vmatprep.subr.mxu0 0.0
  %2900 = vmatpush2.msra.mxu0 0.0
  %2901 = vmatprep.subr.mxu0 0.0
  %2902 = vmatpush2.msra.mxu0 0.0
  %2903 = vmatprep.subr.mxu0 0.0
  %2904 = vmatpush2.msra.mxu0 0.0
  %2905 = vmatprep.subr.mxu0 0.0
  %2906 = vmatpush2.msra.mxu0 0.0
  %2907 = vmatprep.subr.mxu0 0.0
  %2908 = vmatpush2.msra.mxu0 0.0
  %2909 = vmatprep.subr.mxu0 0.0
  %2910 = vmatpush2.msra.mxu0 0.0
  %2911 = vmatprep.subr.mxu0 0.0
  %2912 = vmatpush2.msra.mxu0 0.0
  %2913 = vmatprep.subr.mxu0 0.0
  %2914 = vmatpush2.msra.mxu0 0.0
  %2915 = vmatprep.subr.mxu0 0.0
  %2916 = vmatpush2.msra.mxu0 0.0
  %2917 = vmatprep.subr.mxu0 0.0
  %2918 = vmatpush2.msra.mxu0 0.0
  %2919 = vmatprep.subr.mxu0 0.0
  %2920 = vmatpush2.msra.mxu0 0.0
  %2921 = vmatprep.subr.mxu0 0.0
  %2922 = vmatpush2.msra.mxu0 0.0
  %2923 = vmatprep.subr.mxu0 0.0
  %2924 = vmatpush2.msra.mxu0 0.0
  %2925 = vmatprep.subr.mxu0 0.0
  %2926 = vmatpush2.msra.mxu0 0.0
  %2927 = vmatprep.subr.mxu0 0.0
  %2928 = vmatpush2.msra.mxu0 0.0
  %2929 = vmatprep.mubr.f32.mxu0 0.0
  %2930 = vmatmul.mubr.f32.gmra.mxu0 %v2863
  %v2931 = vpop.f32.mrf.mxu0
  %v2932 = vadd.f32 0.0, %v2931
  %v2933 = vpop.f32.mrf.mxu0
  %2934 = vdwg.mxu0
  %v2937 = vrot.slane %v2932, 7
  %v2938 = vsel %vm590, %v2937, %v2859
  %v2940 = vrot.slane %v2859, 1
  %v2941 = vsel %vm590, %v2932, %v2940
  %2942 = vrot.lane.b32.xlu0 %v2941, 4
  %v2943 = vpop.permute.xlu0 %2942
  %v2945 = vrot.slane %v2859, 2
  %v2946 = vrot.slane %v2932, 1
  %v2947 = vsel %vm590, %v2946, %v2945
  %2948 = vrot.lane.b32.xlu0 %v2947, 8
  %v2949 = vpop.permute.xlu0 %2948
  %v2951 = vrot.slane %v2859, 3
  %v2952 = vrot.slane %v2932, 2
  %v2953 = vsel %vm590, %v2952, %v2951
  %2954 = vrot.lane.b32.xlu0 %v2953, 12
  %v2955 = vpop.permute.xlu0 %2954
  %v2957 = vsel %vm610, %v2938, %v2943
  %v2958 = vsel %vm612, %v2957, %v2949
  %v2959 = vsel %vm614, %v2958, %v2955
  %2960 = vset.pattern.permute.xlu0 46
  %2961 = vperm.xlu0 %2960, %v2430
  %v2962 = vpop.permute.xlu0 %2961
  %v2964 = vmul.f32 %v2959, %v2962
  %v2965 = vld [vmem:[%s3] sm:$0xff]
  %v2966 = vld [vmem:[%s3 + $0x8] sm:$0xff]
  %v2967 = vld [vmem:[%s4] sm:$0xff]
  %v2968 = vld [vmem:[%s4 + $0x8] sm:$0xff]
  %v2969 = vld [vmem:[%s4 + $0x10] sm:$0xff]
  %v2970 = vld [vmem:[%s4 + $0x18] sm:$0xff]
  %2971 = vrot.lane.b32.xlu0 %v2412, 118
  %v2972 = vpop.permute.xlu0 %2971
  %v2973 = vsel %vm627, %v2972, 0
  %2975 = vmatprep.subr.mxu0 0.0
  %2976 = vmatpush1.msra.mxu0 0.0
  %2977 = vmatprep.subr.mxu0 0.0
  %2978 = vmatpush1.msra.mxu0 0.0
  %2979 = vmatprep.subr.mxu0 0.0
  %2980 = vmatpush1.msra.mxu0 0.0
  %2981 = vmatprep.subr.mxu0 0.0
  %2982 = vmatpush1.msra.mxu0 0.0
  %2983 = vmatprep.subr.mxu0 0.0
  %2984 = vmatpush1.msra.mxu0 0.0
  %2985 = vmatprep.subr.mxu0 0.0
  %2986 = vmatpush1.msra.mxu0 0.0
  %2987 = vmatprep.subr.mxu0 0.0
  %2988 = vmatpush1.msra.mxu0 0.0
  %2989 = vmatprep.subr.mxu0 0.0
  %2990 = vmatpush1.msra.mxu0 0.0
  %2991 = vmatprep.subr.mxu0 0.0
  %2992 = vmatpush1.msra.mxu0 0.0
  %2993 = vmatprep.subr.mxu0 0.0
  %2994 = vmatpush1.msra.mxu0 0.0
  %2995 = vmatprep.subr.mxu0 0.0
  %2996 = vmatpush1.msra.mxu0 0.0
  %2997 = vmatprep.subr.mxu0 0.0
  %2998 = vmatpush1.msra.mxu0 0.0
  %2999 = vmatprep.subr.mxu0 0.0
  %3000 = vmatpush1.msra.mxu0 %v2970
  %3001 = vmatprep.subr.mxu0 0.0
  %3002 = vmatpush1.msra.mxu0 %v2969
  %3003 = vmatprep.subr.mxu0 0.0
  %3004 = vmatpush1.msra.mxu0 %v2968
  %3005 = vmatprep.subr.mxu0 0.0
  %3006 = vmatpush1.msra.mxu0 %v2967
  %3007 = vmatprep.subr.mxu0 0.0
  %3008 = vmatpush2.msra.mxu0 0.0
  %3009 = vmatprep.subr.mxu0 0.0
  %3010 = vmatpush2.msra.mxu0 0.0
  %3011 = vmatprep.subr.mxu0 0.0
  %3012 = vmatpush2.msra.mxu0 0.0
  %3013 = vmatprep.subr.mxu0 0.0
  %3014 = vmatpush2.msra.mxu0 0.0
  %3015 = vmatprep.subr.mxu0 0.0
  %3016 = vmatpush2.msra.mxu0 0.0
  %3017 = vmatprep.subr.mxu0 0.0
  %3018 = vmatpush2.msra.mxu0 0.0
  %3019 = vmatprep.subr.mxu0 0.0
  %3020 = vmatpush2.msra.mxu0 0.0
  %3021 = vmatprep.subr.mxu0 0.0
  %3022 = vmatpush2.msra.mxu0 0.0
  %3023 = vmatprep.subr.mxu0 0.0
  %3024 = vmatpush2.msra.mxu0 0.0
  %3025 = vmatprep.subr.mxu0 0.0
  %3026 = vmatpush2.msra.mxu0 0.0
  %3027 = vmatprep.subr.mxu0 0.0
  %3028 = vmatpush2.msra.mxu0 0.0
  %3029 = vmatprep.subr.mxu0 0.0
  %3030 = vmatpush2.msra.mxu0 0.0
  %3031 = vmatprep.subr.mxu0 0.0
  %3032 = vmatpush2.msra.mxu0 0.0
  %3033 = vmatprep.subr.mxu0 0.0
  %3034 = vmatpush2.msra.mxu0 0.0
  %3035 = vmatprep.subr.mxu0 0.0
  %3036 = vmatpush2.msra.mxu0 0.0
  %3037 = vmatprep.subr.mxu0 0.0
  %3038 = vmatpush2.msra.mxu0 0.0
  %3039 = vmatprep.mubr.f32.mxu0 0.0
  %3040 = vmatmul.mubr.f32.gmra.mxu0 %v2973
  %v3041 = vpop.f32.mrf.mxu0
  %v3042 = vadd.f32 0.0, %v3041
  %v3043 = vpop.f32.mrf.mxu0
  %3044 = vdwg.mxu0
  %v3046 = vsel %vm272, %v2964, 0
  %3048 = vmatprep.subr.mxu0 0.0
  %3049 = vmatpush1.msra.mxu0 0.0
  %3050 = vmatprep.subr.mxu0 0.0
  %3051 = vmatpush1.msra.mxu0 0.0
  %3052 = vmatprep.subr.mxu0 0.0
  %3053 = vmatpush1.msra.mxu0 0.0
  %3054 = vmatprep.subr.mxu0 0.0
  %3055 = vmatpush1.msra.mxu0 0.0
  %3056 = vmatprep.subr.mxu0 0.0
  %3057 = vmatpush1.msra.mxu0 0.0
  %3058 = vmatprep.subr.mxu0 0.0
  %3059 = vmatpush1.msra.mxu0 0.0
  %3060 = vmatprep.subr.mxu0 0.0
  %3061 = vmatpush1.msra.mxu0 0.0
  %3062 = vmatprep.subr.mxu0 0.0
  %3063 = vmatpush1.msra.mxu0 0.0
  %3064 = vmatprep.subr.mxu0 0.0
  %3065 = vmatpush1.msra.mxu0 0.0
  %3066 = vmatprep.subr.mxu0 0.0
  %3067 = vmatpush1.msra.mxu0 0.0
  %3068 = vmatprep.subr.mxu0 0.0
  %3069 = vmatpush1.msra.mxu0 0.0
  %3070 = vmatprep.subr.mxu0 0.0
  %3071 = vmatpush1.msra.mxu0 0.0
  %3072 = vmatprep.subr.mxu0 0.0
  %3073 = vmatpush1.msra.mxu0 0.0
  %3074 = vmatprep.subr.mxu0 0.0
  %3075 = vmatpush1.msra.mxu0 0.0
  %3076 = vmatprep.subr.mxu0 0.0
  %3077 = vmatpush1.msra.mxu0 %v2966
  %3078 = vmatprep.subr.mxu0 0.0
  %3079 = vmatpush1.msra.mxu0 %v2965
  %3080 = vmatprep.subr.mxu0 0.0
  %3081 = vmatpush2.msra.mxu0 0.0
  %3082 = vmatprep.subr.mxu0 0.0
  %3083 = vmatpush2.msra.mxu0 0.0
  %3084 = vmatprep.subr.mxu0 0.0
  %3085 = vmatpush2.msra.mxu0 0.0
  %3086 = vmatprep.subr.mxu0 0.0
  %3087 = vmatpush2.msra.mxu0 0.0
  %3088 = vmatprep.subr.mxu0 0.0
  %3089 = vmatpush2.msra.mxu0 0.0
  %3090 = vmatprep.subr.mxu0 0.0
  %3091 = vmatpush2.msra.mxu0 0.0
  %3092 = vmatprep.subr.mxu0 0.0
  %3093 = vmatpush2.msra.mxu0 0.0
  %3094 = vmatprep.subr.mxu0 0.0
  %3095 = vmatpush2.msra.mxu0 0.0
  %3096 = vmatprep.subr.mxu0 0.0
  %3097 = vmatpush2.msra.mxu0 0.0
  %3098 = vmatprep.subr.mxu0 0.0
  %3099 = vmatpush2.msra.mxu0 0.0
  %3100 = vmatprep.subr.mxu0 0.0
  %3101 = vmatpush2.msra.mxu0 0.0
  %3102 = vmatprep.subr.mxu0 0.0
  %3103 = vmatpush2.msra.mxu0 0.0
  %3104 = vmatprep.subr.mxu0 0.0
  %3105 = vmatpush2.msra.mxu0 0.0
  %3106 = vmatprep.subr.mxu0 0.0
  %3107 = vmatpush2.msra.mxu0 0.0
  %3108 = vmatprep.subr.mxu0 0.0
  %3109 = vmatpush2.msra.mxu0 0.0
  %3110 = vmatprep.subr.mxu0 0.0
  %3111 = vmatpush2.msra.mxu0 0.0
  %3112 = vmatprep.mubr.f32.mxu0 0.0
  %3113 = vmatmul.mubr.f32.gmra.mxu0 %v3046
  %v3114 = vpop.f32.mrf.mxu0
  %v3115 = vadd.f32 %v3042, %v3114
  %v3116 = vpop.f32.mrf.mxu0
  %3117 = vdwg.mxu0
  %v3118 = vld [vmem:[%s5] sm:$0xff]
  %v3119 = vld [vmem:[%s5 + $0x8] sm:$0xff]
  %v3120 = vld [vmem:[%s5 + $0x10] sm:$0xff]
  %v3121 = vld [vmem:[%s5 + $0x18] sm:$0xff]
  %3122 = vmatprep.subr.mxu0 0.0
  %3123 = vmatpush1.msra.mxu0 0.0
  %3124 = vmatprep.subr.mxu0 0.0
  %3125 = vmatpush1.msra.mxu0 0.0
  %3126 = vmatprep.subr.mxu0 0.0
  %3127 = vmatpush1.msra.mxu0 0.0
  %3128 = vmatprep.subr.mxu0 0.0
  %3129 = vmatpush1.msra.mxu0 0.0
  %3130 = vmatprep.subr.mxu0 0.0
  %3131 = vmatpush1.msra.mxu0 0.0
  %3132 = vmatprep.subr.mxu0 0.0
  %3133 = vmatpush1.msra.mxu0 0.0
  %3134 = vmatprep.subr.mxu0 0.0
  %3135 = vmatpush1.msra.mxu0 0.0
  %3136 = vmatprep.subr.mxu0 0.0
  %3137 = vmatpush1.msra.mxu0 0.0
  %3138 = vmatprep.subr.mxu0 0.0
  %3139 = vmatpush1.msra.mxu0 0.0
  %3140 = vmatprep.subr.mxu0 0.0
  %3141 = vmatpush1.msra.mxu0 0.0
  %3142 = vmatprep.subr.mxu0 0.0
  %3143 = vmatpush1.msra.mxu0 0.0
  %3144 = vmatprep.subr.mxu0 0.0
  %3145 = vmatpush1.msra.mxu0 0.0
  %3146 = vmatprep.subr.mxu0 0.0
  %3147 = vmatpush1.msra.mxu0 %v3121
  %3148 = vmatprep.subr.mxu0 0.0
  %3149 = vmatpush1.msra.mxu0 %v3120
  %3150 = vmatprep.subr.mxu0 0.0
  %3151 = vmatpush1.msra.mxu0 %v3119
  %3152 = vmatprep.subr.mxu0 0.0
  %3153 = vmatpush1.msra.mxu0 %v3118
  %3154 = vmatprep.subr.mxu0 0.0
  %3155 = vmatpush2.msra.mxu0 0.0
  %3156 = vmatprep.subr.mxu0 0.0
  %3157 = vmatpush2.msra.mxu0 0.0
  %3158 = vmatprep.subr.mxu0 0.0
  %3159 = vmatpush2.msra.mxu0 0.0
  %3160 = vmatprep.subr.mxu0 0.0
  %3161 = vmatpush2.msra.mxu0 0.0
  %3162 = vmatprep.subr.mxu0 0.0
  %3163 = vmatpush2.msra.mxu0 0.0
  %3164 = vmatprep.subr.mxu0 0.0
  %3165 = vmatpush2.msra.mxu0 0.0
  %3166 = vmatprep.subr.mxu0 0.0
  %3167 = vmatpush2.msra.mxu0 0.0
  %3168 = vmatprep.subr.mxu0 0.0
  %3169 = vmatpush2.msra.mxu0 0.0
  %3170 = vmatprep.subr.mxu0 0.0
  %3171 = vmatpush2.msra.mxu0 0.0
  %3172 = vmatprep.subr.mxu0 0.0
  %3173 = vmatpush2.msra.mxu0 0.0
  %3174 = vmatprep.subr.mxu0 0.0
  %3175 = vmatpush2.msra.mxu0 0.0
  %3176 = vmatprep.subr.mxu0 0.0
  %3177 = vmatpush2.msra.mxu0 0.0
  %3178 = vmatprep.subr.mxu0 0.0
  %3179 = vmatpush2.msra.mxu0 0.0
  %3180 = vmatprep.subr.mxu0 0.0
  %3181 = vmatpush2.msra.mxu0 0.0
  %3182 = vmatprep.subr.mxu0 0.0
  %3183 = vmatpush2.msra.mxu0 0.0
  %3184 = vmatprep.subr.mxu0 0.0
  %3185 = vmatpush2.msra.mxu0 0.0
  %3186 = vmatprep.mubr.f32.mxu0 0.0
  %3187 = vmatmul.mubr.f32.gmra.mxu0 %v2067
  %v3188 = vpop.f32.mrf.mxu0
  %v3189 = vadd.f32 0.0, %v3188
  %v3190 = vpop.f32.mrf.mxu0
  %3191 = vdwg.mxu0
  %v3192 = vadd.f32 %v3115, %v3189
  %v3193 = vld [vmem:[%s6] sm:$0x1]
  %v3195 = vlaneseq
  %v3196 = vshrl.u32 %v3195, 7
  %v3197 = vsub.s32 0, %v3196
  %v3198 = vrot.slane %v3193, %v3197
  %v3200 = vadd.f32 %v3192, %v3198
  %v3201 = vxor.u32 %v3200, 2147483648
  %v3202 = vmul.f32 %v3201, 1.442695
  %v3203 = vpow.pop %v3202
  %v3204 = vadd.f32 %v3203, 1.0
  %v3205 = vrcp.pop %v3204
  %v3206 = vmul.f32 1.0, %v3205
  %v3207 = vmul.f32 %v3206, %v2046
  %v3208 = vtanh.pop %v3200
  %3210 = vrot.lane.b32.xlu0 %v3208, 64
  %v3211 = vpop.permute.xlu0 %3210
  %v3213 = vmul.f32 %v3206, %v3211
  %3215 = vrot.lane.b32.xlu0 %v3213, 32
  %v3216 = vpop.permute.xlu0 %3215
  %v3218 = vadd.f32 %v3207, %v3216
  %v3219 = vtanh.pop %v3218
  %3221 = vrot.lane.b32.xlu0 %v3219, 64
  %v3222 = vpop.permute.xlu0 %3221
  %v3224 = vmul.f32 %v3206, %v3222
  %v3225 = vld [vmem:[%s7] sm:$0xff]
  %v3226 = vld [vmem:[%s7 + $0x8] sm:$0xff]
  %v3227 = vld [vmem:[%s7 + $0x10] sm:$0xff]
  %v3228 = vld [vmem:[%s7 + $0x18] sm:$0xff]
  %v3229 = vld [vmem:[%s8] sm:$0x1]
  %v3231 = vlaneseq
  %v3232 = vshrl.u32 %v3231, 7
  %v3233 = vsub.s32 0, %v3232
  %v3234 = vrot.slane %v3229, %v3233
  %3237 = vrot.lane.b32.xlu0 %v3224, 32
  %v3238 = vpop.permute.xlu0 %3237
  %v3239 = vsel %vm627, %v3238, 0
  %3241 = vmatprep.subr.mxu0 0.0
  %3242 = vmatpush1.msra.mxu0 0.0
  %3243 = vmatprep.subr.mxu0 0.0
  %3244 = vmatpush1.msra.mxu0 0.0
  %3245 = vmatprep.subr.mxu0 0.0
  %3246 = vmatpush1.msra.mxu0 0.0
  %3247 = vmatprep.subr.mxu0 0.0
  %3248 = vmatpush1.msra.mxu0 0.0
  %3249 = vmatprep.subr.mxu0 0.0
  %3250 = vmatpush1.msra.mxu0 0.0
  %3251 = vmatprep.subr.mxu0 0.0
  %3252 = vmatpush1.msra.mxu0 0.0
  %3253 = vmatprep.subr.mxu0 0.0
  %3254 = vmatpush1.msra.mxu0 0.0
  %3255 = vmatprep.subr.mxu0 0.0
  %3256 = vmatpush1.msra.mxu0 0.0
  %3257 = vmatprep.subr.mxu0 0.0
  %3258 = vmatpush1.msra.mxu0 0.0
  %3259 = vmatprep.subr.mxu0 0.0
  %3260 = vmatpush1.msra.mxu0 0.0
  %3261 = vmatprep.subr.mxu0 0.0
  %3262 = vmatpush1.msra.mxu0 0.0
  %3263 = vmatprep.subr.mxu0 0.0
  %3264 = vmatpush1.msra.mxu0 0.0
  %3265 = vmatprep.subr.mxu0 0.0
  %3266 = vmatpush1.msra.mxu0 %v3228
  %3267 = vmatprep.subr.mxu0 0.0
  %3268 = vmatpush1.msra.mxu0 %v3227
  %3269 = vmatprep.subr.mxu0 0.0
  %3270 = vmatpush1.msra.mxu0 %v3226
  %3271 = vmatprep.subr.mxu0 0.0
  %3272 = vmatpush1.msra.mxu0 %v3225
  %3273 = vmatprep.subr.mxu0 0.0
  %3274 = vmatpush2.msra.mxu0 0.0
  %3275 = vmatprep.subr.mxu0 0.0
  %3276 = vmatpush2.msra.mxu0 0.0
  %3277 = vmatprep.subr.mxu0 0.0
  %3278 = vmatpush2.msra.mxu0 0.0
  %3279 = vmatprep.subr.mxu0 0.0
  %3280 = vmatpush2.msra.mxu0 0.0
  %3281 = vmatprep.subr.mxu0 0.0
  %3282 = vmatpush2.msra.mxu0 0.0
  %3283 = vmatprep.subr.mxu0 0.0
  %3284 = vmatpush2.msra.mxu0 0.0
  %3285 = vmatprep.subr.mxu0 0.0
  %3286 = vmatpush2.msra.mxu0 0.0
  %3287 = vmatprep.subr.mxu0 0.0
  %3288 = vmatpush2.msra.mxu0 0.0
  %3289 = vmatprep.subr.mxu0 0.0
  %3290 = vmatpush2.msra.mxu0 0.0
  %3291 = vmatprep.subr.mxu0 0.0
  %3292 = vmatpush2.msra.mxu0 0.0
  %3293 = vmatprep.subr.mxu0 0.0
  %3294 = vmatpush2.msra.mxu0 0.0
  %3295 = vmatprep.subr.mxu0 0.0
  %3296 = vmatpush2.msra.mxu0 0.0
  %3297 = vmatprep.subr.mxu0 0.0
  %3298 = vmatpush2.msra.mxu0 0.0
  %3299 = vmatprep.subr.mxu0 0.0
  %3300 = vmatpush2.msra.mxu0 0.0
  %3301 = vmatprep.subr.mxu0 0.0
  %3302 = vmatpush2.msra.mxu0 0.0
  %3303 = vmatprep.subr.mxu0 0.0
  %3304 = vmatpush2.msra.mxu0 0.0
  %3305 = vmatprep.mubr.f32.mxu0 0.0
  %3306 = vmatmul.mubr.f32.gmra.mxu0 %v3239
  %v3307 = vpop.f32.mrf.mxu0
  %v3308 = vadd.f32 %v3234, %v3307
  %v3309 = vpop.f32.mrf.mxu0
  %3310 = vdwg.mxu0
  %v3311 = vmul.f32 %v3308, 1.442695
  %v3312 = vpow.pop %v3311
  %s3313 = scalar_lea.vmem %s1, 4
  %v3314 = vld [vmem:[%s3313] sm:$0x3]
  %3316 = vrot.lane.b32.xlu0 %v3312, 120
  %v3317 = vpop.permute.xlu0 %3316
  %v3319 = vmul.f32 %v3314, %v3317
  %v3320 = vadd.f32 %v3308, %v3319
  %v3321 = vld [vmem:[%s9] sm:$0xff]
  %v3322 = vld [vmem:[%s10] sm:$0xff]
  %v3323 = vld [vmem:[%s10 + $0x8] sm:$0xff]
  %v3324 = vld [vmem:[%s10 + $0x10] sm:$0xff]
  %v3325 = vld [vmem:[%s10 + $0x18] sm:$0xff]
  %3326 = vmatprep.subr.mxu0 0.0
  %3327 = vmatpush1.msra.mxu0 0.0
  %3328 = vmatprep.subr.mxu0 0.0
  %3329 = vmatpush1.msra.mxu0 0.0
  %3330 = vmatprep.subr.mxu0 0.0
  %3331 = vmatpush1.msra.mxu0 0.0
  %3332 = vmatprep.subr.mxu0 0.0
  %3333 = vmatpush1.msra.mxu0 0.0
  %3334 = vmatprep.subr.mxu0 0.0
  %3335 = vmatpush1.msra.mxu0 0.0
  %3336 = vmatprep.subr.mxu0 0.0
  %3337 = vmatpush1.msra.mxu0 0.0
  %3338 = vmatprep.subr.mxu0 0.0
  %3339 = vmatpush1.msra.mxu0 0.0
  %3340 = vmatprep.subr.mxu0 0.0
  %3341 = vmatpush1.msra.mxu0 0.0
  %3342 = vmatprep.subr.mxu0 0.0
  %3343 = vmatpush1.msra.mxu0 0.0
  %3344 = vmatprep.subr.mxu0 0.0
  %3345 = vmatpush1.msra.mxu0 0.0
  %3346 = vmatprep.subr.mxu0 0.0
  %3347 = vmatpush1.msra.mxu0 0.0
  %3348 = vmatprep.subr.mxu0 0.0
  %3349 = vmatpush1.msra.mxu0 0.0
  %3350 = vmatprep.subr.mxu0 0.0
  %3351 = vmatpush1.msra.mxu0 %v3325
  %3352 = vmatprep.subr.mxu0 0.0
  %3353 = vmatpush1.msra.mxu0 %v3324
  %3354 = vmatprep.subr.mxu0 0.0
  %3355 = vmatpush1.msra.mxu0 %v3323
  %3356 = vmatprep.subr.mxu0 0.0
  %3357 = vmatpush1.msra.mxu0 %v3322
  %3358 = vmatprep.subr.mxu0 0.0
  %3359 = vmatpush2.msra.mxu0 0.0
  %3360 = vmatprep.subr.mxu0 0.0
  %3361 = vmatpush2.msra.mxu0 0.0
  %3362 = vmatprep.subr.mxu0 0.0
  %3363 = vmatpush2.msra.mxu0 0.0
  %3364 = vmatprep.subr.mxu0 0.0
  %3365 = vmatpush2.msra.mxu0 0.0
  %3366 = vmatprep.subr.mxu0 0.0
  %3367 = vmatpush2.msra.mxu0 0.0
  %3368 = vmatprep.subr.mxu0 0.0
  %3369 = vmatpush2.msra.mxu0 0.0
  %3370 = vmatprep.subr.mxu0 0.0
  %3371 = vmatpush2.msra.mxu0 0.0
  %3372 = vmatprep.subr.mxu0 0.0
  %3373 = vmatpush2.msra.mxu0 0.0
  %3374 = vmatprep.subr.mxu0 0.0
  %3375 = vmatpush2.msra.mxu0 0.0
  %3376 = vmatprep.subr.mxu0 0.0
  %3377 = vmatpush2.msra.mxu0 0.0
  %3378 = vmatprep.subr.mxu0 0.0
  %3379 = vmatpush2.msra.mxu0 0.0
  %3380 = vmatprep.subr.mxu0 0.0
  %3381 = vmatpush2.msra.mxu0 0.0
  %3382 = vmatprep.subr.mxu0 0.0
  %3383 = vmatpush2.msra.mxu0 0.0
  %3384 = vmatprep.subr.mxu0 0.0
  %3385 = vmatpush2.msra.mxu0 0.0
  %3386 = vmatprep.subr.mxu0 0.0
  %3387 = vmatpush2.msra.mxu0 0.0
  %3388 = vmatprep.subr.mxu0 0.0
  %3389 = vmatpush2.msra.mxu0 0.0
  %3390 = vmatprep.mubr.f32.mxu0 0.0
  %3391 = vmatmul.mubr.f32.gmra.mxu0 %v2973
  %v3392 = vpop.f32.mrf.mxu0
  %v3393 = vadd.f32 0.0, %v3392
  %v3394 = vpop.f32.mrf.mxu0
  %3395 = vdwg.mxu0
  %v3397 = vsel %vm612, %v3320, 0
  %3399 = vmatprep.subr.mxu0 0.0
  %3400 = vmatpush1.msra.mxu0 0.0
  %3401 = vmatprep.subr.mxu0 0.0
  %3402 = vmatpush1.msra.mxu0 0.0
  %3403 = vmatprep.subr.mxu0 0.0
  %3404 = vmatpush1.msra.mxu0 0.0
  %3405 = vmatprep.subr.mxu0 0.0
  %3406 = vmatpush1.msra.mxu0 0.0
  %3407 = vmatprep.subr.mxu0 0.0
  %3408 = vmatpush1.msra.mxu0 0.0
  %3409 = vmatprep.subr.mxu0 0.0
  %3410 = vmatpush1.msra.mxu0 0.0
  %3411 = vmatprep.subr.mxu0 0.0
  %3412 = vmatpush1.msra.mxu0 0.0
  %3413 = vmatprep.subr.mxu0 0.0
  %3414 = vmatpush1.msra.mxu0 0.0
  %3415 = vmatprep.subr.mxu0 0.0
  %3416 = vmatpush1.msra.mxu0 0.0
  %3417 = vmatprep.subr.mxu0 0.0
  %3418 = vmatpush1.msra.mxu0 0.0
  %3419 = vmatprep.subr.mxu0 0.0
  %3420 = vmatpush1.msra.mxu0 0.0
  %3421 = vmatprep.subr.mxu0 0.0
  %3422 = vmatpush1.msra.mxu0 0.0
  %3423 = vmatprep.subr.mxu0 0.0
  %3424 = vmatpush1.msra.mxu0 0.0
  %3425 = vmatprep.subr.mxu0 0.0
  %3426 = vmatpush1.msra.mxu0 0.0
  %3427 = vmatprep.subr.mxu0 0.0
  %3428 = vmatpush1.msra.mxu0 0.0
  %3429 = vmatprep.subr.mxu0 0.0
  %3430 = vmatpush1.msra.mxu0 %v3321
  %3431 = vmatprep.subr.mxu0 0.0
  %3432 = vmatpush2.msra.mxu0 0.0
  %3433 = vmatprep.subr.mxu0 0.0
  %3434 = vmatpush2.msra.mxu0 0.0
  %3435 = vmatprep.subr.mxu0 0.0
  %3436 = vmatpush2.msra.mxu0 0.0
  %3437 = vmatprep.subr.mxu0 0.0
  %3438 = vmatpush2.msra.mxu0 0.0
  %3439 = vmatprep.subr.mxu0 0.0
  %3440 = vmatpush2.msra.mxu0 0.0
  %3441 = vmatprep.subr.mxu0 0.0
  %3442 = vmatpush2.msra.mxu0 0.0
  %3443 = vmatprep.subr.mxu0 0.0
  %3444 = vmatpush2.msra.mxu0 0.0
  %3445 = vmatprep.subr.mxu0 0.0
  %3446 = vmatpush2.msra.mxu0 0.0
  %3447 = vmatprep.subr.mxu0 0.0
  %3448 = vmatpush2.msra.mxu0 0.0
  %3449 = vmatprep.subr.mxu0 0.0
  %3450 = vmatpush2.msra.mxu0 0.0
  %3451 = vmatprep.subr.mxu0 0.0
  %3452 = vmatpush2.msra.mxu0 0.0
  %3453 = vmatprep.subr.mxu0 0.0
  %3454 = vmatpush2.msra.mxu0 0.0
  %3455 = vmatprep.subr.mxu0 0.0
  %3456 = vmatpush2.msra.mxu0 0.0
  %3457 = vmatprep.subr.mxu0 0.0
  %3458 = vmatpush2.msra.mxu0 0.0
  %3459 = vmatprep.subr.mxu0 0.0
  %3460 = vmatpush2.msra.mxu0 0.0
  %3461 = vmatprep.subr.mxu0 0.0
  %3462 = vmatpush2.msra.mxu0 0.0
  %3463 = vmatprep.mubr.f32.mxu0 0.0
  %3464 = vmatmul.mubr.f32.gmra.mxu0 %v3397
  %v3465 = vpop.f32.mrf.mxu0
  %v3466 = vadd.f32 %v3393, %v3465
  %v3467 = vpop.f32.mrf.mxu0
  %3468 = vdwg.mxu0
  %v3469 = vld [vmem:[%s11] sm:$0x1]
  %v3471 = vlaneseq
  %v3472 = vshrl.u32 %v3471, 7
  %v3473 = vsub.s32 0, %v3472
  %v3474 = vrot.slane %v3469, %v3473
  %v3476 = vadd.f32 %v3466, %v3474
  %v3477 = vxor.u32 %v3476, 2147483648
  %v3478 = vmul.f32 %v3477, 1.442695
  %v3479 = vpow.pop %v3478
  %v3480 = vadd.f32 %v3479, 1.0
  %v3481 = vrcp.pop %v3480
  %v3482 = vmul.f32 1.0, %v3481
  %v3483 = vmul.f32 %v3482, %v2322
  %v3484 = vtanh.pop %v3476
  %3486 = vrot.lane.b32.xlu0 %v3484, 64
  %v3487 = vpop.permute.xlu0 %3486
  %v3489 = vmul.f32 %v3482, %v3487
  %3491 = vrot.lane.b32.xlu0 %v3489, 32
  %v3492 = vpop.permute.xlu0 %3491
  %v3494 = vadd.f32 %v3483, %v3492
  %v3495 = vtanh.pop %v3494
  %3497 = vrot.lane.b32.xlu0 %v3495, 64
  %v3498 = vpop.permute.xlu0 %3497
  %v3500 = vmul.f32 %v3482, %v3498
  %v3501 = vld [vmem:[%s12] sm:$0xff]
  %v3502 = vld [vmem:[%s12 + $0x8] sm:$0xff]
  %v3503 = vld [vmem:[%s12 + $0x10] sm:$0xff]
  %v3504 = vld [vmem:[%s12 + $0x18] sm:$0xff]
  %v3505 = vld [vmem:[%s13] sm:$0x1]
  %v3507 = vlaneseq
  %v3508 = vshrl.u32 %v3507, 7
  %v3509 = vsub.s32 0, %v3508
  %v3510 = vrot.slane %v3505, %v3509
  %3513 = vrot.lane.b32.xlu0 %v3500, 32
  %v3514 = vpop.permute.xlu0 %3513
  %v3515 = vsel %vm627, %v3514, 0
  %3517 = vmatprep.subr.mxu0 0.0
  %3518 = vmatpush1.msra.mxu0 0.0
  %3519 = vmatprep.subr.mxu0 0.0
  %3520 = vmatpush1.msra.mxu0 0.0
  %3521 = vmatprep.subr.mxu0 0.0
  %3522 = vmatpush1.msra.mxu0 0.0
  %3523 = vmatprep.subr.mxu0 0.0
  %3524 = vmatpush1.msra.mxu0 0.0
  %3525 = vmatprep.subr.mxu0 0.0
  %3526 = vmatpush1.msra.mxu0 0.0
  %3527 = vmatprep.subr.mxu0 0.0
  %3528 = vmatpush1.msra.mxu0 0.0
  %3529 = vmatprep.subr.mxu0 0.0
  %3530 = vmatpush1.msra.mxu0 0.0
  %3531 = vmatprep.subr.mxu0 0.0
  %3532 = vmatpush1.msra.mxu0 0.0
  %3533 = vmatprep.subr.mxu0 0.0
  %3534 = vmatpush1.msra.mxu0 0.0
  %3535 = vmatprep.subr.mxu0 0.0
  %3536 = vmatpush1.msra.mxu0 0.0
  %3537 = vmatprep.subr.mxu0 0.0
  %3538 = vmatpush1.msra.mxu0 0.0
  %3539 = vmatprep.subr.mxu0 0.0
  %3540 = vmatpush1.msra.mxu0 0.0
  %3541 = vmatprep.subr.mxu0 0.0
  %3542 = vmatpush1.msra.mxu0 %v3504
  %3543 = vmatprep.subr.mxu0 0.0
  %3544 = vmatpush1.msra.mxu0 %v3503
  %3545 = vmatprep.subr.mxu0 0.0
  %3546 = vmatpush1.msra.mxu0 %v3502
  %3547 = vmatprep.subr.mxu0 0.0
  %3548 = vmatpush1.msra.mxu0 %v3501
  %3549 = vmatprep.subr.mxu0 0.0
  %3550 = vmatpush2.msra.mxu0 0.0
  %3551 = vmatprep.subr.mxu0 0.0
  %3552 = vmatpush2.msra.mxu0 0.0
  %3553 = vmatprep.subr.mxu0 0.0
  %3554 = vmatpush2.msra.mxu0 0.0
  %3555 = vmatprep.subr.mxu0 0.0
  %3556 = vmatpush2.msra.mxu0 0.0
  %3557 = vmatprep.subr.mxu0 0.0
  %3558 = vmatpush2.msra.mxu0 0.0
  %3559 = vmatprep.subr.mxu0 0.0
  %3560 = vmatpush2.msra.mxu0 0.0
  %3561 = vmatprep.subr.mxu0 0.0
  %3562 = vmatpush2.msra.mxu0 0.0
  %3563 = vmatprep.subr.mxu0 0.0
  %3564 = vmatpush2.msra.mxu0 0.0
  %3565 = vmatprep.subr.mxu0 0.0
  %3566 = vmatpush2.msra.mxu0 0.0
  %3567 = vmatprep.subr.mxu0 0.0
  %3568 = vmatpush2.msra.mxu0 0.0
  %3569 = vmatprep.subr.mxu0 0.0
  %3570 = vmatpush2.msra.mxu0 0.0
  %3571 = vmatprep.subr.mxu0 0.0
  %3572 = vmatpush2.msra.mxu0 0.0
  %3573 = vmatprep.subr.mxu0 0.0
  %3574 = vmatpush2.msra.mxu0 0.0
  %3575 = vmatprep.subr.mxu0 0.0
  %3576 = vmatpush2.msra.mxu0 0.0
  %3577 = vmatprep.subr.mxu0 0.0
  %3578 = vmatpush2.msra.mxu0 0.0
  %3579 = vmatprep.subr.mxu0 0.0
  %3580 = vmatpush2.msra.mxu0 0.0
  %3581 = vmatprep.mubr.f32.mxu0 0.0
  %3582 = vmatmul.mubr.f32.gmra.mxu0 %v3515
  %v3583 = vpop.f32.mrf.mxu0
  %v3584 = vadd.f32 %v3510, %v3583
  %v3585 = vpop.f32.mrf.mxu0
  %3586 = vdwg.mxu0
  %3587 = vrot.lane.b32.xlu0 %v3312, 8
  %v3588 = vpop.permute.xlu0 %3587
  %3591 = vrot.lane.b32.xlu0 %v3584, 24
  %v3592 = vpop.permute.xlu0 %3591
  %v3594 = vsel %vm272, %v3308, %v3588
  %v3595 = vsel %vm1250, %v3594, %v3592
  %v3596 = vsel %vm1252, %v3595, 0.0
  %s3597 = scalar_lea.vmem %s14, 4
  %3598 = vst [vmem:[%s3597] sm:$0x3] %v3596
  // Predicated region
  $region58: #{_lambda_.1} parent=0 // pred_check
    _
  $region59: #{_lambda_.1} parent=0 // pred_check_branch
    %3600 = sbr.rel (0) target = $region61
  $region60: #{_lambda_.1} parent=0 // pred_region
    _
  $region61: #{_lambda_.1} parent=0 // pred_fallthru
    _
  // Predicated region
  $region62: #{_lambda_.1} parent=0 // pred_check
    _
  $region63: #{_lambda_.1} parent=0 // pred_check_branch
    %3602 = sbr.rel (0) target = $region65
  $region64: #{_lambda_.1} parent=0 // pred_region
    _
  $region65: #{_lambda_.1} parent=0 // pred_fallthru
    _

</llo_original>
